<compile_context>
chip_gen: v7x
topology: tpu7x:2x2x1
jax: 0.10.0
libtpu: 0.0.40
codegen_flags: <defaults>
</compile_context>

<pallas_src>
import functools
import math

import jax
import jax.numpy as jnp
from jax import lax
from jax.experimental import pallas as pl
from jax.experimental.pallas import tpu as pltpu

_NEG_BIG = -1e30  # finite additive mask (no inf-inf -> NaN risk)


# ---------------------------------------------------------------------------
# Kernel
# ---------------------------------------------------------------------------
def decoder_layer_kernel(
    x_ref, ctx_ref,
    sa_qkv_w, sa_qkv_b, sa_out_w, sa_out_b,                 # self-attn: fused QKV + out proj
    ca_q_w, ca_q_b, ca_kv_w, ca_kv_b, ca_out_w, ca_out_b,   # cross-attn: Q, fused KV, out proj
    ffn_w1, ffn_b1, ffn_w2, ffn_b2,                         # FFN
    ln_g_ref, ln_b_ref,                                     # (3, C) LayerNorm gammas / betas
    out_ref,
    *, num_heads, head_dim, bblk, t_len, s_len,
):
    H, D = num_heads, head_dim
    C = H * D
    scale = 1.0 / math.sqrt(D)

    xs = x_ref[...].astype(jnp.float32)     # (Bblk*T, C) residual stream, f32
    ctx_bf = ctx_ref[...]                   # (Bblk*S, C) bf16 (MXU operand as-is)

    def linear(v, w_ref, b_ref):
        # bf16 MXU operands, f32 accumulation, f32 bias add.
        return jnp.dot(v.astype(jnp.bfloat16), w_ref[...],
                       preferred_element_type=jnp.float32) + b_ref[...]

    def layernorm(v, idx, eps=1e-5):
        mu = jnp.mean(v, axis=-1, keepdims=True)
        var = jnp.mean(jnp.square(v - mu), axis=-1, keepdims=True)
        return ((v - mu) * lax.rsqrt(var + eps)
                * ln_g_ref[idx:idx + 1, :] + ln_b_ref[idx:idx + 1, :])

    def gelu_exact(v):   # F.gelu default = exact erf GELU
        return 0.5 * v * (1.0 + lax.erf(v * (1.0 / math.sqrt(2.0))))

    def split_heads(z, rows):
        # (Bblk*rows, C) -> (H*Bblk, rows, D); batch index = h*Bblk + b.
        # Lane slices + leading-dim reshape only (no non-minor transpose).
        zs = jnp.stack([z[:, h * D:(h + 1) * D] for h in range(H)], axis=0)
        return zs.reshape(H * bblk, rows, D)

    def merge_heads(pv):
        # (H*Bblk, T, D) -> (Bblk*T, C): leading-dim reshape + one lane concat.
        ph = pv.reshape(H, bblk * t_len, D)
        return jnp.concatenate([ph[h] for h in range(H)], axis=-1)

    def mha(q2, k2, v2, rows_kv, bias):
        # q2: (Bblk*T, C) bf16; k2/v2: (Bblk*rows_kv, C) bf16.
        q = split_heads(q2, t_len)
        k = split_heads(k2, rows_kv)
        v = split_heads(v2, rows_kv)
        # One batched score matmul (contracts the last/lane dim of both operands —
        # no transposed copy of K is materialized).
        s = jnp.einsum('bqd,bkd->bqk', q, k,
                       preferred_element_type=jnp.float32) * scale
        if bias is not None:
            s = s + bias[None, :, :]
        m = jnp.max(s, axis=-1, keepdims=True)
        e = jnp.exp(s - m)
        p = e * pl.reciprocal(jnp.sum(e, axis=-1, keepdims=True), approx=True)
        pv = jnp.einsum('bqk,bkd->bqd', p.astype(jnp.bfloat16), v,
                        preferred_element_type=jnp.float32)
        return merge_heads(pv)

    # Additive causal bias built ONCE per grid step (lower-triangular TxT).
    row = lax.broadcasted_iota(jnp.int32, (t_len, t_len), 0)
    col = lax.broadcasted_iota(jnp.int32, (t_len, t_len), 1)
    causal_bias = jnp.where(col <= row, 0.0, _NEG_BIG).astype(jnp.float32)

    # --- block 1: causal self-attention + residual + norm1 --------------------
    qkv = linear(xs, sa_qkv_w, sa_qkv_b).astype(jnp.bfloat16)          # (N, 3C) fused
    sa = mha(qkv[:, 0:C], qkv[:, C:2 * C], qkv[:, 2 * C:3 * C], t_len, causal_bias)
    sa = linear(sa, sa_out_w, sa_out_b)
    xs = layernorm(xs + sa, 0)

    # --- block 2: cross-attention over context + residual + norm2 -------------
    q_c = linear(xs, ca_q_w, ca_q_b).astype(jnp.bfloat16)              # (N, C)
    kv = linear(ctx_bf, ca_kv_w, ca_kv_b).astype(jnp.bfloat16)         # (M, 2C) fused
    ca = mha(q_c, kv[:, 0:C], kv[:, C:2 * C], s_len, None)
    ca = linear(ca, ca_out_w, ca_out_b)
    xs = layernorm(xs + ca, 1)

    # --- block 3: feed-forward + residual + norm3 ------------------------------
    hdn = gelu_exact(linear(xs, ffn_w1, ffn_b1))                        # (N, 4C) f32
    ff = linear(hdn, ffn_w2, ffn_b2)
    xs = layernorm(xs + ff, 2)

    out_ref[...] = xs.astype(out_ref.dtype)


# ---------------------------------------------------------------------------
# Wrapper
# ---------------------------------------------------------------------------
def _pick_batch_block(B, T, target_rows=256, max_rows=2048):
    """Largest divisor of B so that Bblk*T is a healthy MXU M (<= max_rows)."""
    best = 1
    for bb in range(1, B + 1):
        if B % bb:
            continue
        if bb * T <= max_rows:
            best = bb
        if bb * T >= target_rows:
            break
    return best


def transformer_decoder_layer(x, ctx, params, *, num_heads):
    B, T, C = x.shape
    S = ctx.shape[1]
    assert C % num_heads == 0
    head_dim = C // num_heads
    # Sublane-aligned sequence lengths keep all in-kernel reshapes layout-free.
    assert T % 8 == 0 and S % 8 == 0  # TODO(synk): pad ragged T/S if ever needed

    bblk = _pick_batch_block(B, T)
    n_rows, s_rows = bblk * T, bblk * S
    grid = (B // bblk,)

    # bf16 activations at the kernel boundary (halves activation DMA bytes).
    x2 = x.reshape(B * T, C).astype(jnp.bfloat16)
    c2 = ctx.reshape(B * S, C).astype(jnp.bfloat16)

    weights = [
        params["sa_qkv_w"], params["sa_qkv_b"],
        params["sa_out_w"], params["sa_out_b"],
        params["ca_q_w"], params["ca_q_b"],
        params["ca_kv_w"], params["ca_kv_b"],
        params["ca_out_w"], params["ca_out_b"],
        params["ffn_w1"], params["ffn_b1"],
        params["ffn_w2"], params["ffn_b2"],
        params["ln_g"], params["ln_b"],
    ]

    def const_spec(a):
        nd = a.ndim
        return pl.BlockSpec(a.shape, lambda b, _nd=nd: (0,) * _nd)

    w_specs = [const_spec(w) for w in weights]

    # VMEM budget: weights + activation blocks are double-buffered by the default
    # pipeline (constant index maps -> fetched once); intermediates single-copy.
    # Clamp against the physical VMEM of the current chip (v7x = 64 MiB).
    wbytes = sum(int(w.size) * w.dtype.itemsize for w in weights)
    act_block_bytes = 2 * (2 * n_rows * C + s_rows * C)             # bf16 x/out/ctx blocks
    inter_bytes = 4 * (n_rows * 4 * C                               # FFN hidden (f32)
                       + n_rows * 3 * C                             # fused QKV
                       + num_heads * bblk * T * max(T, S)           # scores
                       + 6 * n_rows * C)                            # misc temporaries
    needed = 2 * (wbytes + act_block_bytes) + 2 * inter_bytes
    try:
        vmem_cap = int(pltpu.get_tpu_info().vmem_capacity_bytes)
    except Exception:
        vmem_cap = 64 << 20                                         # conservative (v7x)
    vmem_limit = int(min(max(needed, 32 << 20), vmem_cap - (8 << 20)))

    kernel = functools.partial(decoder_layer_kernel,
                               num_heads=num_heads, head_dim=head_dim,
                               bblk=bblk, t_len=T, s_len=S)

    out2 = pl.pallas_call(
        kernel,
        out_shape=jax.ShapeDtypeStruct((B * T, C), jnp.bfloat16),
        grid=grid,
        in_specs=[
            pl.BlockSpec((n_rows, C), lambda b: (b, 0)),   # x rows (Bblk seqs)
            pl.BlockSpec((s_rows, C), lambda b: (b, 0)),   # context rows
            *w_specs,
        ],
        out_specs=pl.BlockSpec((n_rows, C), lambda b: (b, 0)),
        compiler_params=pltpu.CompilerParams(
            dimension_semantics=("parallel",),
            vmem_limit_bytes=vmem_limit,
        ),
    )(x2, c2, *weights)
    return out2.reshape(B, T, C)


# ---------------------------------------------------------------------------
# Pure-JAX reference (f32) for correctness check
# ---------------------------------------------------------------------------
def _ref_attention(q, k, v, num_heads, causal):
    T, C = q.shape
    S = k.shape[0]
    D = C // num_heads
    qh = q.reshape(T, num_heads, D).transpose(1, 0, 2)
    kh = k.reshape(S, num_heads, D).transpose(1, 0, 2)
    vh = v.reshape(S, num_heads, D).transpose(1, 0, 2)
    s = jnp.einsum("htd,hsd->hts", qh, kh) / math.sqrt(D)
    if causal:
        mask = jnp.tril(jnp.ones((T, S)))
        s = jnp.where(mask == 0, -jnp.inf, s)
    p = jax.nn.softmax(s, axis=-1)
    return jnp.einsum("hts,hsd->htd", p, vh).transpose(1, 0, 2).reshape(T, C)


def _ref_layer(x, ctx, params, num_heads):
    f32 = lambda a: a.astype(jnp.float32)
    C = x.shape[-1]

    def ln(v, g, b):
        mu = v.mean(-1, keepdims=True)
        var = ((v - mu) ** 2).mean(-1, keepdims=True)
        return (v - mu) / jnp.sqrt(var + 1e-5) * g + b

    def gelu(h):
        return 0.5 * h * (1.0 + lax.erf(h / math.sqrt(2.0)))

    def one(xb, cb):
        qkv = xb @ f32(params["sa_qkv_w"]) + params["sa_qkv_b"][0]
        sa = _ref_attention(qkv[:, :C], qkv[:, C:2 * C], qkv[:, 2 * C:], num_heads, True)
        sa = sa @ f32(params["sa_out_w"]) + params["sa_out_b"][0]
        xb = ln(xb + sa, params["ln_g"][0], params["ln_b"][0])

        q = xb @ f32(params["ca_q_w"]) + params["ca_q_b"][0]
        kv = cb @ f32(params["ca_kv_w"]) + params["ca_kv_b"][0]
        ca = _ref_attention(q, kv[:, :C], kv[:, C:], num_heads, False)
        ca = ca @ f32(params["ca_out_w"]) + params["ca_out_b"][0]
        xb = ln(xb + ca, params["ln_g"][1], params["ln_b"][1])

        h = gelu(xb @ f32(params["ffn_w1"]) + params["ffn_b1"][0])
        ff = h @ f32(params["ffn_w2"]) + params["ffn_b2"][0]
        return ln(xb + ff, params["ln_g"][2], params["ln_b"][2])

    return jax.vmap(one)(x, ctx)


# ---------------------------------------------------------------------------
# Main
# ---------------------------------------------------------------------------
if __name__ == "__main__":
    # Small config consistent with ModelConfig (scaled down): embed_dim=128, n_heads=4.
    B, T, S, C, H = 2, 16, 16, 128, 4
    F4 = 4 * C

    key = jax.random.PRNGKey(0)
    keys = jax.random.split(key, 18)

    def w_bf16(k, shape, scale=0.05):
        return (scale * jax.random.normal(k, shape, dtype=jnp.float32)).astype(jnp.bfloat16)

    def b_f32(k, shape, scale=0.05):
        return (scale * jax.random.normal(k, shape, dtype=jnp.float32)).astype(jnp.float32)

    params = {
        "sa_qkv_w": w_bf16(keys[0], (C, 3 * C)),
        "sa_qkv_b": b_f32(keys[1], (1, 3 * C)),
        "sa_out_w": w_bf16(keys[2], (C, C)),
        "sa_out_b": b_f32(keys[3], (1, C)),
        "ca_q_w": w_bf16(keys[4], (C, C)),
        "ca_q_b": b_f32(keys[5], (1, C)),
        "ca_kv_w": w_bf16(keys[6], (C, 2 * C)),
        "ca_kv_b": b_f32(keys[7], (1, 2 * C)),
        "ca_out_w": w_bf16(keys[8], (C, C)),
        "ca_out_b": b_f32(keys[9], (1, C)),
        "ffn_w1": w_bf16(keys[10], (C, F4)),
        "ffn_b1": b_f32(keys[11], (1, F4)),
        "ffn_w2": w_bf16(keys[12], (F4, C)),
        "ffn_b2": b_f32(keys[13], (1, C)),
        "ln_g": (1.0 + 0.1 * jax.random.normal(keys[14], (3, C))).astype(jnp.float32),
        "ln_b": (0.1 * jax.random.normal(keys[15], (3, C))).astype(jnp.float32),
    }

    # bf16 activations at the boundary (same quantized values fed to the reference).
    x = jax.random.normal(keys[16], (B, T, C), dtype=jnp.float32).astype(jnp.bfloat16)
    ctx = jax.random.normal(keys[17], (B, S, C), dtype=jnp.float32).astype(jnp.bfloat16)

    out = transformer_decoder_layer(x, ctx, params, num_heads=H)
    out = jax.block_until_ready(out)

    ref = _ref_layer(x.astype(jnp.float32), ctx.astype(jnp.float32), params, H)
    assert out.shape == (B, T, C)
    out_f32 = out.astype(jnp.float32)
    max_err = float(jnp.max(jnp.abs(out_f32 - ref)))
    # bf16 matmul operands + bf16 output + approx reciprocal vs. an all-f32 reference.
    assert jnp.allclose(out_f32, ref, rtol=2e-2, atol=3e-2), \
        f"mismatch vs reference (max |err| = {max_err})"

    print("KERNEL_OK")
</pallas_src>

<mosaic_0001>
module attributes {stable_mosaic.version = 11 : i64} {
  func.func @decoder_layer_kernel(%arg0: i32, %arg1: memref<32x128xbf16, #tpu.memory_space<vmem>>, %arg2: memref<32x128xbf16, #tpu.memory_space<vmem>>, %arg3: memref<128x384xbf16, #tpu.memory_space<vmem>>, %arg4: memref<1x384xf32, #tpu.memory_space<vmem>>, %arg5: memref<128x128xbf16, #tpu.memory_space<vmem>>, %arg6: memref<1x128xf32, #tpu.memory_space<vmem>>, %arg7: memref<128x128xbf16, #tpu.memory_space<vmem>>, %arg8: memref<1x128xf32, #tpu.memory_space<vmem>>, %arg9: memref<128x256xbf16, #tpu.memory_space<vmem>>, %arg10: memref<1x256xf32, #tpu.memory_space<vmem>>, %arg11: memref<128x128xbf16, #tpu.memory_space<vmem>>, %arg12: memref<1x128xf32, #tpu.memory_space<vmem>>, %arg13: memref<128x512xbf16, #tpu.memory_space<vmem>>, %arg14: memref<1x512xf32, #tpu.memory_space<vmem>>, %arg15: memref<512x128xbf16, #tpu.memory_space<vmem>>, %arg16: memref<1x128xf32, #tpu.memory_space<vmem>>, %arg17: memref<3x128xf32, #tpu.memory_space<vmem>>, %arg18: memref<3x128xf32, #tpu.memory_space<vmem>>, %arg19: memref<32x128xbf16, #tpu.memory_space<vmem>>) attributes {dimension_semantics = [#tpu.dimension_semantics<parallel>], iteration_bounds = array<i64: 1>, scalar_prefetch = 0 : i64, scratch_operands = 0 : i64, tpu.core_type = #tpu.core_type<tc>, window_params = [{transform_indices = @transform_0, window_bounds = array<i64: 32, 128>}, {transform_indices = @transform_1, window_bounds = array<i64: 32, 128>}, {pipeline_mode = #tpu.pipeline_mode<synchronous>, transform_indices = @transform_2, window_bounds = array<i64: 128, 384>}, {pipeline_mode = #tpu.pipeline_mode<synchronous>, transform_indices = @transform_3, window_bounds = array<i64: 1, 384>}, {pipeline_mode = #tpu.pipeline_mode<synchronous>, transform_indices = @transform_4, window_bounds = array<i64: 128, 128>}, {pipeline_mode = #tpu.pipeline_mode<synchronous>, transform_indices = @transform_5, window_bounds = array<i64: 1, 128>}, {pipeline_mode = #tpu.pipeline_mode<synchronous>, transform_indices = @transform_6, window_bounds = array<i64: 128, 128>}, {pipeline_mode = #tpu.pipeline_mode<synchronous>, transform_indices = @transform_7, window_bounds = array<i64: 1, 128>}, {pipeline_mode = #tpu.pipeline_mode<synchronous>, transform_indices = @transform_8, window_bounds = array<i64: 128, 256>}, {pipeline_mode = #tpu.pipeline_mode<synchronous>, transform_indices = @transform_9, window_bounds = array<i64: 1, 256>}, {pipeline_mode = #tpu.pipeline_mode<synchronous>, transform_indices = @transform_10, window_bounds = array<i64: 128, 128>}, {pipeline_mode = #tpu.pipeline_mode<synchronous>, transform_indices = @transform_11, window_bounds = array<i64: 1, 128>}, {pipeline_mode = #tpu.pipeline_mode<synchronous>, transform_indices = @transform_12, window_bounds = array<i64: 128, 512>}, {pipeline_mode = #tpu.pipeline_mode<synchronous>, transform_indices = @transform_13, window_bounds = array<i64: 1, 512>}, {pipeline_mode = #tpu.pipeline_mode<synchronous>, transform_indices = @transform_14, window_bounds = array<i64: 512, 128>}, {pipeline_mode = #tpu.pipeline_mode<synchronous>, transform_indices = @transform_15, window_bounds = array<i64: 1, 128>}, {pipeline_mode = #tpu.pipeline_mode<synchronous>, transform_indices = @transform_16, window_bounds = array<i64: 3, 128>}, {pipeline_mode = #tpu.pipeline_mode<synchronous>, transform_indices = @transform_17, window_bounds = array<i64: 3, 128>}, {transform_indices = @transform_18, window_bounds = array<i64: 32, 128>}]} {
    %c0 = arith.constant 0 : index
    %c0_0 = arith.constant 0 : index
    %0 = vector.load %arg1[%c0, %c0_0] : memref<32x128xbf16, #tpu.memory_space<vmem>>, vector<32x128xbf16>
    %1 = arith.extf %0 : vector<32x128xbf16> to vector<32x128xf32>
    %c0_1 = arith.constant 0 : index
    %c0_2 = arith.constant 0 : index
    %2 = vector.load %arg2[%c0_1, %c0_2] : memref<32x128xbf16, #tpu.memory_space<vmem>>, vector<32x128xbf16>
    %3 = tpu.iota {dimensions = array<i32: 0>} : vector<16x16xi32>
    %4 = tpu.iota {dimensions = array<i32: 1>} : vector<16x16xi32>
    %5 = arith.cmpi sle, %4, %3 : vector<16x16xi32>
    %cst = arith.constant 0.000000e+00 : f32
    %cst_3 = arith.constant -1.000000e+30 : f32
    %6 = vector.broadcast %cst : f32 to vector<16x16xf32>
    %7 = vector.broadcast %cst_3 : f32 to vector<16x16xf32>
    %8 = arith.select %5, %6, %7 : vector<16x16xi1>, vector<16x16xf32>
    %9 = arith.truncf %1 : vector<32x128xf32> to vector<32x128xbf16>
    %c0_4 = arith.constant 0 : index
    %c0_5 = arith.constant 0 : index
    %10 = vector.load %arg3[%c0_4, %c0_5] : memref<128x384xbf16, #tpu.memory_space<vmem>>, vector<128x384xbf16>
    %cst_6 = arith.constant dense<0.000000e+00> : vector<32x384xf32>
    %11 = tpu.matmul %9, %10, %cst_6 {dimension_numbers = #tpu.dot_dimension_numbers<[1], [0], [0], [1], [0, 0, 1, 1], [], []>} : vector<32x128xbf16>, vector<128x384xbf16>, vector<32x384xf32> -> vector<32x384xf32>
    %c0_7 = arith.constant 0 : index
    %c0_8 = arith.constant 0 : index
    %12 = vector.load %arg4[%c0_7, %c0_8] : memref<1x384xf32, #tpu.memory_space<vmem>>, vector<1x384xf32>
    %13 = vector.broadcast %12 : vector<1x384xf32> to vector<32x384xf32>
    %14 = arith.addf %11, %13 : vector<32x384xf32>
    %15 = arith.truncf %14 : vector<32x384xf32> to vector<32x384xbf16>
    %16 = vector.extract_strided_slice %15 {offsets = [0, 0], sizes = [32, 128], strides = [1, 1]} : vector<32x384xbf16> to vector<32x128xbf16>
    %17 = vector.extract_strided_slice %15 {offsets = [0, 128], sizes = [32, 128], strides = [1, 1]} : vector<32x384xbf16> to vector<32x128xbf16>
    %18 = vector.extract_strided_slice %15 {offsets = [0, 256], sizes = [32, 128], strides = [1, 1]} : vector<32x384xbf16> to vector<32x128xbf16>
    %19 = vector.extract_strided_slice %16 {offsets = [0, 0], sizes = [32, 32], strides = [1, 1]} : vector<32x128xbf16> to vector<32x32xbf16>
    %20 = vector.extract_strided_slice %16 {offsets = [0, 32], sizes = [32, 32], strides = [1, 1]} : vector<32x128xbf16> to vector<32x32xbf16>
    %21 = vector.extract_strided_slice %16 {offsets = [0, 64], sizes = [32, 32], strides = [1, 1]} : vector<32x128xbf16> to vector<32x32xbf16>
    %22 = vector.extract_strided_slice %16 {offsets = [0, 96], sizes = [32, 32], strides = [1, 1]} : vector<32x128xbf16> to vector<32x32xbf16>
    %23 = vector.shape_cast %19 : vector<32x32xbf16> to vector<1x32x32xbf16>
    %24 = vector.shape_cast %20 : vector<32x32xbf16> to vector<1x32x32xbf16>
    %25 = vector.shape_cast %21 : vector<32x32xbf16> to vector<1x32x32xbf16>
    %26 = vector.shape_cast %22 : vector<32x32xbf16> to vector<1x32x32xbf16>
    %27 = tpu.concatenate %23, %24, %25, %26 in 0 : vector<1x32x32xbf16>, vector<1x32x32xbf16>, vector<1x32x32xbf16>, vector<1x32x32xbf16> -> vector<4x32x32xbf16>
    %28 = vector.shape_cast %27 : vector<4x32x32xbf16> to vector<8x16x32xbf16>
    %29 = vector.extract_strided_slice %17 {offsets = [0, 0], sizes = [32, 32], strides = [1, 1]} : vector<32x128xbf16> to vector<32x32xbf16>
    %30 = vector.extract_strided_slice %17 {offsets = [0, 32], sizes = [32, 32], strides = [1, 1]} : vector<32x128xbf16> to vector<32x32xbf16>
    %31 = vector.extract_strided_slice %17 {offsets = [0, 64], sizes = [32, 32], strides = [1, 1]} : vector<32x128xbf16> to vector<32x32xbf16>
    %32 = vector.extract_strided_slice %17 {offsets = [0, 96], sizes = [32, 32], strides = [1, 1]} : vector<32x128xbf16> to vector<32x32xbf16>
    %33 = vector.shape_cast %29 : vector<32x32xbf16> to vector<1x32x32xbf16>
    %34 = vector.shape_cast %30 : vector<32x32xbf16> to vector<1x32x32xbf16>
    %35 = vector.shape_cast %31 : vector<32x32xbf16> to vector<1x32x32xbf16>
    %36 = vector.shape_cast %32 : vector<32x32xbf16> to vector<1x32x32xbf16>
    %37 = tpu.concatenate %33, %34, %35, %36 in 0 : vector<1x32x32xbf16>, vector<1x32x32xbf16>, vector<1x32x32xbf16>, vector<1x32x32xbf16> -> vector<4x32x32xbf16>
    %38 = vector.shape_cast %37 : vector<4x32x32xbf16> to vector<8x16x32xbf16>
    %39 = vector.extract_strided_slice %18 {offsets = [0, 0], sizes = [32, 32], strides = [1, 1]} : vector<32x128xbf16> to vector<32x32xbf16>
    %40 = vector.extract_strided_slice %18 {offsets = [0, 32], sizes = [32, 32], strides = [1, 1]} : vector<32x128xbf16> to vector<32x32xbf16>
    %41 = vector.extract_strided_slice %18 {offsets = [0, 64], sizes = [32, 32], strides = [1, 1]} : vector<32x128xbf16> to vector<32x32xbf16>
    %42 = vector.extract_strided_slice %18 {offsets = [0, 96], sizes = [32, 32], strides = [1, 1]} : vector<32x128xbf16> to vector<32x32xbf16>
    %43 = vector.shape_cast %39 : vector<32x32xbf16> to vector<1x32x32xbf16>
    %44 = vector.shape_cast %40 : vector<32x32xbf16> to vector<1x32x32xbf16>
    %45 = vector.shape_cast %41 : vector<32x32xbf16> to vector<1x32x32xbf16>
    %46 = vector.shape_cast %42 : vector<32x32xbf16> to vector<1x32x32xbf16>
    %47 = tpu.concatenate %43, %44, %45, %46 in 0 : vector<1x32x32xbf16>, vector<1x32x32xbf16>, vector<1x32x32xbf16>, vector<1x32x32xbf16> -> vector<4x32x32xbf16>
    %48 = vector.shape_cast %47 : vector<4x32x32xbf16> to vector<8x16x32xbf16>
    "tpu.trace_start"() <{level = 10 : i32, message = "bqd,bkd->bqk"}> : () -> ()
    %cst_9 = arith.constant dense<0.000000e+00> : vector<8x16x16xf32>
    %49 = tpu.matmul %28, %38, %cst_9 {dimension_numbers = #tpu.dot_dimension_numbers<[2], [2], [1], [1], [0, 0, 0, 1, 1, 1], [0], [0]>} : vector<8x16x32xbf16>, vector<8x16x32xbf16>, vector<8x16x16xf32> -> vector<8x16x16xf32>
    "tpu.trace_stop"() : () -> ()
    %cst_10 = arith.constant 0.176776692 : f32
    %50 = vector.broadcast %cst_10 : f32 to vector<8x16x16xf32>
    %51 = arith.mulf %49, %50 : vector<8x16x16xf32>
    %52 = vector.shape_cast %8 : vector<16x16xf32> to vector<1x16x16xf32>
    %53 = vector.broadcast %52 : vector<1x16x16xf32> to vector<8x16x16xf32>
    %54 = arith.addf %51, %53 : vector<8x16x16xf32>
    %cst_11 = arith.constant dense<0xFF800000> : vector<8x16xf32>
    %55 = vector.multi_reduction <maximumf>, %54, %cst_11 [2] : vector<8x16x16xf32> to vector<8x16xf32>
    %56 = vector.shape_cast %55 : vector<8x16xf32> to vector<8x16x1xf32>
    %57 = vector.broadcast %56 : vector<8x16x1xf32> to vector<8x16x16xf32>
    %58 = arith.subf %54, %57 : vector<8x16x16xf32>
    %59 = math.exp %58 : vector<8x16x16xf32>
    %cst_12 = arith.constant dense<0.000000e+00> : vector<8x16xf32>
    %60 = vector.multi_reduction <add>, %59, %cst_12 [2] : vector<8x16x16xf32> to vector<8x16xf32>
    %61 = vector.shape_cast %60 : vector<8x16xf32> to vector<8x16x1xf32>
    %62 = tpu.reciprocal %61 {approx = true} : vector<8x16x1xf32> -> vector<8x16x1xf32>
    %63 = vector.broadcast %62 : vector<8x16x1xf32> to vector<8x16x16xf32>
    %64 = arith.mulf %59, %63 : vector<8x16x16xf32>
    %65 = arith.truncf %64 : vector<8x16x16xf32> to vector<8x16x16xbf16>
    "tpu.trace_start"() <{level = 10 : i32, message = "bqk,bkd->bqd"}> : () -> ()
    %cst_13 = arith.constant dense<0.000000e+00> : vector<8x16x32xf32>
    %66 = tpu.matmul %65, %48, %cst_13 {dimension_numbers = #tpu.dot_dimension_numbers<[2], [1], [1], [2], [0, 0, 0, 1, 1, 2], [0], [0]>} : vector<8x16x16xbf16>, vector<8x16x32xbf16>, vector<8x16x32xf32> -> vector<8x16x32xf32>
    "tpu.trace_stop"() : () -> ()
    %67 = vector.shape_cast %66 : vector<8x16x32xf32> to vector<4x32x32xf32>
    %68 = vector.extract_strided_slice %67 {offsets = [0, 0, 0], sizes = [1, 32, 32], strides = [1, 1, 1]} : vector<4x32x32xf32> to vector<1x32x32xf32>
    %69 = vector.shape_cast %68 : vector<1x32x32xf32> to vector<32x32xf32>
    %70 = vector.extract_strided_slice %67 {offsets = [1, 0, 0], sizes = [1, 32, 32], strides = [1, 1, 1]} : vector<4x32x32xf32> to vector<1x32x32xf32>
    %71 = vector.shape_cast %70 : vector<1x32x32xf32> to vector<32x32xf32>
    %72 = vector.extract_strided_slice %67 {offsets = [2, 0, 0], sizes = [1, 32, 32], strides = [1, 1, 1]} : vector<4x32x32xf32> to vector<1x32x32xf32>
    %73 = vector.shape_cast %72 : vector<1x32x32xf32> to vector<32x32xf32>
    %74 = vector.extract_strided_slice %67 {offsets = [3, 0, 0], sizes = [1, 32, 32], strides = [1, 1, 1]} : vector<4x32x32xf32> to vector<1x32x32xf32>
    %75 = vector.shape_cast %74 : vector<1x32x32xf32> to vector<32x32xf32>
    %76 = tpu.concatenate %69, %71, %73, %75 in 1 : vector<32x32xf32>, vector<32x32xf32>, vector<32x32xf32>, vector<32x32xf32> -> vector<32x128xf32>
    %77 = arith.truncf %76 : vector<32x128xf32> to vector<32x128xbf16>
    %c0_14 = arith.constant 0 : index
    %c0_15 = arith.constant 0 : index
    %78 = vector.load %arg5[%c0_14, %c0_15] : memref<128x128xbf16, #tpu.memory_space<vmem>>, vector<128x128xbf16>
    %cst_16 = arith.constant dense<0.000000e+00> : vector<32x128xf32>
    %79 = tpu.matmul %77, %78, %cst_16 {dimension_numbers = #tpu.dot_dimension_numbers<[1], [0], [0], [1], [0, 0, 1, 1], [], []>} : vector<32x128xbf16>, vector<128x128xbf16>, vector<32x128xf32> -> vector<32x128xf32>
    %c0_17 = arith.constant 0 : index
    %c0_18 = arith.constant 0 : index
    %80 = vector.load %arg6[%c0_17, %c0_18] : memref<1x128xf32, #tpu.memory_space<vmem>>, vector<1x128xf32>
    %81 = vector.broadcast %80 : vector<1x128xf32> to vector<32x128xf32>
    %82 = arith.addf %79, %81 : vector<32x128xf32>
    %83 = arith.addf %1, %82 : vector<32x128xf32>
    %cst_19 = arith.constant dense<0.000000e+00> : vector<32xf32>
    %84 = vector.multi_reduction <add>, %83, %cst_19 [1] : vector<32x128xf32> to vector<32xf32>
    %85 = vector.shape_cast %84 : vector<32xf32> to vector<32x1xf32>
    %cst_20 = arith.constant 1.280000e+02 : f32
    %86 = vector.broadcast %cst_20 : f32 to vector<32x1xf32>
    %87 = arith.divf %85, %86 : vector<32x1xf32>
    %88 = vector.broadcast %87 : vector<32x1xf32> to vector<32x128xf32>
    %89 = arith.subf %83, %88 : vector<32x128xf32>
    %90 = arith.mulf %89, %89 : vector<32x128xf32>
    %cst_21 = arith.constant dense<0.000000e+00> : vector<32xf32>
    %91 = vector.multi_reduction <add>, %90, %cst_21 [1] : vector<32x128xf32> to vector<32xf32>
    %92 = vector.shape_cast %91 : vector<32xf32> to vector<32x1xf32>
    %cst_22 = arith.constant 1.280000e+02 : f32
    %93 = vector.broadcast %cst_22 : f32 to vector<32x1xf32>
    %94 = arith.divf %92, %93 : vector<32x1xf32>
    %95 = vector.broadcast %87 : vector<32x1xf32> to vector<32x128xf32>
    %96 = arith.subf %83, %95 : vector<32x128xf32>
    %cst_23 = arith.constant 9.99999974E-6 : f32
    %97 = vector.broadcast %cst_23 : f32 to vector<32x1xf32>
    %98 = arith.addf %94, %97 : vector<32x1xf32>
    %99 = math.rsqrt %98 : vector<32x1xf32>
    %100 = vector.broadcast %99 : vector<32x1xf32> to vector<32x128xf32>
    %101 = arith.mulf %96, %100 : vector<32x128xf32>
    %c0_24 = arith.constant 0 : index
    %c0_25 = arith.constant 0 : index
    %102 = vector.load %arg17[%c0_24, %c0_25] : memref<3x128xf32, #tpu.memory_space<vmem>>, vector<1x128xf32>
    %103 = vector.broadcast %102 : vector<1x128xf32> to vector<32x128xf32>
    %104 = arith.mulf %101, %103 : vector<32x128xf32>
    %c0_26 = arith.constant 0 : index
    %c0_27 = arith.constant 0 : index
    %105 = vector.load %arg18[%c0_26, %c0_27] : memref<3x128xf32, #tpu.memory_space<vmem>>, vector<1x128xf32>
    %106 = vector.broadcast %105 : vector<1x128xf32> to vector<32x128xf32>
    %107 = arith.addf %104, %106 : vector<32x128xf32>
    %108 = arith.truncf %107 : vector<32x128xf32> to vector<32x128xbf16>
    %c0_28 = arith.constant 0 : index
    %c0_29 = arith.constant 0 : index
    %109 = vector.load %arg7[%c0_28, %c0_29] : memref<128x128xbf16, #tpu.memory_space<vmem>>, vector<128x128xbf16>
    %cst_30 = arith.constant dense<0.000000e+00> : vector<32x128xf32>
    %110 = tpu.matmul %108, %109, %cst_30 {dimension_numbers = #tpu.dot_dimension_numbers<[1], [0], [0], [1], [0, 0, 1, 1], [], []>} : vector<32x128xbf16>, vector<128x128xbf16>, vector<32x128xf32> -> vector<32x128xf32>
    %c0_31 = arith.constant 0 : index
    %c0_32 = arith.constant 0 : index
    %111 = vector.load %arg8[%c0_31, %c0_32] : memref<1x128xf32, #tpu.memory_space<vmem>>, vector<1x128xf32>
    %112 = vector.broadcast %111 : vector<1x128xf32> to vector<32x128xf32>
    %113 = arith.addf %110, %112 : vector<32x128xf32>
    %114 = arith.truncf %113 : vector<32x128xf32> to vector<32x128xbf16>
    %c0_33 = arith.constant 0 : index
    %c0_34 = arith.constant 0 : index
    %115 = vector.load %arg9[%c0_33, %c0_34] : memref<128x256xbf16, #tpu.memory_space<vmem>>, vector<128x256xbf16>
    %cst_35 = arith.constant dense<0.000000e+00> : vector<32x256xf32>
    %116 = tpu.matmul %2, %115, %cst_35 {dimension_numbers = #tpu.dot_dimension_numbers<[1], [0], [0], [1], [0, 0, 1, 1], [], []>} : vector<32x128xbf16>, vector<128x256xbf16>, vector<32x256xf32> -> vector<32x256xf32>
    %c0_36 = arith.constant 0 : index
    %c0_37 = arith.constant 0 : index
    %117 = vector.load %arg10[%c0_36, %c0_37] : memref<1x256xf32, #tpu.memory_space<vmem>>, vector<1x256xf32>
    %118 = vector.broadcast %117 : vector<1x256xf32> to vector<32x256xf32>
    %119 = arith.addf %116, %118 : vector<32x256xf32>
    %120 = arith.truncf %119 : vector<32x256xf32> to vector<32x256xbf16>
    %121 = vector.extract_strided_slice %120 {offsets = [0, 0], sizes = [32, 128], strides = [1, 1]} : vector<32x256xbf16> to vector<32x128xbf16>
    %122 = vector.extract_strided_slice %120 {offsets = [0, 128], sizes = [32, 128], strides = [1, 1]} : vector<32x256xbf16> to vector<32x128xbf16>
    %123 = vector.extract_strided_slice %114 {offsets = [0, 0], sizes = [32, 32], strides = [1, 1]} : vector<32x128xbf16> to vector<32x32xbf16>
    %124 = vector.extract_strided_slice %114 {offsets = [0, 32], sizes = [32, 32], strides = [1, 1]} : vector<32x128xbf16> to vector<32x32xbf16>
    %125 = vector.extract_strided_slice %114 {offsets = [0, 64], sizes = [32, 32], strides = [1, 1]} : vector<32x128xbf16> to vector<32x32xbf16>
    %126 = vector.extract_strided_slice %114 {offsets = [0, 96], sizes = [32, 32], strides = [1, 1]} : vector<32x128xbf16> to vector<32x32xbf16>
    %127 = vector.shape_cast %123 : vector<32x32xbf16> to vector<1x32x32xbf16>
    %128 = vector.shape_cast %124 : vector<32x32xbf16> to vector<1x32x32xbf16>
    %129 = vector.shape_cast %125 : vector<32x32xbf16> to vector<1x32x32xbf16>
    %130 = vector.shape_cast %126 : vector<32x32xbf16> to vector<1x32x32xbf16>
    %131 = tpu.concatenate %127, %128, %129, %130 in 0 : vector<1x32x32xbf16>, vector<1x32x32xbf16>, vector<1x32x32xbf16>, vector<1x32x32xbf16> -> vector<4x32x32xbf16>
    %132 = vector.shape_cast %131 : vector<4x32x32xbf16> to vector<8x16x32xbf16>
    %133 = vector.extract_strided_slice %121 {offsets = [0, 0], sizes = [32, 32], strides = [1, 1]} : vector<32x128xbf16> to vector<32x32xbf16>
    %134 = vector.extract_strided_slice %121 {offsets = [0, 32], sizes = [32, 32], strides = [1, 1]} : vector<32x128xbf16> to vector<32x32xbf16>
    %135 = vector.extract_strided_slice %121 {offsets = [0, 64], sizes = [32, 32], strides = [1, 1]} : vector<32x128xbf16> to vector<32x32xbf16>
    %136 = vector.extract_strided_slice %121 {offsets = [0, 96], sizes = [32, 32], strides = [1, 1]} : vector<32x128xbf16> to vector<32x32xbf16>
    %137 = vector.shape_cast %133 : vector<32x32xbf16> to vector<1x32x32xbf16>
    %138 = vector.shape_cast %134 : vector<32x32xbf16> to vector<1x32x32xbf16>
    %139 = vector.shape_cast %135 : vector<32x32xbf16> to vector<1x32x32xbf16>
    %140 = vector.shape_cast %136 : vector<32x32xbf16> to vector<1x32x32xbf16>
    %141 = tpu.concatenate %137, %138, %139, %140 in 0 : vector<1x32x32xbf16>, vector<1x32x32xbf16>, vector<1x32x32xbf16>, vector<1x32x32xbf16> -> vector<4x32x32xbf16>
    %142 = vector.shape_cast %141 : vector<4x32x32xbf16> to vector<8x16x32xbf16>
    %143 = vector.extract_strided_slice %122 {offsets = [0, 0], sizes = [32, 32], strides = [1, 1]} : vector<32x128xbf16> to vector<32x32xbf16>
    %144 = vector.extract_strided_slice %122 {offsets = [0, 32], sizes = [32, 32], strides = [1, 1]} : vector<32x128xbf16> to vector<32x32xbf16>
    %145 = vector.extract_strided_slice %122 {offsets = [0, 64], sizes = [32, 32], strides = [1, 1]} : vector<32x128xbf16> to vector<32x32xbf16>
    %146 = vector.extract_strided_slice %122 {offsets = [0, 96], sizes = [32, 32], strides = [1, 1]} : vector<32x128xbf16> to vector<32x32xbf16>
    %147 = vector.shape_cast %143 : vector<32x32xbf16> to vector<1x32x32xbf16>
    %148 = vector.shape_cast %144 : vector<32x32xbf16> to vector<1x32x32xbf16>
    %149 = vector.shape_cast %145 : vector<32x32xbf16> to vector<1x32x32xbf16>
    %150 = vector.shape_cast %146 : vector<32x32xbf16> to vector<1x32x32xbf16>
    %151 = tpu.concatenate %147, %148, %149, %150 in 0 : vector<1x32x32xbf16>, vector<1x32x32xbf16>, vector<1x32x32xbf16>, vector<1x32x32xbf16> -> vector<4x32x32xbf16>
    %152 = vector.shape_cast %151 : vector<4x32x32xbf16> to vector<8x16x32xbf16>
    "tpu.trace_start"() <{level = 10 : i32, message = "bqd,bkd->bqk"}> : () -> ()
    %cst_38 = arith.constant dense<0.000000e+00> : vector<8x16x16xf32>
    %153 = tpu.matmul %132, %142, %cst_38 {dimension_numbers = #tpu.dot_dimension_numbers<[2], [2], [1], [1], [0, 0, 0, 1, 1, 1], [0], [0]>} : vector<8x16x32xbf16>, vector<8x16x32xbf16>, vector<8x16x16xf32> -> vector<8x16x16xf32>
    "tpu.trace_stop"() : () -> ()
    %cst_39 = arith.constant 0.176776692 : f32
    %154 = vector.broadcast %cst_39 : f32 to vector<8x16x16xf32>
    %155 = arith.mulf %153, %154 : vector<8x16x16xf32>
    %cst_40 = arith.constant dense<0xFF800000> : vector<8x16xf32>
    %156 = vector.multi_reduction <maximumf>, %155, %cst_40 [2] : vector<8x16x16xf32> to vector<8x16xf32>
    %157 = vector.shape_cast %156 : vector<8x16xf32> to vector<8x16x1xf32>
    %158 = vector.broadcast %157 : vector<8x16x1xf32> to vector<8x16x16xf32>
    %159 = arith.subf %155, %158 : vector<8x16x16xf32>
    %160 = math.exp %159 : vector<8x16x16xf32>
    %cst_41 = arith.constant dense<0.000000e+00> : vector<8x16xf32>
    %161 = vector.multi_reduction <add>, %160, %cst_41 [2] : vector<8x16x16xf32> to vector<8x16xf32>
    %162 = vector.shape_cast %161 : vector<8x16xf32> to vector<8x16x1xf32>
    %163 = tpu.reciprocal %162 {approx = true} : vector<8x16x1xf32> -> vector<8x16x1xf32>
    %164 = vector.broadcast %163 : vector<8x16x1xf32> to vector<8x16x16xf32>
    %165 = arith.mulf %160, %164 : vector<8x16x16xf32>
    %166 = arith.truncf %165 : vector<8x16x16xf32> to vector<8x16x16xbf16>
    "tpu.trace_start"() <{level = 10 : i32, message = "bqk,bkd->bqd"}> : () -> ()
    %cst_42 = arith.constant dense<0.000000e+00> : vector<8x16x32xf32>
    %167 = tpu.matmul %166, %152, %cst_42 {dimension_numbers = #tpu.dot_dimension_numbers<[2], [1], [1], [2], [0, 0, 0, 1, 1, 2], [0], [0]>} : vector<8x16x16xbf16>, vector<8x16x32xbf16>, vector<8x16x32xf32> -> vector<8x16x32xf32>
    "tpu.trace_stop"() : () -> ()
    %168 = vector.shape_cast %167 : vector<8x16x32xf32> to vector<4x32x32xf32>
    %169 = vector.extract_strided_slice %168 {offsets = [0, 0, 0], sizes = [1, 32, 32], strides = [1, 1, 1]} : vector<4x32x32xf32> to vector<1x32x32xf32>
    %170 = vector.shape_cast %169 : vector<1x32x32xf32> to vector<32x32xf32>
    %171 = vector.extract_strided_slice %168 {offsets = [1, 0, 0], sizes = [1, 32, 32], strides = [1, 1, 1]} : vector<4x32x32xf32> to vector<1x32x32xf32>
    %172 = vector.shape_cast %171 : vector<1x32x32xf32> to vector<32x32xf32>
    %173 = vector.extract_strided_slice %168 {offsets = [2, 0, 0], sizes = [1, 32, 32], strides = [1, 1, 1]} : vector<4x32x32xf32> to vector<1x32x32xf32>
    %174 = vector.shape_cast %173 : vector<1x32x32xf32> to vector<32x32xf32>
    %175 = vector.extract_strided_slice %168 {offsets = [3, 0, 0], sizes = [1, 32, 32], strides = [1, 1, 1]} : vector<4x32x32xf32> to vector<1x32x32xf32>
    %176 = vector.shape_cast %175 : vector<1x32x32xf32> to vector<32x32xf32>
    %177 = tpu.concatenate %170, %172, %174, %176 in 1 : vector<32x32xf32>, vector<32x32xf32>, vector<32x32xf32>, vector<32x32xf32> -> vector<32x128xf32>
    %178 = arith.truncf %177 : vector<32x128xf32> to vector<32x128xbf16>
    %c0_43 = arith.constant 0 : index
    %c0_44 = arith.constant 0 : index
    %179 = vector.load %arg11[%c0_43, %c0_44] : memref<128x128xbf16, #tpu.memory_space<vmem>>, vector<128x128xbf16>
    %cst_45 = arith.constant dense<0.000000e+00> : vector<32x128xf32>
    %180 = tpu.matmul %178, %179, %cst_45 {dimension_numbers = #tpu.dot_dimension_numbers<[1], [0], [0], [1], [0, 0, 1, 1], [], []>} : vector<32x128xbf16>, vector<128x128xbf16>, vector<32x128xf32> -> vector<32x128xf32>
    %c0_46 = arith.constant 0 : index
    %c0_47 = arith.constant 0 : index
    %181 = vector.load %arg12[%c0_46, %c0_47] : memref<1x128xf32, #tpu.memory_space<vmem>>, vector<1x128xf32>
    %182 = vector.broadcast %181 : vector<1x128xf32> to vector<32x128xf32>
    %183 = arith.addf %180, %182 : vector<32x128xf32>
    %184 = arith.addf %107, %183 : vector<32x128xf32>
    %cst_48 = arith.constant dense<0.000000e+00> : vector<32xf32>
    %185 = vector.multi_reduction <add>, %184, %cst_48 [1] : vector<32x128xf32> to vector<32xf32>
    %186 = vector.shape_cast %185 : vector<32xf32> to vector<32x1xf32>
    %cst_49 = arith.constant 1.280000e+02 : f32
    %187 = vector.broadcast %cst_49 : f32 to vector<32x1xf32>
    %188 = arith.divf %186, %187 : vector<32x1xf32>
    %189 = vector.broadcast %188 : vector<32x1xf32> to vector<32x128xf32>
    %190 = arith.subf %184, %189 : vector<32x128xf32>
    %191 = arith.mulf %190, %190 : vector<32x128xf32>
    %cst_50 = arith.constant dense<0.000000e+00> : vector<32xf32>
    %192 = vector.multi_reduction <add>, %191, %cst_50 [1] : vector<32x128xf32> to vector<32xf32>
    %193 = vector.shape_cast %192 : vector<32xf32> to vector<32x1xf32>
    %cst_51 = arith.constant 1.280000e+02 : f32
    %194 = vector.broadcast %cst_51 : f32 to vector<32x1xf32>
    %195 = arith.divf %193, %194 : vector<32x1xf32>
    %196 = vector.broadcast %188 : vector<32x1xf32> to vector<32x128xf32>
    %197 = arith.subf %184, %196 : vector<32x128xf32>
    %cst_52 = arith.constant 9.99999974E-6 : f32
    %198 = vector.broadcast %cst_52 : f32 to vector<32x1xf32>
    %199 = arith.addf %195, %198 : vector<32x1xf32>
    %200 = math.rsqrt %199 : vector<32x1xf32>
    %201 = vector.broadcast %200 : vector<32x1xf32> to vector<32x128xf32>
    %202 = arith.mulf %197, %201 : vector<32x128xf32>
    %c1 = arith.constant 1 : index
    %c0_53 = arith.constant 0 : index
    %203 = vector.load %arg17[%c1, %c0_53] : memref<3x128xf32, #tpu.memory_space<vmem>>, vector<1x128xf32>
    %204 = vector.broadcast %203 : vector<1x128xf32> to vector<32x128xf32>
    %205 = arith.mulf %202, %204 : vector<32x128xf32>
    %c1_54 = arith.constant 1 : index
    %c0_55 = arith.constant 0 : index
    %206 = vector.load %arg18[%c1_54, %c0_55] : memref<3x128xf32, #tpu.memory_space<vmem>>, vector<1x128xf32>
    %207 = vector.broadcast %206 : vector<1x128xf32> to vector<32x128xf32>
    %208 = arith.addf %205, %207 : vector<32x128xf32>
    %209 = arith.truncf %208 : vector<32x128xf32> to vector<32x128xbf16>
    %c0_56 = arith.constant 0 : index
    %c0_57 = arith.constant 0 : index
    %210 = vector.load %arg13[%c0_56, %c0_57] : memref<128x512xbf16, #tpu.memory_space<vmem>>, vector<128x512xbf16>
    %cst_58 = arith.constant dense<0.000000e+00> : vector<32x512xf32>
    %211 = tpu.matmul %209, %210, %cst_58 {dimension_numbers = #tpu.dot_dimension_numbers<[1], [0], [0], [1], [0, 0, 1, 1], [], []>} : vector<32x128xbf16>, vector<128x512xbf16>, vector<32x512xf32> -> vector<32x512xf32>
    %c0_59 = arith.constant 0 : index
    %c0_60 = arith.constant 0 : index
    %212 = vector.load %arg14[%c0_59, %c0_60] : memref<1x512xf32, #tpu.memory_space<vmem>>, vector<1x512xf32>
    %213 = vector.broadcast %212 : vector<1x512xf32> to vector<32x512xf32>
    %214 = arith.addf %211, %213 : vector<32x512xf32>
    %cst_61 = arith.constant 5.000000e-01 : f32
    %215 = vector.broadcast %cst_61 : f32 to vector<32x512xf32>
    %216 = arith.mulf %215, %214 : vector<32x512xf32>
    %cst_62 = arith.constant 0.707106769 : f32
    %217 = vector.broadcast %cst_62 : f32 to vector<32x512xf32>
    %218 = arith.mulf %214, %217 : vector<32x512xf32>
    %219 = math.erf %218 : vector<32x512xf32>
    %cst_63 = arith.constant 1.000000e+00 : f32
    %220 = vector.broadcast %cst_63 : f32 to vector<32x512xf32>
    %221 = arith.addf %220, %219 : vector<32x512xf32>
    %222 = arith.mulf %216, %221 : vector<32x512xf32>
    %223 = arith.truncf %222 : vector<32x512xf32> to vector<32x512xbf16>
    %c0_64 = arith.constant 0 : index
    %c0_65 = arith.constant 0 : index
    %224 = vector.load %arg15[%c0_64, %c0_65] : memref<512x128xbf16, #tpu.memory_space<vmem>>, vector<512x128xbf16>
    %cst_66 = arith.constant dense<0.000000e+00> : vector<32x128xf32>
    %225 = tpu.matmul %223, %224, %cst_66 {dimension_numbers = #tpu.dot_dimension_numbers<[1], [0], [0], [1], [0, 0, 1, 1], [], []>} : vector<32x512xbf16>, vector<512x128xbf16>, vector<32x128xf32> -> vector<32x128xf32>
    %c0_67 = arith.constant 0 : index
    %c0_68 = arith.constant 0 : index
    %226 = vector.load %arg16[%c0_67, %c0_68] : memref<1x128xf32, #tpu.memory_space<vmem>>, vector<1x128xf32>
    %227 = vector.broadcast %226 : vector<1x128xf32> to vector<32x128xf32>
    %228 = arith.addf %225, %227 : vector<32x128xf32>
    %229 = arith.addf %208, %228 : vector<32x128xf32>
    %cst_69 = arith.constant dense<0.000000e+00> : vector<32xf32>
    %230 = vector.multi_reduction <add>, %229, %cst_69 [1] : vector<32x128xf32> to vector<32xf32>
    %231 = vector.shape_cast %230 : vector<32xf32> to vector<32x1xf32>
    %cst_70 = arith.constant 1.280000e+02 : f32
    %232 = vector.broadcast %cst_70 : f32 to vector<32x1xf32>
    %233 = arith.divf %231, %232 : vector<32x1xf32>
    %234 = vector.broadcast %233 : vector<32x1xf32> to vector<32x128xf32>
    %235 = arith.subf %229, %234 : vector<32x128xf32>
    %236 = arith.mulf %235, %235 : vector<32x128xf32>
    %cst_71 = arith.constant dense<0.000000e+00> : vector<32xf32>
    %237 = vector.multi_reduction <add>, %236, %cst_71 [1] : vector<32x128xf32> to vector<32xf32>
    %238 = vector.shape_cast %237 : vector<32xf32> to vector<32x1xf32>
    %cst_72 = arith.constant 1.280000e+02 : f32
    %239 = vector.broadcast %cst_72 : f32 to vector<32x1xf32>
    %240 = arith.divf %238, %239 : vector<32x1xf32>
    %241 = vector.broadcast %233 : vector<32x1xf32> to vector<32x128xf32>
    %242 = arith.subf %229, %241 : vector<32x128xf32>
    %cst_73 = arith.constant 9.99999974E-6 : f32
    %243 = vector.broadcast %cst_73 : f32 to vector<32x1xf32>
    %244 = arith.addf %240, %243 : vector<32x1xf32>
    %245 = math.rsqrt %244 : vector<32x1xf32>
    %246 = vector.broadcast %245 : vector<32x1xf32> to vector<32x128xf32>
    %247 = arith.mulf %242, %246 : vector<32x128xf32>
    %c2 = arith.constant 2 : index
    %c0_74 = arith.constant 0 : index
    %248 = vector.load %arg17[%c2, %c0_74] : memref<3x128xf32, #tpu.memory_space<vmem>>, vector<1x128xf32>
    %249 = vector.broadcast %248 : vector<1x128xf32> to vector<32x128xf32>
    %250 = arith.mulf %247, %249 : vector<32x128xf32>
    %c2_75 = arith.constant 2 : index
    %c0_76 = arith.constant 0 : index
    %251 = vector.load %arg18[%c2_75, %c0_76] : memref<3x128xf32, #tpu.memory_space<vmem>>, vector<1x128xf32>
    %252 = vector.broadcast %251 : vector<1x128xf32> to vector<32x128xf32>
    %253 = arith.addf %250, %252 : vector<32x128xf32>
    %254 = arith.truncf %253 : vector<32x128xf32> to vector<32x128xbf16>
    %c0_77 = arith.constant 0 : index
    %c0_78 = arith.constant 0 : index
    %255 = vector.load %arg19[%c0_77, %c0_78] : memref<32x128xbf16, #tpu.memory_space<vmem>>, vector<32x128xbf16>
    tpu.vector_store %arg19[%c0_77, %c0_78], %254 {strides = array<i32>} : memref<32x128xbf16, #tpu.memory_space<vmem>>, vector<32x128xbf16>,
    return
  }
  func.func @transform_0(%arg0: i32) -> (i32, i32) {
    %c0_i32 = arith.constant 0 : i32
    %c0_i32_0 = arith.constant 0 : i32
    return %arg0, %c0_i32 : i32, i32
  }
  func.func @transform_1(%arg0: i32) -> (i32, i32) {
    %c0_i32 = arith.constant 0 : i32
    %c0_i32_0 = arith.constant 0 : i32
    return %arg0, %c0_i32 : i32, i32
  }
  func.func @transform_2(%arg0: i32) -> (i32, i32) {
    %c0_i32 = arith.constant 0 : i32
    %c0_i32_0 = arith.constant 0 : i32
    %c0_i32_1 = arith.constant 0 : i32
    return %c0_i32, %c0_i32_0 : i32, i32
  }
  func.func @transform_3(%arg0: i32) -> (i32, i32) {
    %c0_i32 = arith.constant 0 : i32
    %c0_i32_0 = arith.constant 0 : i32
    %c0_i32_1 = arith.constant 0 : i32
    return %c0_i32, %c0_i32_0 : i32, i32
  }
  func.func @transform_4(%arg0: i32) -> (i32, i32) {
    %c0_i32 = arith.constant 0 : i32
    %c0_i32_0 = arith.constant 0 : i32
    %c0_i32_1 = arith.constant 0 : i32
    return %c0_i32, %c0_i32_0 : i32, i32
  }
  func.func @transform_5(%arg0: i32) -> (i32, i32) {
    %c0_i32 = arith.constant 0 : i32
    %c0_i32_0 = arith.constant 0 : i32
    %c0_i32_1 = arith.constant 0 : i32
    return %c0_i32, %c0_i32_0 : i32, i32
  }
  func.func @transform_6(%arg0: i32) -> (i32, i32) {
    %c0_i32 = arith.constant 0 : i32
    %c0_i32_0 = arith.constant 0 : i32
    %c0_i32_1 = arith.constant 0 : i32
    return %c0_i32, %c0_i32_0 : i32, i32
  }
  func.func @transform_7(%arg0: i32) -> (i32, i32) {
    %c0_i32 = arith.constant 0 : i32
    %c0_i32_0 = arith.constant 0 : i32
    %c0_i32_1 = arith.constant 0 : i32
    return %c0_i32, %c0_i32_0 : i32, i32
  }
  func.func @transform_8(%arg0: i32) -> (i32, i32) {
    %c0_i32 = arith.constant 0 : i32
    %c0_i32_0 = arith.constant 0 : i32
    %c0_i32_1 = arith.constant 0 : i32
    return %c0_i32, %c0_i32_0 : i32, i32
  }
  func.func @transform_9(%arg0: i32) -> (i32, i32) {
    %c0_i32 = arith.constant 0 : i32
    %c0_i32_0 = arith.constant 0 : i32
    %c0_i32_1 = arith.constant 0 : i32
    return %c0_i32, %c0_i32_0 : i32, i32
  }
  func.func @transform_10(%arg0: i32) -> (i32, i32) {
    %c0_i32 = arith.constant 0 : i32
    %c0_i32_0 = arith.constant 0 : i32
    %c0_i32_1 = arith.constant 0 : i32
    return %c0_i32, %c0_i32_0 : i32, i32
  }
  func.func @transform_11(%arg0: i32) -> (i32, i32) {
    %c0_i32 = arith.constant 0 : i32
    %c0_i32_0 = arith.constant 0 : i32
    %c0_i32_1 = arith.constant 0 : i32
    return %c0_i32, %c0_i32_0 : i32, i32
  }
  func.func @transform_12(%arg0: i32) -> (i32, i32) {
    %c0_i32 = arith.constant 0 : i32
    %c0_i32_0 = arith.constant 0 : i32
    %c0_i32_1 = arith.constant 0 : i32
    return %c0_i32, %c0_i32_0 : i32, i32
  }
  func.func @transform_13(%arg0: i32) -> (i32, i32) {
    %c0_i32 = arith.constant 0 : i32
    %c0_i32_0 = arith.constant 0 : i32
    %c0_i32_1 = arith.constant 0 : i32
    return %c0_i32, %c0_i32_0 : i32, i32
  }
  func.func @transform_14(%arg0: i32) -> (i32, i32) {
    %c0_i32 = arith.constant 0 : i32
    %c0_i32_0 = arith.constant 0 : i32
    %c0_i32_1 = arith.constant 0 : i32
    return %c0_i32, %c0_i32_0 : i32, i32
  }
  func.func @transform_15(%arg0: i32) -> (i32, i32) {
    %c0_i32 = arith.constant 0 : i32
    %c0_i32_0 = arith.constant 0 : i32
    %c0_i32_1 = arith.constant 0 : i32
    return %c0_i32, %c0_i32_0 : i32, i32
  }
  func.func @transform_16(%arg0: i32) -> (i32, i32) {
    %c0_i32 = arith.constant 0 : i32
    %c0_i32_0 = arith.constant 0 : i32
    %c0_i32_1 = arith.constant 0 : i32
    return %c0_i32, %c0_i32_0 : i32, i32
  }
  func.func @transform_17(%arg0: i32) -> (i32, i32) {
    %c0_i32 = arith.constant 0 : i32
    %c0_i32_0 = arith.constant 0 : i32
    %c0_i32_1 = arith.constant 0 : i32
    return %c0_i32, %c0_i32_0 : i32, i32
  }
  func.func @transform_18(%arg0: i32) -> (i32, i32) {
    %c0_i32 = arith.constant 0 : i32
    %c0_i32_0 = arith.constant 0 : i32
    return %arg0, %c0_i32 : i32, i32
  }
}

</mosaic_0001>

<llo_original>
// kernel: tpu_custom_call.1
$region0: #{tpu_custom_call.1}
  #allocation0 [shape = 'u32[]', space=smem, size = 0x4, offset = 0x4, fixed_abs, tag = 'smem constant byte address 0x4 - core index']
  #allocation1 [shape = 'u32[144,128]{1,0:T(1,128)}', space=vmem, size = 0x12000, scoped, tag = 'internal scratch']
  %s0 = inlined_call_operand.hbm [shape: bf16[32,128], index: 0, kind: input, shape index: {}]
  %s1 = inlined_call_operand.hbm [shape: bf16[32,128], index: 1, kind: input, shape index: {}]
  %s2 = inlined_call_operand.hbm [shape: bf16[128,384], index: 2, kind: input, shape index: {}]
  %s3 = inlined_call_operand.vmem [shape: f32[1,384], index: 3, kind: input, shape index: {}]
  %s4 = inlined_call_operand.hbm [shape: bf16[128,128], index: 4, kind: input, shape index: {}]
  %s5 = inlined_call_operand.vmem [shape: f32[1,128], index: 5, kind: input, shape index: {}]
  %s6 = inlined_call_operand.hbm [shape: bf16[128,128], index: 6, kind: input, shape index: {}]
  %s7 = inlined_call_operand.vmem [shape: f32[1,128], index: 7, kind: input, shape index: {}]
  %s8 = inlined_call_operand.hbm [shape: bf16[128,256], index: 8, kind: input, shape index: {}]
  %s9 = inlined_call_operand.vmem [shape: f32[1,256], index: 9, kind: input, shape index: {}]
  %s10 = inlined_call_operand.hbm [shape: bf16[128,128], index: 10, kind: input, shape index: {}]
  %s11 = inlined_call_operand.vmem [shape: f32[1,128], index: 11, kind: input, shape index: {}]
  %s12 = inlined_call_operand.hbm [shape: bf16[128,512], index: 12, kind: input, shape index: {}]
  %s13 = inlined_call_operand.vmem [shape: f32[1,512], index: 13, kind: input, shape index: {}]
  %s14 = inlined_call_operand.hbm [shape: bf16[512,128], index: 14, kind: input, shape index: {}]
  %s15 = inlined_call_operand.vmem [shape: f32[1,128], index: 15, kind: input, shape index: {}]
  %s16 = inlined_call_operand.vmem [shape: f32[3,128], index: 16, kind: input, shape index: {}]
  %s17 = inlined_call_operand.vmem [shape: f32[3,128], index: 17, kind: input, shape index: {}]
  %s18 = inlined_call_operand.hbm [shape: bf16[32,128], index: 18, kind: output, shape index: {}]
  %s19 = sld [smem:[#allocation0]]
  $region118: #{tpu_custom_call.1} parent=0
    _
  %s21 = ssub.s32 1, %s19
  %s22 = scalar_select 0, %s21, %s19
  $region1: #{tpu_custom_call.1} parent=0
    #allocation2 [shape = 'u8[8192]{0}', space=vmem, size = 0x2000, scoped, tag = 'input window, operand 0, single buffered']
    #allocation3 [shape = 's32[1]{0}', space=sflag, size = 0x4, scoped, tag = 'scoped memory for tpu_custom_call.1']
    #allocation4 [shape = 's32[1]{0}', space=sflag, size = 0x4, scoped, tag = 'scoped memory for tpu_custom_call.1']
    #allocation5 [shape = 'u8[8192]{0}', space=vmem, size = 0x2000, scoped, tag = 'input window, operand 1, single buffered']
    #allocation6 [shape = 's32[1]{0}', space=sflag, size = 0x4, scoped, tag = 'scoped memory for tpu_custom_call.1']
    #allocation7 [shape = 'u8[98304]{0}', space=vmem, size = 0x18000, scoped, tag = 'input window, operand 2, single buffered']
    #allocation8 [shape = 'u8[32768]{0}', space=vmem, size = 0x8000, scoped, tag = 'input window, operand 4, single buffered']
    #allocation9 [shape = 's32[1]{0}', space=sflag, size = 0x4, scoped, tag = 'scoped memory for tpu_custom_call.1']
    #allocation10 [shape = 'u8[32768]{0}', space=vmem, size = 0x8000, scoped, tag = 'input window, operand 6, single buffered']
    #allocation11 [shape = 'u8[65536]{0}', space=vmem, size = 0x10000, scoped, tag = 'input window, operand 8, single buffered']
    #allocation12 [shape = 's32[1]{0}', space=sflag, size = 0x4, scoped, tag = 'scoped memory for tpu_custom_call.1']
    #allocation13 [shape = 'u8[32768]{0}', space=vmem, size = 0x8000, scoped, tag = 'input window, operand 10, single buffered']
    #allocation14 [shape = 'u8[131072]{0}', space=vmem, size = 0x20000, scoped, tag = 'input window, operand 12, single buffered']
    #allocation15 [shape = 's32[1]{0}', space=sflag, size = 0x4, scoped, tag = 'scoped memory for tpu_custom_call.1']
    #allocation16 [shape = 'u8[131072]{0}', space=vmem, size = 0x20000, scoped, tag = 'input window, operand 14, single buffered']
    #allocation17 [shape = 'u8[8192]{0}', space=vmem, size = 0x2000, scoped, tag = 'output window, operand 0, single buffered']
    %23 = vsyncpa [#allocation3], 0
    %24 = vsyncpa [#allocation6], 0
    %25 = vsyncpa [#allocation9], 0
    %26 = vsyncpa [#allocation12], 0
    %27 = vsyncpa [#allocation15], 0
    %28 = vsyncpa [#allocation4], 0
    // Predicated region
    $region2: #{tpu_custom_call.1} parent=1 // pred_check
      _
    $region3: #{tpu_custom_call.1} parent=1 // pred_check_branch
      %30 = sbr.rel (0) target = $region5
    $region4: #{tpu_custom_call.1} parent=1 // pred_region
      %s32 = ssub.s32 256, 256
      %33 = vsyncadd [#allocation3], %s32
      %s34 = sshll.u32 [#allocation2], 4
      %s35 = int_to_ptr.vmem [resolvable:$true] %s34
      %40 = dma.hbm_to_vmem [thread:$0]  %s0, 256, %s35, [#allocation3], 64, 64, 4
    $region5: #{tpu_custom_call.1} parent=1 // pred_fallthru
      _
    // Predicated region
    $region6: #{tpu_custom_call.1} parent=1 // pred_check
      _
    $region7: #{tpu_custom_call.1} parent=1 // pred_check_branch
      %42 = sbr.rel (0) target = $region9
    $region8: #{tpu_custom_call.1} parent=1 // pred_region
      %s44 = ssub.s32 256, 256
      %45 = vsyncadd [#allocation6], %s44
      %s46 = sshll.u32 [#allocation5], 4
      %s47 = int_to_ptr.vmem [resolvable:$true] %s46
      %52 = dma.hbm_to_vmem [thread:$0]  %s1, 256, %s47, [#allocation6], 64, 64, 4
    $region9: #{tpu_custom_call.1} parent=1 // pred_fallthru
      _
    // Predicated region
    $region10: #{tpu_custom_call.1} parent=1 // pred_check
      _
    $region11: #{tpu_custom_call.1} parent=1 // pred_check_branch
      %54 = sbr.rel (0) target = $region13
    $region12: #{tpu_custom_call.1} parent=1 // pred_region
      %s56 = ssub.s32 3072, 3072
      %57 = vsyncadd [#allocation6], %s56
      %s58 = sshll.u32 [#allocation7], 4
      %s59 = int_to_ptr.vmem [resolvable:$true] %s58
      %64 = dma.hbm_to_vmem [thread:$0]  %s2, 3072, %s59, [#allocation6], 192, 192, 12
    $region13: #{tpu_custom_call.1} parent=1 // pred_fallthru
      _
    // Predicated region
    $region14: #{tpu_custom_call.1} parent=1 // pred_check
      _
    $region15: #{tpu_custom_call.1} parent=1 // pred_check_branch
      %66 = sbr.rel (0) target = $region17
    $region16: #{tpu_custom_call.1} parent=1 // pred_region
      _
    $region17: #{tpu_custom_call.1} parent=1 // pred_fallthru
      _
    // Predicated region
    $region18: #{tpu_custom_call.1} parent=1 // pred_check
      _
    $region19: #{tpu_custom_call.1} parent=1 // pred_check_branch
      %68 = sbr.rel (0) target = $region21
    $region20: #{tpu_custom_call.1} parent=1 // pred_region
      %s70 = ssub.s32 1024, 1024
      %71 = vsyncadd [#allocation9], %s70
      %s72 = sshll.u32 [#allocation8], 4
      %s73 = int_to_ptr.vmem [resolvable:$true] %s72
      %78 = dma.hbm_to_vmem [thread:$0]  %s4, 1024, %s73, [#allocation9], 64, 64, 4
    $region21: #{tpu_custom_call.1} parent=1 // pred_fallthru
      _
    // Predicated region
    $region22: #{tpu_custom_call.1} parent=1 // pred_check
      _
    $region23: #{tpu_custom_call.1} parent=1 // pred_check_branch
      %80 = sbr.rel (0) target = $region25
    $region24: #{tpu_custom_call.1} parent=1 // pred_region
      _
    $region25: #{tpu_custom_call.1} parent=1 // pred_fallthru
      _
    // Predicated region
    $region26: #{tpu_custom_call.1} parent=1 // pred_check
      _
    $region27: #{tpu_custom_call.1} parent=1 // pred_check_branch
      %82 = sbr.rel (0) target = $region29
    $region28: #{tpu_custom_call.1} parent=1 // pred_region
      %s84 = ssub.s32 1024, 1024
      %85 = vsyncadd [#allocation9], %s84
      %s86 = sshll.u32 [#allocation10], 4
      %s87 = int_to_ptr.vmem [resolvable:$true] %s86
      %92 = dma.hbm_to_vmem [thread:$0]  %s6, 1024, %s87, [#allocation9], 64, 64, 4
    $region29: #{tpu_custom_call.1} parent=1 // pred_fallthru
      _
    // Predicated region
    $region30: #{tpu_custom_call.1} parent=1 // pred_check
      _
    $region31: #{tpu_custom_call.1} parent=1 // pred_check_branch
      %94 = sbr.rel (0) target = $region33
    $region32: #{tpu_custom_call.1} parent=1 // pred_region
      _
    $region33: #{tpu_custom_call.1} parent=1 // pred_fallthru
      _
    // Predicated region
    $region34: #{tpu_custom_call.1} parent=1 // pred_check
      _
    $region35: #{tpu_custom_call.1} parent=1 // pred_check_branch
      %96 = sbr.rel (0) target = $region37
    $region36: #{tpu_custom_call.1} parent=1 // pred_region
      %s98 = ssub.s32 2048, 2048
      %99 = vsyncadd [#allocation12], %s98
      %s100 = sshll.u32 [#allocation11], 4
      %s101 = int_to_ptr.vmem [resolvable:$true] %s100
      %106 = dma.hbm_to_vmem [thread:$0]  %s8, 2048, %s101, [#allocation12], 128, 128, 8
    $region37: #{tpu_custom_call.1} parent=1 // pred_fallthru
      _
    // Predicated region
    $region38: #{tpu_custom_call.1} parent=1 // pred_check
      _
    $region39: #{tpu_custom_call.1} parent=1 // pred_check_branch
      %108 = sbr.rel (0) target = $region41
    $region40: #{tpu_custom_call.1} parent=1 // pred_region
      _
    $region41: #{tpu_custom_call.1} parent=1 // pred_fallthru
      _
    // Predicated region
    $region42: #{tpu_custom_call.1} parent=1 // pred_check
      _
    $region43: #{tpu_custom_call.1} parent=1 // pred_check_branch
      %110 = sbr.rel (0) target = $region45
    $region44: #{tpu_custom_call.1} parent=1 // pred_region
      %s112 = ssub.s32 1024, 1024
      %113 = vsyncadd [#allocation12], %s112
      %s114 = sshll.u32 [#allocation13], 4
      %s115 = int_to_ptr.vmem [resolvable:$true] %s114
      %120 = dma.hbm_to_vmem [thread:$0]  %s10, 1024, %s115, [#allocation12], 64, 64, 4
    $region45: #{tpu_custom_call.1} parent=1 // pred_fallthru
      _
    // Predicated region
    $region46: #{tpu_custom_call.1} parent=1 // pred_check
      _
    $region47: #{tpu_custom_call.1} parent=1 // pred_check_branch
      %122 = sbr.rel (0) target = $region49
    $region48: #{tpu_custom_call.1} parent=1 // pred_region
      _
    $region49: #{tpu_custom_call.1} parent=1 // pred_fallthru
      _
    // Predicated region
    $region50: #{tpu_custom_call.1} parent=1 // pred_check
      _
    $region51: #{tpu_custom_call.1} parent=1 // pred_check_branch
      %124 = sbr.rel (0) target = $region53
    $region52: #{tpu_custom_call.1} parent=1 // pred_region
      %s126 = ssub.s32 4096, 4096
      %127 = vsyncadd [#allocation15], %s126
      %s128 = sshll.u32 [#allocation14], 4
      %s129 = int_to_ptr.vmem [resolvable:$true] %s128
      %134 = dma.hbm_to_vmem [thread:$0]  %s12, 4096, %s129, [#allocation15], 256, 256, 16
    $region53: #{tpu_custom_call.1} parent=1 // pred_fallthru
      _
    // Predicated region
    $region54: #{tpu_custom_call.1} parent=1 // pred_check
      _
    $region55: #{tpu_custom_call.1} parent=1 // pred_check_branch
      %136 = sbr.rel (0) target = $region57
    $region56: #{tpu_custom_call.1} parent=1 // pred_region
      _
    $region57: #{tpu_custom_call.1} parent=1 // pred_fallthru
      _
    // Predicated region
    $region58: #{tpu_custom_call.1} parent=1 // pred_check
      _
    $region59: #{tpu_custom_call.1} parent=1 // pred_check_branch
      %138 = sbr.rel (0) target = $region61
    $region60: #{tpu_custom_call.1} parent=1 // pred_region
      %s140 = ssub.s32 4096, 4096
      %141 = vsyncadd [#allocation15], %s140
      %s142 = sshll.u32 [#allocation16], 4
      %s143 = int_to_ptr.vmem [resolvable:$true] %s142
      %148 = dma.hbm_to_vmem [thread:$0]  %s14, 4096, %s143, [#allocation15], 64, 64, 4
    $region61: #{tpu_custom_call.1} parent=1 // pred_fallthru
      _
    // Predicated region
    $region62: #{tpu_custom_call.1} parent=1 // pred_check
      _
    $region63: #{tpu_custom_call.1} parent=1 // pred_check_branch
      %150 = sbr.rel (0) target = $region65
    $region64: #{tpu_custom_call.1} parent=1 // pred_region
      _
    $region65: #{tpu_custom_call.1} parent=1 // pred_fallthru
      _
    // Predicated region
    $region66: #{tpu_custom_call.1} parent=1 // pred_check
      _
    $region67: #{tpu_custom_call.1} parent=1 // pred_check_branch
      %152 = sbr.rel (0) target = $region69
    $region68: #{tpu_custom_call.1} parent=1 // pred_region
      _
    $region69: #{tpu_custom_call.1} parent=1 // pred_fallthru
      _
    // Predicated region
    $region70: #{tpu_custom_call.1} parent=1 // pred_check
      _
    $region71: #{tpu_custom_call.1} parent=1 // pred_check_branch
      %154 = sbr.rel (0) target = $region73
    $region72: #{tpu_custom_call.1} parent=1 // pred_region
      _
    $region73: #{tpu_custom_call.1} parent=1 // pred_fallthru
      _
    // Predicated region
    $region74: #{tpu_custom_call.1} parent=1 // pred_check
      _
    $region75: #{tpu_custom_call.1} parent=1 // pred_check_branch
      %156 = sbr.rel (0) target = $region77
    $region76: #{tpu_custom_call.1} parent=1 // pred_region
      %157 = dma.done [#allocation3], 256
    $region77: #{tpu_custom_call.1} parent=1 // pred_fallthru
      _
    // Predicated region
    $region78: #{tpu_custom_call.1} parent=1 // pred_check
      _
    $region79: #{tpu_custom_call.1} parent=1 // pred_check_branch
      %159 = sbr.rel (0) target = $region81
    $region80: #{tpu_custom_call.1} parent=1 // pred_region
      %160 = dma.done [#allocation6], 256
    $region81: #{tpu_custom_call.1} parent=1 // pred_fallthru
      _
    // Predicated region
    $region82: #{tpu_custom_call.1} parent=1 // pred_check
      _
    $region83: #{tpu_custom_call.1} parent=1 // pred_check_branch
      %162 = sbr.rel (0) target = $region85
    $region84: #{tpu_custom_call.1} parent=1 // pred_region
      %163 = dma.done [#allocation6], 3072
    $region85: #{tpu_custom_call.1} parent=1 // pred_fallthru
      _
    // Predicated region
    $region86: #{tpu_custom_call.1} parent=1 // pred_check
      _
    $region87: #{tpu_custom_call.1} parent=1 // pred_check_branch
      %165 = sbr.rel (0) target = $region89
    $region88: #{tpu_custom_call.1} parent=1 // pred_region
      %166 = dma.done [#allocation9], 1024
    $region89: #{tpu_custom_call.1} parent=1 // pred_fallthru
      _
    // Predicated region
    $region90: #{tpu_custom_call.1} parent=1 // pred_check
      _
    $region91: #{tpu_custom_call.1} parent=1 // pred_check_branch
      %168 = sbr.rel (0) target = $region93
    $region92: #{tpu_custom_call.1} parent=1 // pred_region
      %169 = dma.done [#allocation9], 1024
    $region93: #{tpu_custom_call.1} parent=1 // pred_fallthru
      _
    // Predicated region
    $region94: #{tpu_custom_call.1} parent=1 // pred_check
      _
    $region95: #{tpu_custom_call.1} parent=1 // pred_check_branch
      %171 = sbr.rel (0) target = $region97
    $region96: #{tpu_custom_call.1} parent=1 // pred_region
      %172 = dma.done [#allocation12], 2048
    $region97: #{tpu_custom_call.1} parent=1 // pred_fallthru
      _
    // Predicated region
    $region98: #{tpu_custom_call.1} parent=1 // pred_check
      _
    $region99: #{tpu_custom_call.1} parent=1 // pred_check_branch
      %174 = sbr.rel (0) target = $region101
    $region100: #{tpu_custom_call.1} parent=1 // pred_region
      %175 = dma.done [#allocation12], 1024
    $region101: #{tpu_custom_call.1} parent=1 // pred_fallthru
      _
    // Predicated region
    $region102: #{tpu_custom_call.1} parent=1 // pred_check
      _
    $region103: #{tpu_custom_call.1} parent=1 // pred_check_branch
      %177 = sbr.rel (0) target = $region105
    $region104: #{tpu_custom_call.1} parent=1 // pred_region
      %178 = dma.done [#allocation15], 4096
    $region105: #{tpu_custom_call.1} parent=1 // pred_fallthru
      _
    // Predicated region
    $region106: #{tpu_custom_call.1} parent=1 // pred_check
      _
    $region107: #{tpu_custom_call.1} parent=1 // pred_check_branch
      %180 = sbr.rel (0) target = $region109
    $region108: #{tpu_custom_call.1} parent=1 // pred_region
      %181 = dma.done [#allocation15], 4096
    $region109: #{tpu_custom_call.1} parent=1 // pred_fallthru
      _
    %v183 = vld [vmem:[#allocation2] sm:$0xf]
    %v184 = vld [vmem:[#allocation2 + $0x4] sm:$0xf]
    %v185 = vld [vmem:[#allocation2 + $0x8] sm:$0xf]
    %v186 = vld [vmem:[#allocation2 + $0xc] sm:$0xf]
    %v187 = vunpack.c.l.bf16 %v183
    %v188 = vunpack.c.l.bf16 %v184
    %v189 = vunpack.c.l.bf16 %v185
    %v190 = vunpack.c.l.bf16 %v186
    %v191 = vld [vmem:[#allocation5] sm:$0xf]
    %v192 = vld [vmem:[#allocation5 + $0x4] sm:$0xf]
    %v193 = vld [vmem:[#allocation5 + $0x8] sm:$0xf]
    %v194 = vld [vmem:[#allocation5 + $0xc] sm:$0xf]
    %v195 = vlaneseq
    %v196 = vshrl.u32 %v195, 7
    %v197 = vadd.s32 %v196, 8
    %v198 = vlaneseq
    %v199 = vand.u32 %v198, 127
    %vm200 = vcmp.le.s32.totalorder %v199, %v196
    %vm201 = vcmp.le.s32.totalorder %v199, %v197
    %v202 = vsel %vm200, 0.0, -1e+30
    %v203 = vsel %vm201, 0.0, -1e+30
    %v204 = vld [vmem:[#allocation7] sm:$0xff]
    %v205 = vld [vmem:[#allocation7 + $0x8] sm:$0xf]
    %v206 = vld [vmem:[#allocation7 + $0xc] sm:$0xff]
    %v207 = vld [vmem:[#allocation7 + $0x14] sm:$0xf]
    %v208 = vld [vmem:[#allocation7 + $0x18] sm:$0xff]
    %v209 = vld [vmem:[#allocation7 + $0x20] sm:$0xf]
    %v210 = vld [vmem:[#allocation7 + $0x24] sm:$0xff]
    %v211 = vld [vmem:[#allocation7 + $0x2c] sm:$0xf]
    %v212 = vld [vmem:[#allocation7 + $0x30] sm:$0xff]
    %v213 = vld [vmem:[#allocation7 + $0x38] sm:$0xf]
    %v214 = vld [vmem:[#allocation7 + $0x3c] sm:$0xff]
    %v215 = vld [vmem:[#allocation7 + $0x44] sm:$0xf]
    %v216 = vld [vmem:[#allocation7 + $0x48] sm:$0xff]
    %v217 = vld [vmem:[#allocation7 + $0x50] sm:$0xf]
    %v218 = vld [vmem:[#allocation7 + $0x54] sm:$0xff]
    %v219 = vld [vmem:[#allocation7 + $0x5c] sm:$0xf]
    %v220 = vld [vmem:[#allocation7 + $0x60] sm:$0xff]
    %v221 = vld [vmem:[#allocation7 + $0x68] sm:$0xf]
    %v222 = vld [vmem:[#allocation7 + $0x6c] sm:$0xff]
    %v223 = vld [vmem:[#allocation7 + $0x74] sm:$0xf]
    %v224 = vld [vmem:[#allocation7 + $0x78] sm:$0xff]
    %v225 = vld [vmem:[#allocation7 + $0x80] sm:$0xf]
    %v226 = vld [vmem:[#allocation7 + $0x84] sm:$0xff]
    %v227 = vld [vmem:[#allocation7 + $0x8c] sm:$0xf]
    %v228 = vld [vmem:[#allocation7 + $0x90] sm:$0xff]
    %v229 = vld [vmem:[#allocation7 + $0x98] sm:$0xf]
    %v230 = vld [vmem:[#allocation7 + $0x9c] sm:$0xff]
    %v231 = vld [vmem:[#allocation7 + $0xa4] sm:$0xf]
    %v232 = vld [vmem:[#allocation7 + $0xa8] sm:$0xff]
    %v233 = vld [vmem:[#allocation7 + $0xb0] sm:$0xf]
    %v234 = vld [vmem:[#allocation7 + $0xb4] sm:$0xff]
    %v235 = vld [vmem:[#allocation7 + $0xbc] sm:$0xf]
    %v236 = vld [vmem:[%s3] sm:$0x7]
    %v238 = vlaneseq
    %v239 = vshrl.u32 %v238, 7
    %v240 = vsub.s32 0, %v239
    %v241 = vrot.slane %v236, %v240
    %v242 = vlaneseq
    %v243 = vshrl.u32 %v242, 7
    %v244 = vsub.s32 1, %v243
    %v245 = vrot.slane %v236, %v244
    %v246 = vlaneseq
    %v247 = vshrl.u32 %v246, 7
    %v248 = vsub.s32 2, %v247
    %v249 = vrot.slane %v236, %v248
    %v257 = vunpack.c.l.b16 %v183
    %v258 = vunpack.c.l.b16 %v184
    %v259 = vunpack.c.l.b16 %v185
    %v260 = vunpack.c.l.b16 %v186
    %v261 = vpack.c.b16 %v258, %v257
    %v262 = vpack.c.b16 %v260, %v259
    %v297 = vunpack.c.l.b16 %v204
    %v298 = vunpack.c.h.b16 %v204
    %v299 = vunpack.c.l.b16 %v205
    %v300 = vunpack.c.l.b16 %v206
    %v301 = vunpack.c.h.b16 %v206
    %v302 = vunpack.c.l.b16 %v207
    %v303 = vunpack.c.l.b16 %v208
    %v304 = vunpack.c.h.b16 %v208
    %v305 = vunpack.c.l.b16 %v209
    %v306 = vunpack.c.l.b16 %v210
    %v307 = vunpack.c.h.b16 %v210
    %v308 = vunpack.c.l.b16 %v211
    %v309 = vunpack.c.l.b16 %v212
    %v310 = vunpack.c.h.b16 %v212
    %v311 = vunpack.c.l.b16 %v213
    %v312 = vunpack.c.l.b16 %v214
    %v313 = vunpack.c.h.b16 %v214
    %v314 = vunpack.c.l.b16 %v215
    %v315 = vunpack.c.l.b16 %v216
    %v316 = vunpack.c.h.b16 %v216
    %v317 = vunpack.c.l.b16 %v217
    %v318 = vunpack.c.l.b16 %v218
    %v319 = vunpack.c.h.b16 %v218
    %v320 = vunpack.c.l.b16 %v219
    %v321 = vunpack.c.l.b16 %v220
    %v322 = vunpack.c.h.b16 %v220
    %v323 = vunpack.c.l.b16 %v221
    %v324 = vunpack.c.l.b16 %v222
    %v325 = vunpack.c.h.b16 %v222
    %v326 = vunpack.c.l.b16 %v223
    %v327 = vunpack.c.l.b16 %v224
    %v328 = vunpack.c.h.b16 %v224
    %v329 = vunpack.c.l.b16 %v225
    %v330 = vunpack.c.l.b16 %v226
    %v331 = vunpack.c.h.b16 %v226
    %v332 = vunpack.c.l.b16 %v227
    %v333 = vunpack.c.l.b16 %v228
    %v334 = vunpack.c.h.b16 %v228
    %v335 = vunpack.c.l.b16 %v229
    %v336 = vunpack.c.l.b16 %v230
    %v337 = vunpack.c.h.b16 %v230
    %v338 = vunpack.c.l.b16 %v231
    %v339 = vunpack.c.l.b16 %v232
    %v340 = vunpack.c.h.b16 %v232
    %v341 = vunpack.c.l.b16 %v233
    %v342 = vunpack.c.l.b16 %v234
    %v343 = vunpack.c.h.b16 %v234
    %v344 = vunpack.c.l.b16 %v235
    %v345 = vpack.c.b16 %v300, %v297
    %v346 = vpack.c.b16 %v301, %v298
    %v347 = vpack.c.b16 %v302, %v299
    %v348 = vpack.c.b16 %v306, %v303
    %v349 = vpack.c.b16 %v307, %v304
    %v350 = vpack.c.b16 %v308, %v305
    %v351 = vpack.c.b16 %v312, %v309
    %v352 = vpack.c.b16 %v313, %v310
    %v353 = vpack.c.b16 %v314, %v311
    %v354 = vpack.c.b16 %v318, %v315
    %v355 = vpack.c.b16 %v319, %v316
    %v356 = vpack.c.b16 %v320, %v317
    %v357 = vpack.c.b16 %v324, %v321
    %v358 = vpack.c.b16 %v325, %v322
    %v359 = vpack.c.b16 %v326, %v323
    %v360 = vpack.c.b16 %v330, %v327
    %v361 = vpack.c.b16 %v331, %v328
    %v362 = vpack.c.b16 %v332, %v329
    %v363 = vpack.c.b16 %v336, %v333
    %v364 = vpack.c.b16 %v337, %v334
    %v365 = vpack.c.b16 %v338, %v335
    %v366 = vpack.c.b16 %v342, %v339
    %v367 = vpack.c.b16 %v343, %v340
    %v368 = vpack.c.b16 %v344, %v341
    %393 = vmatprep.subr.bf16.mxu0 %v346
    %394 = vmatpush1.bf16.msra.mxu0 %v345
    %395 = vmatprep.subr.bf16.mxu0 %v349
    %396 = vmatpush1.bf16.msra.mxu0 %v348
    %397 = vmatprep.subr.bf16.mxu0 %v352
    %398 = vmatpush1.bf16.msra.mxu0 %v351
    %399 = vmatprep.subr.bf16.mxu0 %v355
    %400 = vmatpush1.bf16.msra.mxu0 %v354
    %401 = vmatprep.subr.bf16.mxu0 %v358
    %402 = vmatpush1.bf16.msra.mxu0 %v357
    %403 = vmatprep.subr.bf16.mxu0 %v361
    %404 = vmatpush1.bf16.msra.mxu0 %v360
    %405 = vmatprep.subr.bf16.mxu0 %v364
    %406 = vmatpush1.bf16.msra.mxu0 %v363
    %407 = vmatprep.subr.bf16.mxu0 %v367
    %408 = vmatpush1.bf16.msra.mxu0 %v366
    %409 = vmatprep.subr.bf16.mxu0 0
    %410 = vmatpush1.bf16.msra.mxu0 0
    %411 = vmatprep.subr.bf16.mxu0 0
    %412 = vmatpush1.bf16.msra.mxu0 0
    %413 = vmatprep.subr.bf16.mxu0 0
    %414 = vmatpush1.bf16.msra.mxu0 0
    %415 = vmatprep.subr.bf16.mxu0 0
    %416 = vmatpush1.bf16.msra.mxu0 0
    %417 = vmatprep.subr.bf16.mxu0 0
    %418 = vmatpush1.bf16.msra.mxu0 0
    %419 = vmatprep.subr.bf16.mxu0 0
    %420 = vmatpush1.bf16.msra.mxu0 0
    %421 = vmatprep.subr.bf16.mxu0 0
    %422 = vmatpush1.bf16.msra.mxu0 0
    %423 = vmatprep.subr.bf16.mxu0 0
    %424 = vmatpush1.bf16.msra.mxu0 0
    %425 = vmatprep.mubr.bf16.mxu0 0
    %426 = vmatmul.mubr.bf16.gmra.mrb[0].mxu0 %v261
    %v427 = vpop.f32.mrb[0].mxu0
    %v428 = vadd.f32 %v241, %v427
    %v429 = vpop.f32.mrb[0].mxu0
    %v430 = vadd.f32 %v245, %v429
    %v431 = vpop.f32.mrb[0].mxu0
    %v432 = vadd.f32 %v241, %v431
    %v433 = vpop.f32.mrb[0].mxu0
    %v434 = vadd.f32 %v245, %v433
    %435 = vmatprep.mubr.bf16.mxu0 0
    %436 = vmatmul.mubr.bf16.gmra.mrb[0].mxu0 %v262
    %v437 = vpop.f32.mrb[0].mxu0
    %v438 = vadd.f32 %v241, %v437
    %v439 = vpop.f32.mrb[0].mxu0
    %v440 = vadd.f32 %v245, %v439
    %v441 = vpop.f32.mrb[0].mxu0
    %v442 = vadd.f32 %v241, %v441
    %v443 = vpop.f32.mrb[0].mxu0
    %v444 = vadd.f32 %v245, %v443
    %445 = vdwg.mxu0
    %446 = vmatprep.subr.bf16.mxu0 0
    %447 = vmatpush1.bf16.msra.mxu0 %v347
    %448 = vmatprep.subr.bf16.mxu0 0
    %449 = vmatpush1.bf16.msra.mxu0 %v350
    %450 = vmatprep.subr.bf16.mxu0 0
    %451 = vmatpush1.bf16.msra.mxu0 %v353
    %452 = vmatprep.subr.bf16.mxu0 0
    %453 = vmatpush1.bf16.msra.mxu0 %v356
    %454 = vmatprep.subr.bf16.mxu0 0
    %455 = vmatpush1.bf16.msra.mxu0 %v359
    %456 = vmatprep.subr.bf16.mxu0 0
    %457 = vmatpush1.bf16.msra.mxu0 %v362
    %458 = vmatprep.subr.bf16.mxu0 0
    %459 = vmatpush1.bf16.msra.mxu0 %v365
    %460 = vmatprep.subr.bf16.mxu0 0
    %461 = vmatpush1.bf16.msra.mxu0 %v368
    %462 = vmatprep.subr.bf16.mxu0 0
    %463 = vmatpush1.bf16.msra.mxu0 0
    %464 = vmatprep.subr.bf16.mxu0 0
    %465 = vmatpush1.bf16.msra.mxu0 0
    %466 = vmatprep.subr.bf16.mxu0 0
    %467 = vmatpush1.bf16.msra.mxu0 0
    %468 = vmatprep.subr.bf16.mxu0 0
    %469 = vmatpush1.bf16.msra.mxu0 0
    %470 = vmatprep.subr.bf16.mxu0 0
    %471 = vmatpush1.bf16.msra.mxu0 0
    %472 = vmatprep.subr.bf16.mxu0 0
    %473 = vmatpush1.bf16.msra.mxu0 0
    %474 = vmatprep.subr.bf16.mxu0 0
    %475 = vmatpush1.bf16.msra.mxu0 0
    %476 = vmatprep.subr.bf16.mxu0 0
    %477 = vmatpush1.bf16.msra.mxu0 0
    %478 = vmatprep.mubr.bf16.mxu0 0
    %479 = vmatmul.mubr.bf16.gmra.mrb[0].mxu0 %v261
    %v480 = vpop.f32.mrb[0].mxu0
    %v481 = vadd.f32 %v249, %v480
    %v482 = vpop.f32.mrb[0].mxu0
    %v483 = vpop.f32.mrb[0].mxu0
    %v484 = vadd.f32 %v249, %v483
    %v485 = vpop.f32.mrb[0].mxu0
    %486 = vmatprep.mubr.bf16.mxu0 0
    %487 = vmatmul.mubr.bf16.gmra.mrb[0].mxu0 %v262
    %v488 = vpop.f32.mrb[0].mxu0
    %v489 = vadd.f32 %v249, %v488
    %v490 = vpop.f32.mrb[0].mxu0
    %v491 = vpop.f32.mrb[0].mxu0
    %v492 = vadd.f32 %v249, %v491
    %v493 = vpop.f32.mrb[0].mxu0
    %494 = vdwg.mxu0
    %v495 = vpack.c.bf16 %v432, %v428
    %v496 = vpack.c.bf16 %v434, %v430
    %v497 = vpack.c.bf16 %v484, %v481
    %v498 = vpack.c.bf16 %v442, %v438
    %v499 = vpack.c.bf16 %v444, %v440
    %v500 = vpack.c.bf16 %v492, %v489
    %503 = vrot.lane.b32.xlu0 %v495, 96
    %v504 = vpop.permute.xlu0 %503
    %505 = vrot.lane.b32.xlu0 %v498, 96
    %v506 = vpop.permute.xlu0 %505
    %507 = vrot.lane.b32.xlu0 %v495, 64
    %v508 = vpop.permute.xlu0 %507
    %509 = vrot.lane.b32.xlu0 %v498, 64
    %v510 = vpop.permute.xlu0 %509
    %511 = vrot.lane.b32.xlu0 %v495, 32
    %v512 = vpop.permute.xlu0 %511
    %513 = vrot.lane.b32.xlu0 %v498, 32
    %v514 = vpop.permute.xlu0 %513
    %517 = vrot.lane.b32.xlu0 %v496, 96
    %v518 = vpop.permute.xlu0 %517
    %519 = vrot.lane.b32.xlu0 %v499, 96
    %v520 = vpop.permute.xlu0 %519
    %521 = vrot.lane.b32.xlu0 %v496, 64
    %v522 = vpop.permute.xlu0 %521
    %523 = vrot.lane.b32.xlu0 %v499, 64
    %v524 = vpop.permute.xlu0 %523
    %525 = vrot.lane.b32.xlu0 %v496, 32
    %v526 = vpop.permute.xlu0 %525
    %527 = vrot.lane.b32.xlu0 %v499, 32
    %v528 = vpop.permute.xlu0 %527
    %531 = vrot.lane.b32.xlu0 %v497, 96
    %v532 = vpop.permute.xlu0 %531
    %533 = vrot.lane.b32.xlu0 %v500, 96
    %v534 = vpop.permute.xlu0 %533
    %537 = vrot.lane.b32.xlu0 %v497, 64
    %v538 = vpop.permute.xlu0 %537
    %539 = vrot.lane.b32.xlu0 %v500, 64
    %v540 = vpop.permute.xlu0 %539
    %543 = vrot.lane.b32.xlu0 %v497, 32
    %v544 = vpop.permute.xlu0 %543
    %545 = vrot.lane.b32.xlu0 %v500, 32
    %v546 = vpop.permute.xlu0 %545
    %vm549 = vcmask 261120
    %v551 = vsel %vm549, %v495, 0
    %v554 = vsel %vm549, %v496, 0
    %556 = vmatprep.subr.bf16.mxu0 0
    %557 = vmatpush1.bf16.xpose.msra.mxu0 %v554
    %558 = vmatprep.subr.bf16.mxu0 0
    %559 = vmatpush1.bf16.xpose.msra.mxu0 0
    %560 = vmatprep.subr.bf16.mxu0 0
    %561 = vmatpush1.bf16.xpose.msra.mxu0 0
    %562 = vmatprep.subr.bf16.mxu0 0
    %563 = vmatpush1.bf16.xpose.msra.mxu0 0
    %564 = vmatprep.subr.bf16.mxu0 0
    %565 = vmatpush1.bf16.xpose.msra.mxu0 0
    %566 = vmatprep.subr.bf16.mxu0 0
    %567 = vmatpush1.bf16.xpose.msra.mxu0 0
    %568 = vmatprep.subr.bf16.mxu0 0
    %569 = vmatpush1.bf16.xpose.msra.mxu0 0
    %570 = vmatprep.subr.bf16.mxu0 0
    %571 = vmatpush1.bf16.xpose.msra.mxu0 0
    %572 = vmatprep.subr.bf16.mxu0 0
    %573 = vmatpush1.bf16.xpose.msra.mxu0 0
    %574 = vmatprep.subr.bf16.mxu0 0
    %575 = vmatpush1.bf16.xpose.msra.mxu0 0
    %576 = vmatprep.subr.bf16.mxu0 0
    %577 = vmatpush1.bf16.xpose.msra.mxu0 0
    %578 = vmatprep.subr.bf16.mxu0 0
    %579 = vmatpush1.bf16.xpose.msra.mxu0 0
    %580 = vmatprep.subr.bf16.mxu0 0
    %581 = vmatpush1.bf16.xpose.msra.mxu0 0
    %582 = vmatprep.subr.bf16.mxu0 0
    %583 = vmatpush1.bf16.xpose.msra.mxu0 0
    %584 = vmatprep.subr.bf16.mxu0 0
    %585 = vmatpush1.bf16.xpose.msra.mxu0 0
    %586 = vmatprep.subr.bf16.mxu0 0
    %587 = vmatpush1.bf16.xpose.msra.mxu0 0
    %588 = vmatprep.mubr.bf16.mxu0 0
    %589 = vmatmul.mubr.bf16.gmra.mrb[0].mxu0 %v551
    %v590 = vpop.f32.mrb[0].mxu0
    %v591 = vadd.f32 0.0, %v590
    %v592 = vpop.f32.mrb[0].mxu0
    %v593 = vpop.f32.mrb[0].mxu0
    %v594 = vadd.f32 0.0, %v593
    %v595 = vpop.f32.mrb[0].mxu0
    %596 = vdwg.mxu0
    %v598 = vsel %vm549, %v498, 0
    %v601 = vsel %vm549, %v499, 0
    %603 = vmatprep.subr.bf16.mxu0 0
    %604 = vmatpush1.bf16.xpose.msra.mxu0 %v601
    %605 = vmatprep.subr.bf16.mxu0 0
    %606 = vmatpush1.bf16.xpose.msra.mxu0 0
    %607 = vmatprep.subr.bf16.mxu0 0
    %608 = vmatpush1.bf16.xpose.msra.mxu0 0
    %609 = vmatprep.subr.bf16.mxu0 0
    %610 = vmatpush1.bf16.xpose.msra.mxu0 0
    %611 = vmatprep.subr.bf16.mxu0 0
    %612 = vmatpush1.bf16.xpose.msra.mxu0 0
    %613 = vmatprep.subr.bf16.mxu0 0
    %614 = vmatpush1.bf16.xpose.msra.mxu0 0
    %615 = vmatprep.subr.bf16.mxu0 0
    %616 = vmatpush1.bf16.xpose.msra.mxu0 0
    %617 = vmatprep.subr.bf16.mxu0 0
    %618 = vmatpush1.bf16.xpose.msra.mxu0 0
    %619 = vmatprep.subr.bf16.mxu0 0
    %620 = vmatpush1.bf16.xpose.msra.mxu0 0
    %621 = vmatprep.subr.bf16.mxu0 0
    %622 = vmatpush1.bf16.xpose.msra.mxu0 0
    %623 = vmatprep.subr.bf16.mxu0 0
    %624 = vmatpush1.bf16.xpose.msra.mxu0 0
    %625 = vmatprep.subr.bf16.mxu0 0
    %626 = vmatpush1.bf16.xpose.msra.mxu0 0
    %627 = vmatprep.subr.bf16.mxu0 0
    %628 = vmatpush1.bf16.xpose.msra.mxu0 0
    %629 = vmatprep.subr.bf16.mxu0 0
    %630 = vmatpush1.bf16.xpose.msra.mxu0 0
    %631 = vmatprep.subr.bf16.mxu0 0
    %632 = vmatpush1.bf16.xpose.msra.mxu0 0
    %633 = vmatprep.subr.bf16.mxu0 0
    %634 = vmatpush1.bf16.xpose.msra.mxu0 0
    %635 = vmatprep.mubr.bf16.mxu0 0
    %636 = vmatmul.mubr.bf16.gmra.mrb[0].mxu0 %v598
    %v637 = vpop.f32.mrb[0].mxu0
    %v638 = vadd.f32 0.0, %v637
    %v639 = vpop.f32.mrb[0].mxu0
    %v640 = vpop.f32.mrb[0].mxu0
    %v641 = vadd.f32 0.0, %v640
    %v642 = vpop.f32.mrb[0].mxu0
    %643 = vdwg.mxu0
    %v645 = vsel %vm549, %v504, 0
    %v648 = vsel %vm549, %v518, 0
    %650 = vmatprep.subr.bf16.mxu0 0
    %651 = vmatpush1.bf16.xpose.msra.mxu0 %v648
    %652 = vmatprep.subr.bf16.mxu0 0
    %653 = vmatpush1.bf16.xpose.msra.mxu0 0
    %654 = vmatprep.subr.bf16.mxu0 0
    %655 = vmatpush1.bf16.xpose.msra.mxu0 0
    %656 = vmatprep.subr.bf16.mxu0 0
    %657 = vmatpush1.bf16.xpose.msra.mxu0 0
    %658 = vmatprep.subr.bf16.mxu0 0
    %659 = vmatpush1.bf16.xpose.msra.mxu0 0
    %660 = vmatprep.subr.bf16.mxu0 0
    %661 = vmatpush1.bf16.xpose.msra.mxu0 0
    %662 = vmatprep.subr.bf16.mxu0 0
    %663 = vmatpush1.bf16.xpose.msra.mxu0 0
    %664 = vmatprep.subr.bf16.mxu0 0
    %665 = vmatpush1.bf16.xpose.msra.mxu0 0
    %666 = vmatprep.subr.bf16.mxu0 0
    %667 = vmatpush1.bf16.xpose.msra.mxu0 0
    %668 = vmatprep.subr.bf16.mxu0 0
    %669 = vmatpush1.bf16.xpose.msra.mxu0 0
    %670 = vmatprep.subr.bf16.mxu0 0
    %671 = vmatpush1.bf16.xpose.msra.mxu0 0
    %672 = vmatprep.subr.bf16.mxu0 0
    %673 = vmatpush1.bf16.xpose.msra.mxu0 0
    %674 = vmatprep.subr.bf16.mxu0 0
    %675 = vmatpush1.bf16.xpose.msra.mxu0 0
    %676 = vmatprep.subr.bf16.mxu0 0
    %677 = vmatpush1.bf16.xpose.msra.mxu0 0
    %678 = vmatprep.subr.bf16.mxu0 0
    %679 = vmatpush1.bf16.xpose.msra.mxu0 0
    %680 = vmatprep.subr.bf16.mxu0 0
    %681 = vmatpush1.bf16.xpose.msra.mxu0 0
    %682 = vmatprep.mubr.bf16.mxu0 0
    %683 = vmatmul.mubr.bf16.gmra.mrb[0].mxu0 %v645
    %v684 = vpop.f32.mrb[0].mxu0
    %v685 = vadd.f32 0.0, %v684
    %v686 = vpop.f32.mrb[0].mxu0
    %v687 = vpop.f32.mrb[0].mxu0
    %v688 = vadd.f32 0.0, %v687
    %v689 = vpop.f32.mrb[0].mxu0
    %690 = vdwg.mxu0
    %v692 = vsel %vm549, %v506, 0
    %v695 = vsel %vm549, %v520, 0
    %697 = vmatprep.subr.bf16.mxu0 0
    %698 = vmatpush1.bf16.xpose.msra.mxu0 %v695
    %699 = vmatprep.subr.bf16.mxu0 0
    %700 = vmatpush1.bf16.xpose.msra.mxu0 0
    %701 = vmatprep.subr.bf16.mxu0 0
    %702 = vmatpush1.bf16.xpose.msra.mxu0 0
    %703 = vmatprep.subr.bf16.mxu0 0
    %704 = vmatpush1.bf16.xpose.msra.mxu0 0
    %705 = vmatprep.subr.bf16.mxu0 0
    %706 = vmatpush1.bf16.xpose.msra.mxu0 0
    %707 = vmatprep.subr.bf16.mxu0 0
    %708 = vmatpush1.bf16.xpose.msra.mxu0 0
    %709 = vmatprep.subr.bf16.mxu0 0
    %710 = vmatpush1.bf16.xpose.msra.mxu0 0
    %711 = vmatprep.subr.bf16.mxu0 0
    %712 = vmatpush1.bf16.xpose.msra.mxu0 0
    %713 = vmatprep.subr.bf16.mxu0 0
    %714 = vmatpush1.bf16.xpose.msra.mxu0 0
    %715 = vmatprep.subr.bf16.mxu0 0
    %716 = vmatpush1.bf16.xpose.msra.mxu0 0
    %717 = vmatprep.subr.bf16.mxu0 0
    %718 = vmatpush1.bf16.xpose.msra.mxu0 0
    %719 = vmatprep.subr.bf16.mxu0 0
    %720 = vmatpush1.bf16.xpose.msra.mxu0 0
    %721 = vmatprep.subr.bf16.mxu0 0
    %722 = vmatpush1.bf16.xpose.msra.mxu0 0
    %723 = vmatprep.subr.bf16.mxu0 0
    %724 = vmatpush1.bf16.xpose.msra.mxu0 0
    %725 = vmatprep.subr.bf16.mxu0 0
    %726 = vmatpush1.bf16.xpose.msra.mxu0 0
    %727 = vmatprep.subr.bf16.mxu0 0
    %728 = vmatpush1.bf16.xpose.msra.mxu0 0
    %729 = vmatprep.mubr.bf16.mxu0 0
    %730 = vmatmul.mubr.bf16.gmra.mrb[0].mxu0 %v692
    %v731 = vpop.f32.mrb[0].mxu0
    %v732 = vadd.f32 0.0, %v731
    %v733 = vpop.f32.mrb[0].mxu0
    %v734 = vpop.f32.mrb[0].mxu0
    %v735 = vadd.f32 0.0, %v734
    %v736 = vpop.f32.mrb[0].mxu0
    %737 = vdwg.mxu0
    %v739 = vsel %vm549, %v508, 0
    %v742 = vsel %vm549, %v522, 0
    %744 = vmatprep.subr.bf16.mxu0 0
    %745 = vmatpush1.bf16.xpose.msra.mxu0 %v742
    %746 = vmatprep.subr.bf16.mxu0 0
    %747 = vmatpush1.bf16.xpose.msra.mxu0 0
    %748 = vmatprep.subr.bf16.mxu0 0
    %749 = vmatpush1.bf16.xpose.msra.mxu0 0
    %750 = vmatprep.subr.bf16.mxu0 0
    %751 = vmatpush1.bf16.xpose.msra.mxu0 0
    %752 = vmatprep.subr.bf16.mxu0 0
    %753 = vmatpush1.bf16.xpose.msra.mxu0 0
    %754 = vmatprep.subr.bf16.mxu0 0
    %755 = vmatpush1.bf16.xpose.msra.mxu0 0
    %756 = vmatprep.subr.bf16.mxu0 0
    %757 = vmatpush1.bf16.xpose.msra.mxu0 0
    %758 = vmatprep.subr.bf16.mxu0 0
    %759 = vmatpush1.bf16.xpose.msra.mxu0 0
    %760 = vmatprep.subr.bf16.mxu0 0
    %761 = vmatpush1.bf16.xpose.msra.mxu0 0
    %762 = vmatprep.subr.bf16.mxu0 0
    %763 = vmatpush1.bf16.xpose.msra.mxu0 0
    %764 = vmatprep.subr.bf16.mxu0 0
    %765 = vmatpush1.bf16.xpose.msra.mxu0 0
    %766 = vmatprep.subr.bf16.mxu0 0
    %767 = vmatpush1.bf16.xpose.msra.mxu0 0
    %768 = vmatprep.subr.bf16.mxu0 0
    %769 = vmatpush1.bf16.xpose.msra.mxu0 0
    %770 = vmatprep.subr.bf16.mxu0 0
    %771 = vmatpush1.bf16.xpose.msra.mxu0 0
    %772 = vmatprep.subr.bf16.mxu0 0
    %773 = vmatpush1.bf16.xpose.msra.mxu0 0
    %774 = vmatprep.subr.bf16.mxu0 0
    %775 = vmatpush1.bf16.xpose.msra.mxu0 0
    %776 = vmatprep.mubr.bf16.mxu0 0
    %777 = vmatmul.mubr.bf16.gmra.mrb[0].mxu0 %v739
    %v778 = vpop.f32.mrb[0].mxu0
    %v779 = vadd.f32 0.0, %v778
    %v780 = vpop.f32.mrb[0].mxu0
    %v781 = vpop.f32.mrb[0].mxu0
    %v782 = vadd.f32 0.0, %v781
    %v783 = vpop.f32.mrb[0].mxu0
    %784 = vdwg.mxu0
    %v786 = vsel %vm549, %v510, 0
    %v789 = vsel %vm549, %v524, 0
    %791 = vmatprep.subr.bf16.mxu0 0
    %792 = vmatpush1.bf16.xpose.msra.mxu0 %v789
    %793 = vmatprep.subr.bf16.mxu0 0
    %794 = vmatpush1.bf16.xpose.msra.mxu0 0
    %795 = vmatprep.subr.bf16.mxu0 0
    %796 = vmatpush1.bf16.xpose.msra.mxu0 0
    %797 = vmatprep.subr.bf16.mxu0 0
    %798 = vmatpush1.bf16.xpose.msra.mxu0 0
    %799 = vmatprep.subr.bf16.mxu0 0
    %800 = vmatpush1.bf16.xpose.msra.mxu0 0
    %801 = vmatprep.subr.bf16.mxu0 0
    %802 = vmatpush1.bf16.xpose.msra.mxu0 0
    %803 = vmatprep.subr.bf16.mxu0 0
    %804 = vmatpush1.bf16.xpose.msra.mxu0 0
    %805 = vmatprep.subr.bf16.mxu0 0
    %806 = vmatpush1.bf16.xpose.msra.mxu0 0
    %807 = vmatprep.subr.bf16.mxu0 0
    %808 = vmatpush1.bf16.xpose.msra.mxu0 0
    %809 = vmatprep.subr.bf16.mxu0 0
    %810 = vmatpush1.bf16.xpose.msra.mxu0 0
    %811 = vmatprep.subr.bf16.mxu0 0
    %812 = vmatpush1.bf16.xpose.msra.mxu0 0
    %813 = vmatprep.subr.bf16.mxu0 0
    %814 = vmatpush1.bf16.xpose.msra.mxu0 0
    %815 = vmatprep.subr.bf16.mxu0 0
    %816 = vmatpush1.bf16.xpose.msra.mxu0 0
    %817 = vmatprep.subr.bf16.mxu0 0
    %818 = vmatpush1.bf16.xpose.msra.mxu0 0
    %819 = vmatprep.subr.bf16.mxu0 0
    %820 = vmatpush1.bf16.xpose.msra.mxu0 0
    %821 = vmatprep.subr.bf16.mxu0 0
    %822 = vmatpush1.bf16.xpose.msra.mxu0 0
    %823 = vmatprep.mubr.bf16.mxu0 0
    %824 = vmatmul.mubr.bf16.gmra.mrb[0].mxu0 %v786
    %v825 = vpop.f32.mrb[0].mxu0
    %v826 = vadd.f32 0.0, %v825
    %v827 = vpop.f32.mrb[0].mxu0
    %v828 = vpop.f32.mrb[0].mxu0
    %v829 = vadd.f32 0.0, %v828
    %v830 = vpop.f32.mrb[0].mxu0
    %831 = vdwg.mxu0
    %v833 = vsel %vm549, %v512, 0
    %v836 = vsel %vm549, %v526, 0
    %838 = vmatprep.subr.bf16.mxu0 0
    %839 = vmatpush1.bf16.xpose.msra.mxu0 %v836
    %840 = vmatprep.subr.bf16.mxu0 0
    %841 = vmatpush1.bf16.xpose.msra.mxu0 0
    %842 = vmatprep.subr.bf16.mxu0 0
    %843 = vmatpush1.bf16.xpose.msra.mxu0 0
    %844 = vmatprep.subr.bf16.mxu0 0
    %845 = vmatpush1.bf16.xpose.msra.mxu0 0
    %846 = vmatprep.subr.bf16.mxu0 0
    %847 = vmatpush1.bf16.xpose.msra.mxu0 0
    %848 = vmatprep.subr.bf16.mxu0 0
    %849 = vmatpush1.bf16.xpose.msra.mxu0 0
    %850 = vmatprep.subr.bf16.mxu0 0
    %851 = vmatpush1.bf16.xpose.msra.mxu0 0
    %852 = vmatprep.subr.bf16.mxu0 0
    %853 = vmatpush1.bf16.xpose.msra.mxu0 0
    %854 = vmatprep.subr.bf16.mxu0 0
    %855 = vmatpush1.bf16.xpose.msra.mxu0 0
    %856 = vmatprep.subr.bf16.mxu0 0
    %857 = vmatpush1.bf16.xpose.msra.mxu0 0
    %858 = vmatprep.subr.bf16.mxu0 0
    %859 = vmatpush1.bf16.xpose.msra.mxu0 0
    %860 = vmatprep.subr.bf16.mxu0 0
    %861 = vmatpush1.bf16.xpose.msra.mxu0 0
    %862 = vmatprep.subr.bf16.mxu0 0
    %863 = vmatpush1.bf16.xpose.msra.mxu0 0
    %864 = vmatprep.subr.bf16.mxu0 0
    %865 = vmatpush1.bf16.xpose.msra.mxu0 0
    %866 = vmatprep.subr.bf16.mxu0 0
    %867 = vmatpush1.bf16.xpose.msra.mxu0 0
    %868 = vmatprep.subr.bf16.mxu0 0
    %869 = vmatpush1.bf16.xpose.msra.mxu0 0
    %870 = vmatprep.mubr.bf16.mxu0 0
    %871 = vmatmul.mubr.bf16.gmra.mrb[0].mxu0 %v833
    %v872 = vpop.f32.mrb[0].mxu0
    %v873 = vadd.f32 0.0, %v872
    %v874 = vpop.f32.mrb[0].mxu0
    %v875 = vpop.f32.mrb[0].mxu0
    %v876 = vadd.f32 0.0, %v875
    %v877 = vpop.f32.mrb[0].mxu0
    %878 = vdwg.mxu0
    %v880 = vsel %vm549, %v514, 0
    %v883 = vsel %vm549, %v528, 0
    %885 = vmatprep.subr.bf16.mxu0 0
    %886 = vmatpush1.bf16.xpose.msra.mxu0 %v883
    %887 = vmatprep.subr.bf16.mxu0 0
    %888 = vmatpush1.bf16.xpose.msra.mxu0 0
    %889 = vmatprep.subr.bf16.mxu0 0
    %890 = vmatpush1.bf16.xpose.msra.mxu0 0
    %891 = vmatprep.subr.bf16.mxu0 0
    %892 = vmatpush1.bf16.xpose.msra.mxu0 0
    %893 = vmatprep.subr.bf16.mxu0 0
    %894 = vmatpush1.bf16.xpose.msra.mxu0 0
    %895 = vmatprep.subr.bf16.mxu0 0
    %896 = vmatpush1.bf16.xpose.msra.mxu0 0
    %897 = vmatprep.subr.bf16.mxu0 0
    %898 = vmatpush1.bf16.xpose.msra.mxu0 0
    %899 = vmatprep.subr.bf16.mxu0 0
    %900 = vmatpush1.bf16.xpose.msra.mxu0 0
    %901 = vmatprep.subr.bf16.mxu0 0
    %902 = vmatpush1.bf16.xpose.msra.mxu0 0
    %903 = vmatprep.subr.bf16.mxu0 0
    %904 = vmatpush1.bf16.xpose.msra.mxu0 0
    %905 = vmatprep.subr.bf16.mxu0 0
    %906 = vmatpush1.bf16.xpose.msra.mxu0 0
    %907 = vmatprep.subr.bf16.mxu0 0
    %908 = vmatpush1.bf16.xpose.msra.mxu0 0
    %909 = vmatprep.subr.bf16.mxu0 0
    %910 = vmatpush1.bf16.xpose.msra.mxu0 0
    %911 = vmatprep.subr.bf16.mxu0 0
    %912 = vmatpush1.bf16.xpose.msra.mxu0 0
    %913 = vmatprep.subr.bf16.mxu0 0
    %914 = vmatpush1.bf16.xpose.msra.mxu0 0
    %915 = vmatprep.subr.bf16.mxu0 0
    %916 = vmatpush1.bf16.xpose.msra.mxu0 0
    %917 = vmatprep.mubr.bf16.mxu0 0
    %918 = vmatmul.mubr.bf16.gmra.mrb[0].mxu0 %v880
    %v919 = vpop.f32.mrb[0].mxu0
    %v920 = vadd.f32 0.0, %v919
    %v921 = vpop.f32.mrb[0].mxu0
    %v922 = vpop.f32.mrb[0].mxu0
    %v923 = vadd.f32 0.0, %v922
    %v924 = vpop.f32.mrb[0].mxu0
    %925 = vdwg.mxu0
    %v926 = vmul.f32 %v591, 0.17677669
    %v927 = vmul.f32 %v594, 0.17677669
    %v928 = vmul.f32 %v638, 0.17677669
    %v929 = vmul.f32 %v641, 0.17677669
    %v930 = vmul.f32 %v685, 0.17677669
    %v931 = vmul.f32 %v688, 0.17677669
    %v932 = vmul.f32 %v732, 0.17677669
    %v933 = vmul.f32 %v735, 0.17677669
    %v934 = vmul.f32 %v779, 0.17677669
    %v935 = vmul.f32 %v782, 0.17677669
    %v936 = vmul.f32 %v826, 0.17677669
    %v937 = vmul.f32 %v829, 0.17677669
    %v938 = vmul.f32 %v873, 0.17677669
    %v939 = vmul.f32 %v876, 0.17677669
    %v940 = vmul.f32 %v920, 0.17677669
    %v941 = vmul.f32 %v923, 0.17677669
    %v942 = vadd.f32 %v926, %v202
    %v943 = vadd.f32 %v927, %v203
    %v944 = vadd.f32 %v928, %v202
    %v945 = vadd.f32 %v929, %v203
    %v946 = vadd.f32 %v930, %v202
    %v947 = vadd.f32 %v931, %v203
    %v948 = vadd.f32 %v932, %v202
    %v949 = vadd.f32 %v933, %v203
    %v950 = vadd.f32 %v934, %v202
    %v951 = vadd.f32 %v935, %v203
    %v952 = vadd.f32 %v936, %v202
    %v953 = vadd.f32 %v937, %v203
    %v954 = vadd.f32 %v938, %v202
    %v955 = vadd.f32 %v939, %v203
    %v956 = vadd.f32 %v940, %v202
    %v957 = vadd.f32 %v941, %v203
    %vm958 = vcmask 130048
    %v959 = vsel %vm958, %v942, -inf
    %960 = vmax.xlane.f32.xlu0 %v959
    %v961 = vpop.xlane.xlu0 %960
    %v962 = vsel %vm958, %v943, -inf
    %963 = vmax.xlane.f32.xlu0 %v962
    %v964 = vpop.xlane.xlu0 %963
    %v965 = vsel %vm958, %v944, -inf
    %966 = vmax.xlane.f32.xlu0 %v965
    %v967 = vpop.xlane.xlu0 %966
    %v968 = vsel %vm958, %v945, -inf
    %969 = vmax.xlane.f32.xlu0 %v968
    %v970 = vpop.xlane.xlu0 %969
    %v971 = vsel %vm958, %v946, -inf
    %972 = vmax.xlane.f32.xlu0 %v971
    %v973 = vpop.xlane.xlu0 %972
    %v974 = vsel %vm958, %v947, -inf
    %975 = vmax.xlane.f32.xlu0 %v974
    %v976 = vpop.xlane.xlu0 %975
    %v977 = vsel %vm958, %v948, -inf
    %978 = vmax.xlane.f32.xlu0 %v977
    %v979 = vpop.xlane.xlu0 %978
    %v980 = vsel %vm958, %v949, -inf
    %981 = vmax.xlane.f32.xlu0 %v980
    %v982 = vpop.xlane.xlu0 %981
    %v983 = vsel %vm958, %v950, -inf
    %984 = vmax.xlane.f32.xlu0 %v983
    %v985 = vpop.xlane.xlu0 %984
    %v986 = vsel %vm958, %v951, -inf
    %987 = vmax.xlane.f32.xlu0 %v986
    %v988 = vpop.xlane.xlu0 %987
    %v989 = vsel %vm958, %v952, -inf
    %990 = vmax.xlane.f32.xlu0 %v989
    %v991 = vpop.xlane.xlu0 %990
    %v992 = vsel %vm958, %v953, -inf
    %993 = vmax.xlane.f32.xlu0 %v992
    %v994 = vpop.xlane.xlu0 %993
    %v995 = vsel %vm958, %v954, -inf
    %996 = vmax.xlane.f32.xlu0 %v995
    %v997 = vpop.xlane.xlu0 %996
    %v998 = vsel %vm958, %v955, -inf
    %999 = vmax.xlane.f32.xlu0 %v998
    %v1000 = vpop.xlane.xlu0 %999
    %v1001 = vsel %vm958, %v956, -inf
    %1002 = vmax.xlane.f32.xlu0 %v1001
    %v1003 = vpop.xlane.xlu0 %1002
    %v1004 = vsel %vm958, %v957, -inf
    %1005 = vmax.xlane.f32.xlu0 %v1004
    %v1006 = vpop.xlane.xlu0 %1005
    %v1007 = vsub.f32 %v942, %v961
    %v1008 = vsub.f32 %v943, %v964
    %v1009 = vsub.f32 %v944, %v967
    %v1010 = vsub.f32 %v945, %v970
    %v1011 = vsub.f32 %v946, %v973
    %v1012 = vsub.f32 %v947, %v976
    %v1013 = vsub.f32 %v948, %v979
    %v1014 = vsub.f32 %v949, %v982
    %v1015 = vsub.f32 %v950, %v985
    %v1016 = vsub.f32 %v951, %v988
    %v1017 = vsub.f32 %v952, %v991
    %v1018 = vsub.f32 %v953, %v994
    %v1019 = vsub.f32 %v954, %v997
    %v1020 = vsub.f32 %v955, %v1000
    %v1021 = vsub.f32 %v956, %v1003
    %v1022 = vsub.f32 %v957, %v1006
    %v1023 = vmul.f32 %v1007, 1.442695
    %v1024 = vpow.pop %v1023
    %v1025 = vmul.f32 %v1008, 1.442695
    %v1026 = vpow.pop %v1025
    %v1027 = vmul.f32 %v1009, 1.442695
    %v1028 = vpow.pop %v1027
    %v1029 = vmul.f32 %v1010, 1.442695
    %v1030 = vpow.pop %v1029
    %v1031 = vmul.f32 %v1011, 1.442695
    %v1032 = vpow.pop %v1031
    %v1033 = vmul.f32 %v1012, 1.442695
    %v1034 = vpow.pop %v1033
    %v1035 = vmul.f32 %v1013, 1.442695
    %v1036 = vpow.pop %v1035
    %v1037 = vmul.f32 %v1014, 1.442695
    %v1038 = vpow.pop %v1037
    %v1039 = vmul.f32 %v1015, 1.442695
    %v1040 = vpow.pop %v1039
    %v1041 = vmul.f32 %v1016, 1.442695
    %v1042 = vpow.pop %v1041
    %v1043 = vmul.f32 %v1017, 1.442695
    %v1044 = vpow.pop %v1043
    %v1045 = vmul.f32 %v1018, 1.442695
    %v1046 = vpow.pop %v1045
    %v1047 = vmul.f32 %v1019, 1.442695
    %v1048 = vpow.pop %v1047
    %v1049 = vmul.f32 %v1020, 1.442695
    %v1050 = vpow.pop %v1049
    %v1051 = vmul.f32 %v1021, 1.442695
    %v1052 = vpow.pop %v1051
    %v1053 = vmul.f32 %v1022, 1.442695
    %v1054 = vpow.pop %v1053
    %v1055 = vsel %vm958, %v1024, 0.0
    %1056 = vadd.xlane.f32.xlu0 %v1055
    %v1057 = vpop.xlane.xlu0 %1056
    %v1058 = vsel %vm958, %v1026, 0.0
    %1059 = vadd.xlane.f32.xlu0 %v1058
    %v1060 = vpop.xlane.xlu0 %1059
    %v1061 = vsel %vm958, %v1028, 0.0
    %1062 = vadd.xlane.f32.xlu0 %v1061
    %v1063 = vpop.xlane.xlu0 %1062
    %v1064 = vsel %vm958, %v1030, 0.0
    %1065 = vadd.xlane.f32.xlu0 %v1064
    %v1066 = vpop.xlane.xlu0 %1065
    %v1067 = vsel %vm958, %v1032, 0.0
    %1068 = vadd.xlane.f32.xlu0 %v1067
    %v1069 = vpop.xlane.xlu0 %1068
    %v1070 = vsel %vm958, %v1034, 0.0
    %1071 = vadd.xlane.f32.xlu0 %v1070
    %v1072 = vpop.xlane.xlu0 %1071
    %v1073 = vsel %vm958, %v1036, 0.0
    %1074 = vadd.xlane.f32.xlu0 %v1073
    %v1075 = vpop.xlane.xlu0 %1074
    %v1076 = vsel %vm958, %v1038, 0.0
    %1077 = vadd.xlane.f32.xlu0 %v1076
    %v1078 = vpop.xlane.xlu0 %1077
    %v1079 = vsel %vm958, %v1040, 0.0
    %1080 = vadd.xlane.f32.xlu0 %v1079
    %v1081 = vpop.xlane.xlu0 %1080
    %v1082 = vsel %vm958, %v1042, 0.0
    %1083 = vadd.xlane.f32.xlu0 %v1082
    %v1084 = vpop.xlane.xlu0 %1083
    %v1085 = vsel %vm958, %v1044, 0.0
    %1086 = vadd.xlane.f32.xlu0 %v1085
    %v1087 = vpop.xlane.xlu0 %1086
    %v1088 = vsel %vm958, %v1046, 0.0
    %1089 = vadd.xlane.f32.xlu0 %v1088
    %v1090 = vpop.xlane.xlu0 %1089
    %v1091 = vsel %vm958, %v1048, 0.0
    %1092 = vadd.xlane.f32.xlu0 %v1091
    %v1093 = vpop.xlane.xlu0 %1092
    %v1094 = vsel %vm958, %v1050, 0.0
    %1095 = vadd.xlane.f32.xlu0 %v1094
    %v1096 = vpop.xlane.xlu0 %1095
    %v1097 = vsel %vm958, %v1052, 0.0
    %1098 = vadd.xlane.f32.xlu0 %v1097
    %v1099 = vpop.xlane.xlu0 %1098
    %v1100 = vsel %vm958, %v1054, 0.0
    %1101 = vadd.xlane.f32.xlu0 %v1100
    %v1102 = vpop.xlane.xlu0 %1101
    %v1103 = vrcp.pop %v1057
    %v1104 = vrcp.pop %v1060
    %v1105 = vrcp.pop %v1063
    %v1106 = vrcp.pop %v1066
    %v1107 = vrcp.pop %v1069
    %v1108 = vrcp.pop %v1072
    %v1109 = vrcp.pop %v1075
    %v1110 = vrcp.pop %v1078
    %v1111 = vrcp.pop %v1081
    %v1112 = vrcp.pop %v1084
    %v1113 = vrcp.pop %v1087
    %v1114 = vrcp.pop %v1090
    %v1115 = vrcp.pop %v1093
    %v1116 = vrcp.pop %v1096
    %v1117 = vrcp.pop %v1099
    %v1118 = vrcp.pop %v1102
    %v1119 = vmul.f32 %v1024, %v1103
    %v1120 = vmul.f32 %v1026, %v1104
    %v1121 = vmul.f32 %v1028, %v1105
    %v1122 = vmul.f32 %v1030, %v1106
    %v1123 = vmul.f32 %v1032, %v1107
    %v1124 = vmul.f32 %v1034, %v1108
    %v1125 = vmul.f32 %v1036, %v1109
    %v1126 = vmul.f32 %v1038, %v1110
    %v1127 = vmul.f32 %v1040, %v1111
    %v1128 = vmul.f32 %v1042, %v1112
    %v1129 = vmul.f32 %v1044, %v1113
    %v1130 = vmul.f32 %v1046, %v1114
    %v1131 = vmul.f32 %v1048, %v1115
    %v1132 = vmul.f32 %v1050, %v1116
    %v1133 = vmul.f32 %v1052, %v1117
    %v1134 = vmul.f32 %v1054, %v1118
    %v1135 = vpack.c.bf16 %v1120, %v1119
    %v1136 = vpack.c.bf16 %v1122, %v1121
    %v1137 = vpack.c.bf16 %v1124, %v1123
    %v1138 = vpack.c.bf16 %v1126, %v1125
    %v1139 = vpack.c.bf16 %v1128, %v1127
    %v1140 = vpack.c.bf16 %v1130, %v1129
    %v1141 = vpack.c.bf16 %v1132, %v1131
    %v1142 = vpack.c.bf16 %v1134, %v1133
    %v1144 = vsel %vm958, %v1135, 0
    %1146 = vmatprep.subr.bf16.mxu0 0
    %1147 = vmatpush1.bf16.msra.mxu0 %v497
    %1148 = vmatprep.subr.bf16.mxu0 0
    %1149 = vmatpush1.bf16.msra.mxu0 0
    %1150 = vmatprep.subr.bf16.mxu0 0
    %1151 = vmatpush1.bf16.msra.mxu0 0
    %1152 = vmatprep.subr.bf16.mxu0 0
    %1153 = vmatpush1.bf16.msra.mxu0 0
    %1154 = vmatprep.subr.bf16.mxu0 0
    %1155 = vmatpush1.bf16.msra.mxu0 0
    %1156 = vmatprep.subr.bf16.mxu0 0
    %1157 = vmatpush1.bf16.msra.mxu0 0
    %1158 = vmatprep.subr.bf16.mxu0 0
    %1159 = vmatpush1.bf16.msra.mxu0 0
    %1160 = vmatprep.subr.bf16.mxu0 0
    %1161 = vmatpush1.bf16.msra.mxu0 0
    %1162 = vmatprep.subr.bf16.mxu0 0
    %1163 = vmatpush1.bf16.msra.mxu0 0
    %1164 = vmatprep.subr.bf16.mxu0 0
    %1165 = vmatpush1.bf16.msra.mxu0 0
    %1166 = vmatprep.subr.bf16.mxu0 0
    %1167 = vmatpush1.bf16.msra.mxu0 0
    %1168 = vmatprep.subr.bf16.mxu0 0
    %1169 = vmatpush1.bf16.msra.mxu0 0
    %1170 = vmatprep.subr.bf16.mxu0 0
    %1171 = vmatpush1.bf16.msra.mxu0 0
    %1172 = vmatprep.subr.bf16.mxu0 0
    %1173 = vmatpush1.bf16.msra.mxu0 0
    %1174 = vmatprep.subr.bf16.mxu0 0
    %1175 = vmatpush1.bf16.msra.mxu0 0
    %1176 = vmatprep.subr.bf16.mxu0 0
    %1177 = vmatpush1.bf16.msra.mxu0 0
    %1178 = vmatprep.mubr.bf16.mxu0 0
    %1179 = vmatmul.mubr.bf16.gmra.mrb[0].mxu0 %v1144
    %v1180 = vpop.f32.mrb[0].mxu0
    %v1181 = vadd.f32 0.0, %v1180
    %v1182 = vpop.f32.mrb[0].mxu0
    %v1183 = vpop.f32.mrb[0].mxu0
    %v1184 = vadd.f32 0.0, %v1183
    %v1185 = vpop.f32.mrb[0].mxu0
    %1186 = vdwg.mxu0
    %v1188 = vsel %vm958, %v1136, 0
    %1190 = vmatprep.subr.bf16.mxu0 0
    %1191 = vmatpush1.bf16.msra.mxu0 %v500
    %1192 = vmatprep.subr.bf16.mxu0 0
    %1193 = vmatpush1.bf16.msra.mxu0 0
    %1194 = vmatprep.subr.bf16.mxu0 0
    %1195 = vmatpush1.bf16.msra.mxu0 0
    %1196 = vmatprep.subr.bf16.mxu0 0
    %1197 = vmatpush1.bf16.msra.mxu0 0
    %1198 = vmatprep.subr.bf16.mxu0 0
    %1199 = vmatpush1.bf16.msra.mxu0 0
    %1200 = vmatprep.subr.bf16.mxu0 0
    %1201 = vmatpush1.bf16.msra.mxu0 0
    %1202 = vmatprep.subr.bf16.mxu0 0
    %1203 = vmatpush1.bf16.msra.mxu0 0
    %1204 = vmatprep.subr.bf16.mxu0 0
    %1205 = vmatpush1.bf16.msra.mxu0 0
    %1206 = vmatprep.subr.bf16.mxu0 0
    %1207 = vmatpush1.bf16.msra.mxu0 0
    %1208 = vmatprep.subr.bf16.mxu0 0
    %1209 = vmatpush1.bf16.msra.mxu0 0
    %1210 = vmatprep.subr.bf16.mxu0 0
    %1211 = vmatpush1.bf16.msra.mxu0 0
    %1212 = vmatprep.subr.bf16.mxu0 0
    %1213 = vmatpush1.bf16.msra.mxu0 0
    %1214 = vmatprep.subr.bf16.mxu0 0
    %1215 = vmatpush1.bf16.msra.mxu0 0
    %1216 = vmatprep.subr.bf16.mxu0 0
    %1217 = vmatpush1.bf16.msra.mxu0 0
    %1218 = vmatprep.subr.bf16.mxu0 0
    %1219 = vmatpush1.bf16.msra.mxu0 0
    %1220 = vmatprep.subr.bf16.mxu0 0
    %1221 = vmatpush1.bf16.msra.mxu0 0
    %1222 = vmatprep.mubr.bf16.mxu0 0
    %1223 = vmatmul.mubr.bf16.gmra.mrb[0].mxu0 %v1188
    %v1224 = vpop.f32.mrb[0].mxu0
    %v1225 = vadd.f32 0.0, %v1224
    %v1226 = vpop.f32.mrb[0].mxu0
    %v1227 = vpop.f32.mrb[0].mxu0
    %v1228 = vadd.f32 0.0, %v1227
    %v1229 = vpop.f32.mrb[0].mxu0
    %1230 = vdwg.mxu0
    %v1232 = vsel %vm958, %v1137, 0
    %1234 = vmatprep.subr.bf16.mxu0 0
    %1235 = vmatpush1.bf16.msra.mxu0 %v532
    %1236 = vmatprep.subr.bf16.mxu0 0
    %1237 = vmatpush1.bf16.msra.mxu0 0
    %1238 = vmatprep.subr.bf16.mxu0 0
    %1239 = vmatpush1.bf16.msra.mxu0 0
    %1240 = vmatprep.subr.bf16.mxu0 0
    %1241 = vmatpush1.bf16.msra.mxu0 0
    %1242 = vmatprep.subr.bf16.mxu0 0
    %1243 = vmatpush1.bf16.msra.mxu0 0
    %1244 = vmatprep.subr.bf16.mxu0 0
    %1245 = vmatpush1.bf16.msra.mxu0 0
    %1246 = vmatprep.subr.bf16.mxu0 0
    %1247 = vmatpush1.bf16.msra.mxu0 0
    %1248 = vmatprep.subr.bf16.mxu0 0
    %1249 = vmatpush1.bf16.msra.mxu0 0
    %1250 = vmatprep.subr.bf16.mxu0 0
    %1251 = vmatpush1.bf16.msra.mxu0 0
    %1252 = vmatprep.subr.bf16.mxu0 0
    %1253 = vmatpush1.bf16.msra.mxu0 0
    %1254 = vmatprep.subr.bf16.mxu0 0
    %1255 = vmatpush1.bf16.msra.mxu0 0
    %1256 = vmatprep.subr.bf16.mxu0 0
    %1257 = vmatpush1.bf16.msra.mxu0 0
    %1258 = vmatprep.subr.bf16.mxu0 0
    %1259 = vmatpush1.bf16.msra.mxu0 0
    %1260 = vmatprep.subr.bf16.mxu0 0
    %1261 = vmatpush1.bf16.msra.mxu0 0
    %1262 = vmatprep.subr.bf16.mxu0 0
    %1263 = vmatpush1.bf16.msra.mxu0 0
    %1264 = vmatprep.subr.bf16.mxu0 0
    %1265 = vmatpush1.bf16.msra.mxu0 0
    %1266 = vmatprep.mubr.bf16.mxu0 0
    %1267 = vmatmul.mubr.bf16.gmra.mrb[0].mxu0 %v1232
    %v1268 = vpop.f32.mrb[0].mxu0
    %v1269 = vadd.f32 0.0, %v1268
    %v1270 = vpop.f32.mrb[0].mxu0
    %v1271 = vpop.f32.mrb[0].mxu0
    %v1272 = vadd.f32 0.0, %v1271
    %v1273 = vpop.f32.mrb[0].mxu0
    %1274 = vdwg.mxu0
    %v1276 = vsel %vm958, %v1138, 0
    %1278 = vmatprep.subr.bf16.mxu0 0
    %1279 = vmatpush1.bf16.msra.mxu0 %v534
    %1280 = vmatprep.subr.bf16.mxu0 0
    %1281 = vmatpush1.bf16.msra.mxu0 0
    %1282 = vmatprep.subr.bf16.mxu0 0
    %1283 = vmatpush1.bf16.msra.mxu0 0
    %1284 = vmatprep.subr.bf16.mxu0 0
    %1285 = vmatpush1.bf16.msra.mxu0 0
    %1286 = vmatprep.subr.bf16.mxu0 0
    %1287 = vmatpush1.bf16.msra.mxu0 0
    %1288 = vmatprep.subr.bf16.mxu0 0
    %1289 = vmatpush1.bf16.msra.mxu0 0
    %1290 = vmatprep.subr.bf16.mxu0 0
    %1291 = vmatpush1.bf16.msra.mxu0 0
    %1292 = vmatprep.subr.bf16.mxu0 0
    %1293 = vmatpush1.bf16.msra.mxu0 0
    %1294 = vmatprep.subr.bf16.mxu0 0
    %1295 = vmatpush1.bf16.msra.mxu0 0
    %1296 = vmatprep.subr.bf16.mxu0 0
    %1297 = vmatpush1.bf16.msra.mxu0 0
    %1298 = vmatprep.subr.bf16.mxu0 0
    %1299 = vmatpush1.bf16.msra.mxu0 0
    %1300 = vmatprep.subr.bf16.mxu0 0
    %1301 = vmatpush1.bf16.msra.mxu0 0
    %1302 = vmatprep.subr.bf16.mxu0 0
    %1303 = vmatpush1.bf16.msra.mxu0 0
    %1304 = vmatprep.subr.bf16.mxu0 0
    %1305 = vmatpush1.bf16.msra.mxu0 0
    %1306 = vmatprep.subr.bf16.mxu0 0
    %1307 = vmatpush1.bf16.msra.mxu0 0
    %1308 = vmatprep.subr.bf16.mxu0 0
    %1309 = vmatpush1.bf16.msra.mxu0 0
    %1310 = vmatprep.mubr.bf16.mxu0 0
    %1311 = vmatmul.mubr.bf16.gmra.mrb[0].mxu0 %v1276
    %v1312 = vpop.f32.mrb[0].mxu0
    %v1313 = vadd.f32 0.0, %v1312
    %v1314 = vpop.f32.mrb[0].mxu0
    %v1315 = vpop.f32.mrb[0].mxu0
    %v1316 = vadd.f32 0.0, %v1315
    %v1317 = vpop.f32.mrb[0].mxu0
    %1318 = vdwg.mxu0
    %v1320 = vsel %vm958, %v1139, 0
    %1322 = vmatprep.subr.bf16.mxu0 0
    %1323 = vmatpush1.bf16.msra.mxu0 %v538
    %1324 = vmatprep.subr.bf16.mxu0 0
    %1325 = vmatpush1.bf16.msra.mxu0 0
    %1326 = vmatprep.subr.bf16.mxu0 0
    %1327 = vmatpush1.bf16.msra.mxu0 0
    %1328 = vmatprep.subr.bf16.mxu0 0
    %1329 = vmatpush1.bf16.msra.mxu0 0
    %1330 = vmatprep.subr.bf16.mxu0 0
    %1331 = vmatpush1.bf16.msra.mxu0 0
    %1332 = vmatprep.subr.bf16.mxu0 0
    %1333 = vmatpush1.bf16.msra.mxu0 0
    %1334 = vmatprep.subr.bf16.mxu0 0
    %1335 = vmatpush1.bf16.msra.mxu0 0
    %1336 = vmatprep.subr.bf16.mxu0 0
    %1337 = vmatpush1.bf16.msra.mxu0 0
    %1338 = vmatprep.subr.bf16.mxu0 0
    %1339 = vmatpush1.bf16.msra.mxu0 0
    %1340 = vmatprep.subr.bf16.mxu0 0
    %1341 = vmatpush1.bf16.msra.mxu0 0
    %1342 = vmatprep.subr.bf16.mxu0 0
    %1343 = vmatpush1.bf16.msra.mxu0 0
    %1344 = vmatprep.subr.bf16.mxu0 0
    %1345 = vmatpush1.bf16.msra.mxu0 0
    %1346 = vmatprep.subr.bf16.mxu0 0
    %1347 = vmatpush1.bf16.msra.mxu0 0
    %1348 = vmatprep.subr.bf16.mxu0 0
    %1349 = vmatpush1.bf16.msra.mxu0 0
    %1350 = vmatprep.subr.bf16.mxu0 0
    %1351 = vmatpush1.bf16.msra.mxu0 0
    %1352 = vmatprep.subr.bf16.mxu0 0
    %1353 = vmatpush1.bf16.msra.mxu0 0
    %1354 = vmatprep.mubr.bf16.mxu0 0
    %1355 = vmatmul.mubr.bf16.gmra.mrb[0].mxu0 %v1320
    %v1356 = vpop.f32.mrb[0].mxu0
    %v1357 = vadd.f32 0.0, %v1356
    %v1358 = vpop.f32.mrb[0].mxu0
    %v1359 = vpop.f32.mrb[0].mxu0
    %v1360 = vadd.f32 0.0, %v1359
    %v1361 = vpop.f32.mrb[0].mxu0
    %1362 = vdwg.mxu0
    %v1364 = vsel %vm958, %v1140, 0
    %1366 = vmatprep.subr.bf16.mxu0 0
    %1367 = vmatpush1.bf16.msra.mxu0 %v540
    %1368 = vmatprep.subr.bf16.mxu0 0
    %1369 = vmatpush1.bf16.msra.mxu0 0
    %1370 = vmatprep.subr.bf16.mxu0 0
    %1371 = vmatpush1.bf16.msra.mxu0 0
    %1372 = vmatprep.subr.bf16.mxu0 0
    %1373 = vmatpush1.bf16.msra.mxu0 0
    %1374 = vmatprep.subr.bf16.mxu0 0
    %1375 = vmatpush1.bf16.msra.mxu0 0
    %1376 = vmatprep.subr.bf16.mxu0 0
    %1377 = vmatpush1.bf16.msra.mxu0 0
    %1378 = vmatprep.subr.bf16.mxu0 0
    %1379 = vmatpush1.bf16.msra.mxu0 0
    %1380 = vmatprep.subr.bf16.mxu0 0
    %1381 = vmatpush1.bf16.msra.mxu0 0
    %1382 = vmatprep.subr.bf16.mxu0 0
    %1383 = vmatpush1.bf16.msra.mxu0 0
    %1384 = vmatprep.subr.bf16.mxu0 0
    %1385 = vmatpush1.bf16.msra.mxu0 0
    %1386 = vmatprep.subr.bf16.mxu0 0
    %1387 = vmatpush1.bf16.msra.mxu0 0
    %1388 = vmatprep.subr.bf16.mxu0 0
    %1389 = vmatpush1.bf16.msra.mxu0 0
    %1390 = vmatprep.subr.bf16.mxu0 0
    %1391 = vmatpush1.bf16.msra.mxu0 0
    %1392 = vmatprep.subr.bf16.mxu0 0
    %1393 = vmatpush1.bf16.msra.mxu0 0
    %1394 = vmatprep.subr.bf16.mxu0 0
    %1395 = vmatpush1.bf16.msra.mxu0 0
    %1396 = vmatprep.subr.bf16.mxu0 0
    %1397 = vmatpush1.bf16.msra.mxu0 0
    %1398 = vmatprep.mubr.bf16.mxu0 0
    %1399 = vmatmul.mubr.bf16.gmra.mrb[0].mxu0 %v1364
    %v1400 = vpop.f32.mrb[0].mxu0
    %v1401 = vadd.f32 0.0, %v1400
    %v1402 = vpop.f32.mrb[0].mxu0
    %v1403 = vpop.f32.mrb[0].mxu0
    %v1404 = vadd.f32 0.0, %v1403
    %v1405 = vpop.f32.mrb[0].mxu0
    %1406 = vdwg.mxu0
    %v1408 = vsel %vm958, %v1141, 0
    %1410 = vmatprep.subr.bf16.mxu0 0
    %1411 = vmatpush1.bf16.msra.mxu0 %v544
    %1412 = vmatprep.subr.bf16.mxu0 0
    %1413 = vmatpush1.bf16.msra.mxu0 0
    %1414 = vmatprep.subr.bf16.mxu0 0
    %1415 = vmatpush1.bf16.msra.mxu0 0
    %1416 = vmatprep.subr.bf16.mxu0 0
    %1417 = vmatpush1.bf16.msra.mxu0 0
    %1418 = vmatprep.subr.bf16.mxu0 0
    %1419 = vmatpush1.bf16.msra.mxu0 0
    %1420 = vmatprep.subr.bf16.mxu0 0
    %1421 = vmatpush1.bf16.msra.mxu0 0
    %1422 = vmatprep.subr.bf16.mxu0 0
    %1423 = vmatpush1.bf16.msra.mxu0 0
    %1424 = vmatprep.subr.bf16.mxu0 0
    %1425 = vmatpush1.bf16.msra.mxu0 0
    %1426 = vmatprep.subr.bf16.mxu0 0
    %1427 = vmatpush1.bf16.msra.mxu0 0
    %1428 = vmatprep.subr.bf16.mxu0 0
    %1429 = vmatpush1.bf16.msra.mxu0 0
    %1430 = vmatprep.subr.bf16.mxu0 0
    %1431 = vmatpush1.bf16.msra.mxu0 0
    %1432 = vmatprep.subr.bf16.mxu0 0
    %1433 = vmatpush1.bf16.msra.mxu0 0
    %1434 = vmatprep.subr.bf16.mxu0 0
    %1435 = vmatpush1.bf16.msra.mxu0 0
    %1436 = vmatprep.subr.bf16.mxu0 0
    %1437 = vmatpush1.bf16.msra.mxu0 0
    %1438 = vmatprep.subr.bf16.mxu0 0
    %1439 = vmatpush1.bf16.msra.mxu0 0
    %1440 = vmatprep.subr.bf16.mxu0 0
    %1441 = vmatpush1.bf16.msra.mxu0 0
    %1442 = vmatprep.mubr.bf16.mxu0 0
    %1443 = vmatmul.mubr.bf16.gmra.mrb[0].mxu0 %v1408
    %v1444 = vpop.f32.mrb[0].mxu0
    %v1445 = vadd.f32 0.0, %v1444
    %v1446 = vpop.f32.mrb[0].mxu0
    %v1447 = vpop.f32.mrb[0].mxu0
    %v1448 = vadd.f32 0.0, %v1447
    %v1449 = vpop.f32.mrb[0].mxu0
    %1450 = vdwg.mxu0
    %v1452 = vsel %vm958, %v1142, 0
    %1454 = vmatprep.subr.bf16.mxu0 0
    %1455 = vmatpush1.bf16.msra.mxu0 %v546
    %1456 = vmatprep.subr.bf16.mxu0 0
    %1457 = vmatpush1.bf16.msra.mxu0 0
    %1458 = vmatprep.subr.bf16.mxu0 0
    %1459 = vmatpush1.bf16.msra.mxu0 0
    %1460 = vmatprep.subr.bf16.mxu0 0
    %1461 = vmatpush1.bf16.msra.mxu0 0
    %1462 = vmatprep.subr.bf16.mxu0 0
    %1463 = vmatpush1.bf16.msra.mxu0 0
    %1464 = vmatprep.subr.bf16.mxu0 0
    %1465 = vmatpush1.bf16.msra.mxu0 0
    %1466 = vmatprep.subr.bf16.mxu0 0
    %1467 = vmatpush1.bf16.msra.mxu0 0
    %1468 = vmatprep.subr.bf16.mxu0 0
    %1469 = vmatpush1.bf16.msra.mxu0 0
    %1470 = vmatprep.subr.bf16.mxu0 0
    %1471 = vmatpush1.bf16.msra.mxu0 0
    %1472 = vmatprep.subr.bf16.mxu0 0
    %1473 = vmatpush1.bf16.msra.mxu0 0
    %1474 = vmatprep.subr.bf16.mxu0 0
    %1475 = vmatpush1.bf16.msra.mxu0 0
    %1476 = vmatprep.subr.bf16.mxu0 0
    %1477 = vmatpush1.bf16.msra.mxu0 0
    %1478 = vmatprep.subr.bf16.mxu0 0
    %1479 = vmatpush1.bf16.msra.mxu0 0
    %1480 = vmatprep.subr.bf16.mxu0 0
    %1481 = vmatpush1.bf16.msra.mxu0 0
    %1482 = vmatprep.subr.bf16.mxu0 0
    %1483 = vmatpush1.bf16.msra.mxu0 0
    %1484 = vmatprep.subr.bf16.mxu0 0
    %1485 = vmatpush1.bf16.msra.mxu0 0
    %1486 = vmatprep.mubr.bf16.mxu0 0
    %1487 = vmatmul.mubr.bf16.gmra.mrb[0].mxu0 %v1452
    %v1488 = vpop.f32.mrb[0].mxu0
    %v1489 = vadd.f32 0.0, %v1488
    %v1490 = vpop.f32.mrb[0].mxu0
    %v1491 = vpop.f32.mrb[0].mxu0
    %v1492 = vadd.f32 0.0, %v1491
    %v1493 = vpop.f32.mrb[0].mxu0
    %1494 = vdwg.mxu0
    %1499 = vrot.lane.b32.xlu0 %v1269, 32
    %v1500 = vpop.permute.xlu0 %1499
    %1501 = vrot.lane.b32.xlu0 %v1272, 32
    %v1502 = vpop.permute.xlu0 %1501
    %1503 = vrot.lane.b32.xlu0 %v1313, 32
    %v1504 = vpop.permute.xlu0 %1503
    %1505 = vrot.lane.b32.xlu0 %v1316, 32
    %v1506 = vpop.permute.xlu0 %1505
    %1515 = vrot.lane.b32.xlu0 %v1357, 64
    %v1516 = vpop.permute.xlu0 %1515
    %1517 = vrot.lane.b32.xlu0 %v1360, 64
    %v1518 = vpop.permute.xlu0 %1517
    %1519 = vrot.lane.b32.xlu0 %v1401, 64
    %v1520 = vpop.permute.xlu0 %1519
    %1521 = vrot.lane.b32.xlu0 %v1404, 64
    %v1522 = vpop.permute.xlu0 %1521
    %1531 = vrot.lane.b32.xlu0 %v1445, 96
    %v1532 = vpop.permute.xlu0 %1531
    %1533 = vrot.lane.b32.xlu0 %v1448, 96
    %v1534 = vpop.permute.xlu0 %1533
    %1535 = vrot.lane.b32.xlu0 %v1489, 96
    %v1536 = vpop.permute.xlu0 %1535
    %1537 = vrot.lane.b32.xlu0 %v1492, 96
    %v1538 = vpop.permute.xlu0 %1537
    %v1543 = vsel %vm549, %v1181, %v1500
    %v1544 = vsel %vm549, %v1184, %v1502
    %v1545 = vsel %vm549, %v1225, %v1504
    %v1546 = vsel %vm549, %v1228, %v1506
    %vm1547 = vcmask 523264
    %v1548 = vsel %vm1547, %v1543, %v1516
    %v1549 = vsel %vm1547, %v1544, %v1518
    %v1550 = vsel %vm1547, %v1545, %v1520
    %v1551 = vsel %vm1547, %v1546, %v1522
    %vm1552 = vcmask 785408
    %v1553 = vsel %vm1552, %v1548, %v1532
    %v1554 = vsel %vm1552, %v1549, %v1534
    %v1555 = vsel %vm1552, %v1550, %v1536
    %v1556 = vsel %vm1552, %v1551, %v1538
    %v1557 = vpack.c.bf16 %v1554, %v1553
    %v1558 = vpack.c.bf16 %v1556, %v1555
    %v1559 = vld [vmem:[#allocation8] sm:$0xf]
    %v1560 = vld [vmem:[#allocation8 + $0x4] sm:$0xf]
    %v1561 = vld [vmem:[#allocation8 + $0x8] sm:$0xf]
    %v1562 = vld [vmem:[#allocation8 + $0xc] sm:$0xf]
    %v1563 = vld [vmem:[#allocation8 + $0x10] sm:$0xf]
    %v1564 = vld [vmem:[#allocation8 + $0x14] sm:$0xf]
    %v1565 = vld [vmem:[#allocation8 + $0x18] sm:$0xf]
    %v1566 = vld [vmem:[#allocation8 + $0x1c] sm:$0xf]
    %v1567 = vld [vmem:[#allocation8 + $0x20] sm:$0xf]
    %v1568 = vld [vmem:[#allocation8 + $0x24] sm:$0xf]
    %v1569 = vld [vmem:[#allocation8 + $0x28] sm:$0xf]
    %v1570 = vld [vmem:[#allocation8 + $0x2c] sm:$0xf]
    %v1571 = vld [vmem:[#allocation8 + $0x30] sm:$0xf]
    %v1572 = vld [vmem:[#allocation8 + $0x34] sm:$0xf]
    %v1573 = vld [vmem:[#allocation8 + $0x38] sm:$0xf]
    %v1574 = vld [vmem:[#allocation8 + $0x3c] sm:$0xf]
    %v1575 = vld [vmem:[%s5] sm:$0x1]
    %v1577 = vlaneseq
    %v1578 = vshrl.u32 %v1577, 7
    %v1579 = vsub.s32 0, %v1578
    %v1580 = vrot.slane %v1575, %v1579
    %v1598 = vunpack.c.l.b16 %v1559
    %v1599 = vunpack.c.l.b16 %v1560
    %v1600 = vunpack.c.l.b16 %v1561
    %v1601 = vunpack.c.l.b16 %v1562
    %v1602 = vunpack.c.l.b16 %v1563
    %v1603 = vunpack.c.l.b16 %v1564
    %v1604 = vunpack.c.l.b16 %v1565
    %v1605 = vunpack.c.l.b16 %v1566
    %v1606 = vunpack.c.l.b16 %v1567
    %v1607 = vunpack.c.l.b16 %v1568
    %v1608 = vunpack.c.l.b16 %v1569
    %v1609 = vunpack.c.l.b16 %v1570
    %v1610 = vunpack.c.l.b16 %v1571
    %v1611 = vunpack.c.l.b16 %v1572
    %v1612 = vunpack.c.l.b16 %v1573
    %v1613 = vunpack.c.l.b16 %v1574
    %v1614 = vpack.c.b16 %v1599, %v1598
    %v1615 = vpack.c.b16 %v1601, %v1600
    %v1616 = vpack.c.b16 %v1603, %v1602
    %v1617 = vpack.c.b16 %v1605, %v1604
    %v1618 = vpack.c.b16 %v1607, %v1606
    %v1619 = vpack.c.b16 %v1609, %v1608
    %v1620 = vpack.c.b16 %v1611, %v1610
    %v1621 = vpack.c.b16 %v1613, %v1612
    %1630 = vmatprep.subr.bf16.mxu0 0
    %1631 = vmatpush1.bf16.msra.mxu0 %v1614
    %1632 = vmatprep.subr.bf16.mxu0 0
    %1633 = vmatpush1.bf16.msra.mxu0 %v1615
    %1634 = vmatprep.subr.bf16.mxu0 0
    %1635 = vmatpush1.bf16.msra.mxu0 %v1616
    %1636 = vmatprep.subr.bf16.mxu0 0
    %1637 = vmatpush1.bf16.msra.mxu0 %v1617
    %1638 = vmatprep.subr.bf16.mxu0 0
    %1639 = vmatpush1.bf16.msra.mxu0 %v1618
    %1640 = vmatprep.subr.bf16.mxu0 0
    %1641 = vmatpush1.bf16.msra.mxu0 %v1619
    %1642 = vmatprep.subr.bf16.mxu0 0
    %1643 = vmatpush1.bf16.msra.mxu0 %v1620
    %1644 = vmatprep.subr.bf16.mxu0 0
    %1645 = vmatpush1.bf16.msra.mxu0 %v1621
    %1646 = vmatprep.subr.bf16.mxu0 0
    %1647 = vmatpush1.bf16.msra.mxu0 0
    %1648 = vmatprep.subr.bf16.mxu0 0
    %1649 = vmatpush1.bf16.msra.mxu0 0
    %1650 = vmatprep.subr.bf16.mxu0 0
    %1651 = vmatpush1.bf16.msra.mxu0 0
    %1652 = vmatprep.subr.bf16.mxu0 0
    %1653 = vmatpush1.bf16.msra.mxu0 0
    %1654 = vmatprep.subr.bf16.mxu0 0
    %1655 = vmatpush1.bf16.msra.mxu0 0
    %1656 = vmatprep.subr.bf16.mxu0 0
    %1657 = vmatpush1.bf16.msra.mxu0 0
    %1658 = vmatprep.subr.bf16.mxu0 0
    %1659 = vmatpush1.bf16.msra.mxu0 0
    %1660 = vmatprep.subr.bf16.mxu0 0
    %1661 = vmatpush1.bf16.msra.mxu0 0
    %1662 = vmatprep.mubr.bf16.mxu0 0
    %1663 = vmatmul.mubr.bf16.gmra.mrb[0].mxu0 %v1557
    %v1664 = vpop.f32.mrb[0].mxu0
    %v1665 = vadd.f32 %v1580, %v1664
    %v1666 = vpop.f32.mrb[0].mxu0
    %v1667 = vpop.f32.mrb[0].mxu0
    %v1668 = vadd.f32 %v1580, %v1667
    %v1669 = vpop.f32.mrb[0].mxu0
    %1670 = vmatprep.mubr.bf16.mxu0 0
    %1671 = vmatmul.mubr.bf16.gmra.mrb[0].mxu0 %v1558
    %v1672 = vpop.f32.mrb[0].mxu0
    %v1673 = vadd.f32 %v1580, %v1672
    %v1674 = vpop.f32.mrb[0].mxu0
    %v1675 = vpop.f32.mrb[0].mxu0
    %v1676 = vadd.f32 %v1580, %v1675
    %v1677 = vpop.f32.mrb[0].mxu0
    %1678 = vdwg.mxu0
    %v1679 = vadd.f32 %v187, %v1665
    %v1680 = vadd.f32 %v188, %v1668
    %v1681 = vadd.f32 %v189, %v1673
    %v1682 = vadd.f32 %v190, %v1676
    %1683 = vadd.xlane.f32.xlu0 %v1679
    %v1684 = vpop.xlane.xlu0 %1683
    %1685 = vadd.xlane.f32.xlu0 %v1680
    %v1686 = vpop.xlane.xlu0 %1685
    %1687 = vadd.xlane.f32.xlu0 %v1681
    %v1688 = vpop.xlane.xlu0 %1687
    %1689 = vadd.xlane.f32.xlu0 %v1682
    %v1690 = vpop.xlane.xlu0 %1689
    %v1691 = vrcp.pop 128.0
    %v1692 = vmul.f32 %v1684, %v1691
    %v1693 = vmul.f32 %v1686, %v1691
    %v1694 = vmul.f32 %v1688, %v1691
    %v1695 = vmul.f32 %v1690, %v1691
    %v1696 = vsub.f32 %v1679, %v1692
    %v1697 = vsub.f32 %v1680, %v1693
    %v1698 = vsub.f32 %v1681, %v1694
    %v1699 = vsub.f32 %v1682, %v1695
    %v1700 = vmul.f32 %v1696, %v1696
    %v1701 = vmul.f32 %v1697, %v1697
    %v1702 = vmul.f32 %v1698, %v1698
    %v1703 = vmul.f32 %v1699, %v1699
    %1704 = vadd.xlane.f32.xlu0 %v1700
    %v1705 = vpop.xlane.xlu0 %1704
    %1706 = vadd.xlane.f32.xlu0 %v1701
    %v1707 = vpop.xlane.xlu0 %1706
    %1708 = vadd.xlane.f32.xlu0 %v1702
    %v1709 = vpop.xlane.xlu0 %1708
    %1710 = vadd.xlane.f32.xlu0 %v1703
    %v1711 = vpop.xlane.xlu0 %1710
    %v1712 = vmul.f32 %v1705, %v1691
    %v1713 = vmul.f32 %v1707, %v1691
    %v1714 = vmul.f32 %v1709, %v1691
    %v1715 = vmul.f32 %v1711, %v1691
    %v1716 = vadd.f32 %v1712, 1e-05
    %v1717 = vadd.f32 %v1713, 1e-05
    %v1718 = vadd.f32 %v1714, 1e-05
    %v1719 = vadd.f32 %v1715, 1e-05
    %v1720 = vrsqrt.pop %v1716
    %v1721 = vrsqrt.pop %v1717
    %v1722 = vrsqrt.pop %v1718
    %v1723 = vrsqrt.pop %v1719
    %v1724 = vmul.f32 %v1696, %v1720
    %v1725 = vmul.f32 %v1697, %v1721
    %v1726 = vmul.f32 %v1698, %v1722
    %v1727 = vmul.f32 %v1699, %v1723
    %v1728 = vld [vmem:[%s16] sm:$0x1]
    %v1729 = vlaneseq
    %v1730 = vshrl.u32 %v1729, 7
    %v1731 = vsub.s32 0, %v1730
    %v1732 = vrot.slane %v1728, %v1731
    %v1733 = vmul.f32 %v1724, %v1732
    %v1734 = vmul.f32 %v1725, %v1732
    %v1735 = vmul.f32 %v1726, %v1732
    %v1736 = vmul.f32 %v1727, %v1732
    %v1737 = vld [vmem:[%s17] sm:$0x1]
    %v1738 = vlaneseq
    %v1739 = vshrl.u32 %v1738, 7
    %v1740 = vsub.s32 0, %v1739
    %v1741 = vrot.slane %v1737, %v1740
    %v1742 = vadd.f32 %v1733, %v1741
    %v1743 = vadd.f32 %v1734, %v1741
    %v1744 = vadd.f32 %v1735, %v1741
    %v1745 = vadd.f32 %v1736, %v1741
    %v1746 = vpack.c.bf16 %v1743, %v1742
    %v1747 = vpack.c.bf16 %v1745, %v1744
    %v1748 = vld [vmem:[#allocation10] sm:$0xf]
    %v1749 = vld [vmem:[#allocation10 + $0x4] sm:$0xf]
    %v1750 = vld [vmem:[#allocation10 + $0x8] sm:$0xf]
    %v1751 = vld [vmem:[#allocation10 + $0xc] sm:$0xf]
    %v1752 = vld [vmem:[#allocation10 + $0x10] sm:$0xf]
    %v1753 = vld [vmem:[#allocation10 + $0x14] sm:$0xf]
    %v1754 = vld [vmem:[#allocation10 + $0x18] sm:$0xf]
    %v1755 = vld [vmem:[#allocation10 + $0x1c] sm:$0xf]
    %v1756 = vld [vmem:[#allocation10 + $0x20] sm:$0xf]
    %v1757 = vld [vmem:[#allocation10 + $0x24] sm:$0xf]
    %v1758 = vld [vmem:[#allocation10 + $0x28] sm:$0xf]
    %v1759 = vld [vmem:[#allocation10 + $0x2c] sm:$0xf]
    %v1760 = vld [vmem:[#allocation10 + $0x30] sm:$0xf]
    %v1761 = vld [vmem:[#allocation10 + $0x34] sm:$0xf]
    %v1762 = vld [vmem:[#allocation10 + $0x38] sm:$0xf]
    %v1763 = vld [vmem:[#allocation10 + $0x3c] sm:$0xf]
    %v1764 = vld [vmem:[%s7] sm:$0x1]
    %v1766 = vlaneseq
    %v1767 = vshrl.u32 %v1766, 7
    %v1768 = vsub.s32 0, %v1767
    %v1769 = vrot.slane %v1764, %v1768
    %v1787 = vunpack.c.l.b16 %v1748
    %v1788 = vunpack.c.l.b16 %v1749
    %v1789 = vunpack.c.l.b16 %v1750
    %v1790 = vunpack.c.l.b16 %v1751
    %v1791 = vunpack.c.l.b16 %v1752
    %v1792 = vunpack.c.l.b16 %v1753
    %v1793 = vunpack.c.l.b16 %v1754
    %v1794 = vunpack.c.l.b16 %v1755
    %v1795 = vunpack.c.l.b16 %v1756
    %v1796 = vunpack.c.l.b16 %v1757
    %v1797 = vunpack.c.l.b16 %v1758
    %v1798 = vunpack.c.l.b16 %v1759
    %v1799 = vunpack.c.l.b16 %v1760
    %v1800 = vunpack.c.l.b16 %v1761
    %v1801 = vunpack.c.l.b16 %v1762
    %v1802 = vunpack.c.l.b16 %v1763
    %v1803 = vpack.c.b16 %v1788, %v1787
    %v1804 = vpack.c.b16 %v1790, %v1789
    %v1805 = vpack.c.b16 %v1792, %v1791
    %v1806 = vpack.c.b16 %v1794, %v1793
    %v1807 = vpack.c.b16 %v1796, %v1795
    %v1808 = vpack.c.b16 %v1798, %v1797
    %v1809 = vpack.c.b16 %v1800, %v1799
    %v1810 = vpack.c.b16 %v1802, %v1801
    %1819 = vmatprep.subr.bf16.mxu0 0
    %1820 = vmatpush1.bf16.msra.mxu0 %v1803
    %1821 = vmatprep.subr.bf16.mxu0 0
    %1822 = vmatpush1.bf16.msra.mxu0 %v1804
    %1823 = vmatprep.subr.bf16.mxu0 0
    %1824 = vmatpush1.bf16.msra.mxu0 %v1805
    %1825 = vmatprep.subr.bf16.mxu0 0
    %1826 = vmatpush1.bf16.msra.mxu0 %v1806
    %1827 = vmatprep.subr.bf16.mxu0 0
    %1828 = vmatpush1.bf16.msra.mxu0 %v1807
    %1829 = vmatprep.subr.bf16.mxu0 0
    %1830 = vmatpush1.bf16.msra.mxu0 %v1808
    %1831 = vmatprep.subr.bf16.mxu0 0
    %1832 = vmatpush1.bf16.msra.mxu0 %v1809
    %1833 = vmatprep.subr.bf16.mxu0 0
    %1834 = vmatpush1.bf16.msra.mxu0 %v1810
    %1835 = vmatprep.subr.bf16.mxu0 0
    %1836 = vmatpush1.bf16.msra.mxu0 0
    %1837 = vmatprep.subr.bf16.mxu0 0
    %1838 = vmatpush1.bf16.msra.mxu0 0
    %1839 = vmatprep.subr.bf16.mxu0 0
    %1840 = vmatpush1.bf16.msra.mxu0 0
    %1841 = vmatprep.subr.bf16.mxu0 0
    %1842 = vmatpush1.bf16.msra.mxu0 0
    %1843 = vmatprep.subr.bf16.mxu0 0
    %1844 = vmatpush1.bf16.msra.mxu0 0
    %1845 = vmatprep.subr.bf16.mxu0 0
    %1846 = vmatpush1.bf16.msra.mxu0 0
    %1847 = vmatprep.subr.bf16.mxu0 0
    %1848 = vmatpush1.bf16.msra.mxu0 0
    %1849 = vmatprep.subr.bf16.mxu0 0
    %1850 = vmatpush1.bf16.msra.mxu0 0
    %1851 = vmatprep.mubr.bf16.mxu0 0
    %1852 = vmatmul.mubr.bf16.gmra.mrb[0].mxu0 %v1746
    %v1853 = vpop.f32.mrb[0].mxu0
    %v1854 = vadd.f32 %v1769, %v1853
    %v1855 = vpop.f32.mrb[0].mxu0
    %v1856 = vpop.f32.mrb[0].mxu0
    %v1857 = vadd.f32 %v1769, %v1856
    %v1858 = vpop.f32.mrb[0].mxu0
    %1859 = vmatprep.mubr.bf16.mxu0 0
    %1860 = vmatmul.mubr.bf16.gmra.mrb[0].mxu0 %v1747
    %v1861 = vpop.f32.mrb[0].mxu0
    %v1862 = vadd.f32 %v1769, %v1861
    %v1863 = vpop.f32.mrb[0].mxu0
    %v1864 = vpop.f32.mrb[0].mxu0
    %v1865 = vadd.f32 %v1769, %v1864
    %v1866 = vpop.f32.mrb[0].mxu0
    %1867 = vdwg.mxu0
    %v1868 = vpack.c.bf16 %v1857, %v1854
    %v1869 = vpack.c.bf16 %v1865, %v1862
    %v1870 = vld [vmem:[#allocation11] sm:$0xff]
    %v1871 = vld [vmem:[#allocation11 + $0x8] sm:$0xff]
    %v1872 = vld [vmem:[#allocation11 + $0x10] sm:$0xff]
    %v1873 = vld [vmem:[#allocation11 + $0x18] sm:$0xff]
    %v1874 = vld [vmem:[#allocation11 + $0x20] sm:$0xff]
    %v1875 = vld [vmem:[#allocation11 + $0x28] sm:$0xff]
    %v1876 = vld [vmem:[#allocation11 + $0x30] sm:$0xff]
    %v1877 = vld [vmem:[#allocation11 + $0x38] sm:$0xff]
    %v1878 = vld [vmem:[#allocation11 + $0x40] sm:$0xff]
    %v1879 = vld [vmem:[#allocation11 + $0x48] sm:$0xff]
    %v1880 = vld [vmem:[#allocation11 + $0x50] sm:$0xff]
    %v1881 = vld [vmem:[#allocation11 + $0x58] sm:$0xff]
    %v1882 = vld [vmem:[#allocation11 + $0x60] sm:$0xff]
    %v1883 = vld [vmem:[#allocation11 + $0x68] sm:$0xff]
    %v1884 = vld [vmem:[#allocation11 + $0x70] sm:$0xff]
    %v1885 = vld [vmem:[#allocation11 + $0x78] sm:$0xff]
    %v1886 = vld [vmem:[%s9] sm:$0x3]
    %v1888 = vlaneseq
    %v1889 = vshrl.u32 %v1888, 7
    %v1890 = vsub.s32 0, %v1889
    %v1891 = vrot.slane %v1886, %v1890
    %v1892 = vlaneseq
    %v1893 = vshrl.u32 %v1892, 7
    %v1894 = vsub.s32 1, %v1893
    %v1895 = vrot.slane %v1886, %v1894
    %v1902 = vunpack.c.l.b16 %v191
    %v1903 = vunpack.c.l.b16 %v192
    %v1904 = vunpack.c.l.b16 %v193
    %v1905 = vunpack.c.l.b16 %v194
    %v1906 = vpack.c.b16 %v1903, %v1902
    %v1907 = vpack.c.b16 %v1905, %v1904
    %v1926 = vunpack.c.l.b16 %v1870
    %v1927 = vunpack.c.h.b16 %v1870
    %v1928 = vunpack.c.l.b16 %v1871
    %v1929 = vunpack.c.h.b16 %v1871
    %v1930 = vunpack.c.l.b16 %v1872
    %v1931 = vunpack.c.h.b16 %v1872
    %v1932 = vunpack.c.l.b16 %v1873
    %v1933 = vunpack.c.h.b16 %v1873
    %v1934 = vunpack.c.l.b16 %v1874
    %v1935 = vunpack.c.h.b16 %v1874
    %v1936 = vunpack.c.l.b16 %v1875
    %v1937 = vunpack.c.h.b16 %v1875
    %v1938 = vunpack.c.l.b16 %v1876
    %v1939 = vunpack.c.h.b16 %v1876
    %v1940 = vunpack.c.l.b16 %v1877
    %v1941 = vunpack.c.h.b16 %v1877
    %v1942 = vunpack.c.l.b16 %v1878
    %v1943 = vunpack.c.h.b16 %v1878
    %v1944 = vunpack.c.l.b16 %v1879
    %v1945 = vunpack.c.h.b16 %v1879
    %v1946 = vunpack.c.l.b16 %v1880
    %v1947 = vunpack.c.h.b16 %v1880
    %v1948 = vunpack.c.l.b16 %v1881
    %v1949 = vunpack.c.h.b16 %v1881
    %v1950 = vunpack.c.l.b16 %v1882
    %v1951 = vunpack.c.h.b16 %v1882
    %v1952 = vunpack.c.l.b16 %v1883
    %v1953 = vunpack.c.h.b16 %v1883
    %v1954 = vunpack.c.l.b16 %v1884
    %v1955 = vunpack.c.h.b16 %v1884
    %v1956 = vunpack.c.l.b16 %v1885
    %v1957 = vunpack.c.h.b16 %v1885
    %v1958 = vpack.c.b16 %v1928, %v1926
    %v1959 = vpack.c.b16 %v1929, %v1927
    %v1960 = vpack.c.b16 %v1932, %v1930
    %v1961 = vpack.c.b16 %v1933, %v1931
    %v1962 = vpack.c.b16 %v1936, %v1934
    %v1963 = vpack.c.b16 %v1937, %v1935
    %v1964 = vpack.c.b16 %v1940, %v1938
    %v1965 = vpack.c.b16 %v1941, %v1939
    %v1966 = vpack.c.b16 %v1944, %v1942
    %v1967 = vpack.c.b16 %v1945, %v1943
    %v1968 = vpack.c.b16 %v1948, %v1946
    %v1969 = vpack.c.b16 %v1949, %v1947
    %v1970 = vpack.c.b16 %v1952, %v1950
    %v1971 = vpack.c.b16 %v1953, %v1951
    %v1972 = vpack.c.b16 %v1956, %v1954
    %v1973 = vpack.c.b16 %v1957, %v1955
    %1990 = vmatprep.subr.bf16.mxu0 %v1959
    %1991 = vmatpush1.bf16.msra.mxu0 %v1958
    %1992 = vmatprep.subr.bf16.mxu0 %v1961
    %1993 = vmatpush1.bf16.msra.mxu0 %v1960
    %1994 = vmatprep.subr.bf16.mxu0 %v1963
    %1995 = vmatpush1.bf16.msra.mxu0 %v1962
    %1996 = vmatprep.subr.bf16.mxu0 %v1965
    %1997 = vmatpush1.bf16.msra.mxu0 %v1964
    %1998 = vmatprep.subr.bf16.mxu0 %v1967
    %1999 = vmatpush1.bf16.msra.mxu0 %v1966
    %2000 = vmatprep.subr.bf16.mxu0 %v1969
    %2001 = vmatpush1.bf16.msra.mxu0 %v1968
    %2002 = vmatprep.subr.bf16.mxu0 %v1971
    %2003 = vmatpush1.bf16.msra.mxu0 %v1970
    %2004 = vmatprep.subr.bf16.mxu0 %v1973
    %2005 = vmatpush1.bf16.msra.mxu0 %v1972
    %2006 = vmatprep.subr.bf16.mxu0 0
    %2007 = vmatpush1.bf16.msra.mxu0 0
    %2008 = vmatprep.subr.bf16.mxu0 0
    %2009 = vmatpush1.bf16.msra.mxu0 0
    %2010 = vmatprep.subr.bf16.mxu0 0
    %2011 = vmatpush1.bf16.msra.mxu0 0
    %2012 = vmatprep.subr.bf16.mxu0 0
    %2013 = vmatpush1.bf16.msra.mxu0 0
    %2014 = vmatprep.subr.bf16.mxu0 0
    %2015 = vmatpush1.bf16.msra.mxu0 0
    %2016 = vmatprep.subr.bf16.mxu0 0
    %2017 = vmatpush1.bf16.msra.mxu0 0
    %2018 = vmatprep.subr.bf16.mxu0 0
    %2019 = vmatpush1.bf16.msra.mxu0 0
    %2020 = vmatprep.subr.bf16.mxu0 0
    %2021 = vmatpush1.bf16.msra.mxu0 0
    %2022 = vmatprep.mubr.bf16.mxu0 0
    %2023 = vmatmul.mubr.bf16.gmra.mrb[0].mxu0 %v1906
    %v2024 = vpop.f32.mrb[0].mxu0
    %v2025 = vadd.f32 %v1891, %v2024
    %v2026 = vpop.f32.mrb[0].mxu0
    %v2027 = vadd.f32 %v1895, %v2026
    %v2028 = vpop.f32.mrb[0].mxu0
    %v2029 = vadd.f32 %v1891, %v2028
    %v2030 = vpop.f32.mrb[0].mxu0
    %v2031 = vadd.f32 %v1895, %v2030
    %2032 = vmatprep.mubr.bf16.mxu0 0
    %2033 = vmatmul.mubr.bf16.gmra.mrb[0].mxu0 %v1907
    %v2034 = vpop.f32.mrb[0].mxu0
    %v2035 = vadd.f32 %v1891, %v2034
    %v2036 = vpop.f32.mrb[0].mxu0
    %v2037 = vadd.f32 %v1895, %v2036
    %v2038 = vpop.f32.mrb[0].mxu0
    %v2039 = vadd.f32 %v1891, %v2038
    %v2040 = vpop.f32.mrb[0].mxu0
    %v2041 = vadd.f32 %v1895, %v2040
    %2042 = vdwg.mxu0
    %v2043 = vpack.c.bf16 %v2029, %v2025
    %v2044 = vpack.c.bf16 %v2031, %v2027
    %v2045 = vpack.c.bf16 %v2039, %v2035
    %v2046 = vpack.c.bf16 %v2041, %v2037
    %2049 = vrot.lane.b32.xlu0 %v1868, 96
    %v2050 = vpop.permute.xlu0 %2049
    %2051 = vrot.lane.b32.xlu0 %v1869, 96
    %v2052 = vpop.permute.xlu0 %2051
    %2053 = vrot.lane.b32.xlu0 %v1868, 64
    %v2054 = vpop.permute.xlu0 %2053
    %2055 = vrot.lane.b32.xlu0 %v1869, 64
    %v2056 = vpop.permute.xlu0 %2055
    %2057 = vrot.lane.b32.xlu0 %v1868, 32
    %v2058 = vpop.permute.xlu0 %2057
    %2059 = vrot.lane.b32.xlu0 %v1869, 32
    %v2060 = vpop.permute.xlu0 %2059
    %2063 = vrot.lane.b32.xlu0 %v2043, 96
    %v2064 = vpop.permute.xlu0 %2063
    %2065 = vrot.lane.b32.xlu0 %v2045, 96
    %v2066 = vpop.permute.xlu0 %2065
    %2067 = vrot.lane.b32.xlu0 %v2043, 64
    %v2068 = vpop.permute.xlu0 %2067
    %2069 = vrot.lane.b32.xlu0 %v2045, 64
    %v2070 = vpop.permute.xlu0 %2069
    %2071 = vrot.lane.b32.xlu0 %v2043, 32
    %v2072 = vpop.permute.xlu0 %2071
    %2073 = vrot.lane.b32.xlu0 %v2045, 32
    %v2074 = vpop.permute.xlu0 %2073
    %2077 = vrot.lane.b32.xlu0 %v2044, 96
    %v2078 = vpop.permute.xlu0 %2077
    %2079 = vrot.lane.b32.xlu0 %v2046, 96
    %v2080 = vpop.permute.xlu0 %2079
    %2083 = vrot.lane.b32.xlu0 %v2044, 64
    %v2084 = vpop.permute.xlu0 %2083
    %2085 = vrot.lane.b32.xlu0 %v2046, 64
    %v2086 = vpop.permute.xlu0 %2085
    %2089 = vrot.lane.b32.xlu0 %v2044, 32
    %v2090 = vpop.permute.xlu0 %2089
    %2091 = vrot.lane.b32.xlu0 %v2046, 32
    %v2092 = vpop.permute.xlu0 %2091
    %v2096 = vsel %vm549, %v1868, 0
    %v2099 = vsel %vm549, %v2043, 0
    %2101 = vmatprep.subr.bf16.mxu0 0
    %2102 = vmatpush1.bf16.xpose.msra.mxu0 %v2099
    %2103 = vmatprep.subr.bf16.mxu0 0
    %2104 = vmatpush1.bf16.xpose.msra.mxu0 0
    %2105 = vmatprep.subr.bf16.mxu0 0
    %2106 = vmatpush1.bf16.xpose.msra.mxu0 0
    %2107 = vmatprep.subr.bf16.mxu0 0
    %2108 = vmatpush1.bf16.xpose.msra.mxu0 0
    %2109 = vmatprep.subr.bf16.mxu0 0
    %2110 = vmatpush1.bf16.xpose.msra.mxu0 0
    %2111 = vmatprep.subr.bf16.mxu0 0
    %2112 = vmatpush1.bf16.xpose.msra.mxu0 0
    %2113 = vmatprep.subr.bf16.mxu0 0
    %2114 = vmatpush1.bf16.xpose.msra.mxu0 0
    %2115 = vmatprep.subr.bf16.mxu0 0
    %2116 = vmatpush1.bf16.xpose.msra.mxu0 0
    %2117 = vmatprep.subr.bf16.mxu0 0
    %2118 = vmatpush1.bf16.xpose.msra.mxu0 0
    %2119 = vmatprep.subr.bf16.mxu0 0
    %2120 = vmatpush1.bf16.xpose.msra.mxu0 0
    %2121 = vmatprep.subr.bf16.mxu0 0
    %2122 = vmatpush1.bf16.xpose.msra.mxu0 0
    %2123 = vmatprep.subr.bf16.mxu0 0
    %2124 = vmatpush1.bf16.xpose.msra.mxu0 0
    %2125 = vmatprep.subr.bf16.mxu0 0
    %2126 = vmatpush1.bf16.xpose.msra.mxu0 0
    %2127 = vmatprep.subr.bf16.mxu0 0
    %2128 = vmatpush1.bf16.xpose.msra.mxu0 0
    %2129 = vmatprep.subr.bf16.mxu0 0
    %2130 = vmatpush1.bf16.xpose.msra.mxu0 0
    %2131 = vmatprep.subr.bf16.mxu0 0
    %2132 = vmatpush1.bf16.xpose.msra.mxu0 0
    %2133 = vmatprep.mubr.bf16.mxu0 0
    %2134 = vmatmul.mubr.bf16.gmra.mrb[0].mxu0 %v2096
    %v2135 = vpop.f32.mrb[0].mxu0
    %v2136 = vadd.f32 0.0, %v2135
    %v2137 = vpop.f32.mrb[0].mxu0
    %v2138 = vpop.f32.mrb[0].mxu0
    %v2139 = vadd.f32 0.0, %v2138
    %v2140 = vpop.f32.mrb[0].mxu0
    %2141 = vdwg.mxu0
    %v2143 = vsel %vm549, %v1869, 0
    %v2146 = vsel %vm549, %v2045, 0
    %2148 = vmatprep.subr.bf16.mxu0 0
    %2149 = vmatpush1.bf16.xpose.msra.mxu0 %v2146
    %2150 = vmatprep.subr.bf16.mxu0 0
    %2151 = vmatpush1.bf16.xpose.msra.mxu0 0
    %2152 = vmatprep.subr.bf16.mxu0 0
    %2153 = vmatpush1.bf16.xpose.msra.mxu0 0
    %2154 = vmatprep.subr.bf16.mxu0 0
    %2155 = vmatpush1.bf16.xpose.msra.mxu0 0
    %2156 = vmatprep.subr.bf16.mxu0 0
    %2157 = vmatpush1.bf16.xpose.msra.mxu0 0
    %2158 = vmatprep.subr.bf16.mxu0 0
    %2159 = vmatpush1.bf16.xpose.msra.mxu0 0
    %2160 = vmatprep.subr.bf16.mxu0 0
    %2161 = vmatpush1.bf16.xpose.msra.mxu0 0
    %2162 = vmatprep.subr.bf16.mxu0 0
    %2163 = vmatpush1.bf16.xpose.msra.mxu0 0
    %2164 = vmatprep.subr.bf16.mxu0 0
    %2165 = vmatpush1.bf16.xpose.msra.mxu0 0
    %2166 = vmatprep.subr.bf16.mxu0 0
    %2167 = vmatpush1.bf16.xpose.msra.mxu0 0
    %2168 = vmatprep.subr.bf16.mxu0 0
    %2169 = vmatpush1.bf16.xpose.msra.mxu0 0
    %2170 = vmatprep.subr.bf16.mxu0 0
    %2171 = vmatpush1.bf16.xpose.msra.mxu0 0
    %2172 = vmatprep.subr.bf16.mxu0 0
    %2173 = vmatpush1.bf16.xpose.msra.mxu0 0
    %2174 = vmatprep.subr.bf16.mxu0 0
    %2175 = vmatpush1.bf16.xpose.msra.mxu0 0
    %2176 = vmatprep.subr.bf16.mxu0 0
    %2177 = vmatpush1.bf16.xpose.msra.mxu0 0
    %2178 = vmatprep.subr.bf16.mxu0 0
    %2179 = vmatpush1.bf16.xpose.msra.mxu0 0
    %2180 = vmatprep.mubr.bf16.mxu0 0
    %2181 = vmatmul.mubr.bf16.gmra.mrb[0].mxu0 %v2143
    %v2182 = vpop.f32.mrb[0].mxu0
    %v2183 = vadd.f32 0.0, %v2182
    %v2184 = vpop.f32.mrb[0].mxu0
    %v2185 = vpop.f32.mrb[0].mxu0
    %v2186 = vadd.f32 0.0, %v2185
    %v2187 = vpop.f32.mrb[0].mxu0
    %2188 = vdwg.mxu0
    %v2190 = vsel %vm549, %v2050, 0
    %v2193 = vsel %vm549, %v2064, 0
    %2195 = vmatprep.subr.bf16.mxu0 0
    %2196 = vmatpush1.bf16.xpose.msra.mxu0 %v2193
    %2197 = vmatprep.subr.bf16.mxu0 0
    %2198 = vmatpush1.bf16.xpose.msra.mxu0 0
    %2199 = vmatprep.subr.bf16.mxu0 0
    %2200 = vmatpush1.bf16.xpose.msra.mxu0 0
    %2201 = vmatprep.subr.bf16.mxu0 0
    %2202 = vmatpush1.bf16.xpose.msra.mxu0 0
    %2203 = vmatprep.subr.bf16.mxu0 0
    %2204 = vmatpush1.bf16.xpose.msra.mxu0 0
    %2205 = vmatprep.subr.bf16.mxu0 0
    %2206 = vmatpush1.bf16.xpose.msra.mxu0 0
    %2207 = vmatprep.subr.bf16.mxu0 0
    %2208 = vmatpush1.bf16.xpose.msra.mxu0 0
    %2209 = vmatprep.subr.bf16.mxu0 0
    %2210 = vmatpush1.bf16.xpose.msra.mxu0 0
    %2211 = vmatprep.subr.bf16.mxu0 0
    %2212 = vmatpush1.bf16.xpose.msra.mxu0 0
    %2213 = vmatprep.subr.bf16.mxu0 0
    %2214 = vmatpush1.bf16.xpose.msra.mxu0 0
    %2215 = vmatprep.subr.bf16.mxu0 0
    %2216 = vmatpush1.bf16.xpose.msra.mxu0 0
    %2217 = vmatprep.subr.bf16.mxu0 0
    %2218 = vmatpush1.bf16.xpose.msra.mxu0 0
    %2219 = vmatprep.subr.bf16.mxu0 0
    %2220 = vmatpush1.bf16.xpose.msra.mxu0 0
    %2221 = vmatprep.subr.bf16.mxu0 0
    %2222 = vmatpush1.bf16.xpose.msra.mxu0 0
    %2223 = vmatprep.subr.bf16.mxu0 0
    %2224 = vmatpush1.bf16.xpose.msra.mxu0 0
    %2225 = vmatprep.subr.bf16.mxu0 0
    %2226 = vmatpush1.bf16.xpose.msra.mxu0 0
    %2227 = vmatprep.mubr.bf16.mxu0 0
    %2228 = vmatmul.mubr.bf16.gmra.mrb[0].mxu0 %v2190
    %v2229 = vpop.f32.mrb[0].mxu0
    %v2230 = vadd.f32 0.0, %v2229
    %v2231 = vpop.f32.mrb[0].mxu0
    %v2232 = vpop.f32.mrb[0].mxu0
    %v2233 = vadd.f32 0.0, %v2232
    %v2234 = vpop.f32.mrb[0].mxu0
    %2235 = vdwg.mxu0
    %v2237 = vsel %vm549, %v2052, 0
    %v2240 = vsel %vm549, %v2066, 0
    %2242 = vmatprep.subr.bf16.mxu0 0
    %2243 = vmatpush1.bf16.xpose.msra.mxu0 %v2240
    %2244 = vmatprep.subr.bf16.mxu0 0
    %2245 = vmatpush1.bf16.xpose.msra.mxu0 0
    %2246 = vmatprep.subr.bf16.mxu0 0
    %2247 = vmatpush1.bf16.xpose.msra.mxu0 0
    %2248 = vmatprep.subr.bf16.mxu0 0
    %2249 = vmatpush1.bf16.xpose.msra.mxu0 0
    %2250 = vmatprep.subr.bf16.mxu0 0
    %2251 = vmatpush1.bf16.xpose.msra.mxu0 0
    %2252 = vmatprep.subr.bf16.mxu0 0
    %2253 = vmatpush1.bf16.xpose.msra.mxu0 0
    %2254 = vmatprep.subr.bf16.mxu0 0
    %2255 = vmatpush1.bf16.xpose.msra.mxu0 0
    %2256 = vmatprep.subr.bf16.mxu0 0
    %2257 = vmatpush1.bf16.xpose.msra.mxu0 0
    %2258 = vmatprep.subr.bf16.mxu0 0
    %2259 = vmatpush1.bf16.xpose.msra.mxu0 0
    %2260 = vmatprep.subr.bf16.mxu0 0
    %2261 = vmatpush1.bf16.xpose.msra.mxu0 0
    %2262 = vmatprep.subr.bf16.mxu0 0
    %2263 = vmatpush1.bf16.xpose.msra.mxu0 0
    %2264 = vmatprep.subr.bf16.mxu0 0
    %2265 = vmatpush1.bf16.xpose.msra.mxu0 0
    %2266 = vmatprep.subr.bf16.mxu0 0
    %2267 = vmatpush1.bf16.xpose.msra.mxu0 0
    %2268 = vmatprep.subr.bf16.mxu0 0
    %2269 = vmatpush1.bf16.xpose.msra.mxu0 0
    %2270 = vmatprep.subr.bf16.mxu0 0
    %2271 = vmatpush1.bf16.xpose.msra.mxu0 0
    %2272 = vmatprep.subr.bf16.mxu0 0
    %2273 = vmatpush1.bf16.xpose.msra.mxu0 0
    %2274 = vmatprep.mubr.bf16.mxu0 0
    %2275 = vmatmul.mubr.bf16.gmra.mrb[0].mxu0 %v2237
    %v2276 = vpop.f32.mrb[0].mxu0
    %v2277 = vadd.f32 0.0, %v2276
    %v2278 = vpop.f32.mrb[0].mxu0
    %v2279 = vpop.f32.mrb[0].mxu0
    %v2280 = vadd.f32 0.0, %v2279
    %v2281 = vpop.f32.mrb[0].mxu0
    %2282 = vdwg.mxu0
    %v2284 = vsel %vm549, %v2054, 0
    %v2287 = vsel %vm549, %v2068, 0
    %2289 = vmatprep.subr.bf16.mxu0 0
    %2290 = vmatpush1.bf16.xpose.msra.mxu0 %v2287
    %2291 = vmatprep.subr.bf16.mxu0 0
    %2292 = vmatpush1.bf16.xpose.msra.mxu0 0
    %2293 = vmatprep.subr.bf16.mxu0 0
    %2294 = vmatpush1.bf16.xpose.msra.mxu0 0
    %2295 = vmatprep.subr.bf16.mxu0 0
    %2296 = vmatpush1.bf16.xpose.msra.mxu0 0
    %2297 = vmatprep.subr.bf16.mxu0 0
    %2298 = vmatpush1.bf16.xpose.msra.mxu0 0
    %2299 = vmatprep.subr.bf16.mxu0 0
    %2300 = vmatpush1.bf16.xpose.msra.mxu0 0
    %2301 = vmatprep.subr.bf16.mxu0 0
    %2302 = vmatpush1.bf16.xpose.msra.mxu0 0
    %2303 = vmatprep.subr.bf16.mxu0 0
    %2304 = vmatpush1.bf16.xpose.msra.mxu0 0
    %2305 = vmatprep.subr.bf16.mxu0 0
    %2306 = vmatpush1.bf16.xpose.msra.mxu0 0
    %2307 = vmatprep.subr.bf16.mxu0 0
    %2308 = vmatpush1.bf16.xpose.msra.mxu0 0
    %2309 = vmatprep.subr.bf16.mxu0 0
    %2310 = vmatpush1.bf16.xpose.msra.mxu0 0
    %2311 = vmatprep.subr.bf16.mxu0 0
    %2312 = vmatpush1.bf16.xpose.msra.mxu0 0
    %2313 = vmatprep.subr.bf16.mxu0 0
    %2314 = vmatpush1.bf16.xpose.msra.mxu0 0
    %2315 = vmatprep.subr.bf16.mxu0 0
    %2316 = vmatpush1.bf16.xpose.msra.mxu0 0
    %2317 = vmatprep.subr.bf16.mxu0 0
    %2318 = vmatpush1.bf16.xpose.msra.mxu0 0
    %2319 = vmatprep.subr.bf16.mxu0 0
    %2320 = vmatpush1.bf16.xpose.msra.mxu0 0
    %2321 = vmatprep.mubr.bf16.mxu0 0
    %2322 = vmatmul.mubr.bf16.gmra.mrb[0].mxu0 %v2284
    %v2323 = vpop.f32.mrb[0].mxu0
    %v2324 = vadd.f32 0.0, %v2323
    %v2325 = vpop.f32.mrb[0].mxu0
    %v2326 = vpop.f32.mrb[0].mxu0
    %v2327 = vadd.f32 0.0, %v2326
    %v2328 = vpop.f32.mrb[0].mxu0
    %2329 = vdwg.mxu0
    %v2331 = vsel %vm549, %v2056, 0
    %v2334 = vsel %vm549, %v2070, 0
    %2336 = vmatprep.subr.bf16.mxu0 0
    %2337 = vmatpush1.bf16.xpose.msra.mxu0 %v2334
    %2338 = vmatprep.subr.bf16.mxu0 0
    %2339 = vmatpush1.bf16.xpose.msra.mxu0 0
    %2340 = vmatprep.subr.bf16.mxu0 0
    %2341 = vmatpush1.bf16.xpose.msra.mxu0 0
    %2342 = vmatprep.subr.bf16.mxu0 0
    %2343 = vmatpush1.bf16.xpose.msra.mxu0 0
    %2344 = vmatprep.subr.bf16.mxu0 0
    %2345 = vmatpush1.bf16.xpose.msra.mxu0 0
    %2346 = vmatprep.subr.bf16.mxu0 0
    %2347 = vmatpush1.bf16.xpose.msra.mxu0 0
    %2348 = vmatprep.subr.bf16.mxu0 0
    %2349 = vmatpush1.bf16.xpose.msra.mxu0 0
    %2350 = vmatprep.subr.bf16.mxu0 0
    %2351 = vmatpush1.bf16.xpose.msra.mxu0 0
    %2352 = vmatprep.subr.bf16.mxu0 0
    %2353 = vmatpush1.bf16.xpose.msra.mxu0 0
    %2354 = vmatprep.subr.bf16.mxu0 0
    %2355 = vmatpush1.bf16.xpose.msra.mxu0 0
    %2356 = vmatprep.subr.bf16.mxu0 0
    %2357 = vmatpush1.bf16.xpose.msra.mxu0 0
    %2358 = vmatprep.subr.bf16.mxu0 0
    %2359 = vmatpush1.bf16.xpose.msra.mxu0 0
    %2360 = vmatprep.subr.bf16.mxu0 0
    %2361 = vmatpush1.bf16.xpose.msra.mxu0 0
    %2362 = vmatprep.subr.bf16.mxu0 0
    %2363 = vmatpush1.bf16.xpose.msra.mxu0 0
    %2364 = vmatprep.subr.bf16.mxu0 0
    %2365 = vmatpush1.bf16.xpose.msra.mxu0 0
    %2366 = vmatprep.subr.bf16.mxu0 0
    %2367 = vmatpush1.bf16.xpose.msra.mxu0 0
    %2368 = vmatprep.mubr.bf16.mxu0 0
    %2369 = vmatmul.mubr.bf16.gmra.mrb[0].mxu0 %v2331
    %v2370 = vpop.f32.mrb[0].mxu0
    %v2371 = vadd.f32 0.0, %v2370
    %v2372 = vpop.f32.mrb[0].mxu0
    %v2373 = vpop.f32.mrb[0].mxu0
    %v2374 = vadd.f32 0.0, %v2373
    %v2375 = vpop.f32.mrb[0].mxu0
    %2376 = vdwg.mxu0
    %v2378 = vsel %vm549, %v2058, 0
    %v2381 = vsel %vm549, %v2072, 0
    %2383 = vmatprep.subr.bf16.mxu0 0
    %2384 = vmatpush1.bf16.xpose.msra.mxu0 %v2381
    %2385 = vmatprep.subr.bf16.mxu0 0
    %2386 = vmatpush1.bf16.xpose.msra.mxu0 0
    %2387 = vmatprep.subr.bf16.mxu0 0
    %2388 = vmatpush1.bf16.xpose.msra.mxu0 0
    %2389 = vmatprep.subr.bf16.mxu0 0
    %2390 = vmatpush1.bf16.xpose.msra.mxu0 0
    %2391 = vmatprep.subr.bf16.mxu0 0
    %2392 = vmatpush1.bf16.xpose.msra.mxu0 0
    %2393 = vmatprep.subr.bf16.mxu0 0
    %2394 = vmatpush1.bf16.xpose.msra.mxu0 0
    %2395 = vmatprep.subr.bf16.mxu0 0
    %2396 = vmatpush1.bf16.xpose.msra.mxu0 0
    %2397 = vmatprep.subr.bf16.mxu0 0
    %2398 = vmatpush1.bf16.xpose.msra.mxu0 0
    %2399 = vmatprep.subr.bf16.mxu0 0
    %2400 = vmatpush1.bf16.xpose.msra.mxu0 0
    %2401 = vmatprep.subr.bf16.mxu0 0
    %2402 = vmatpush1.bf16.xpose.msra.mxu0 0
    %2403 = vmatprep.subr.bf16.mxu0 0
    %2404 = vmatpush1.bf16.xpose.msra.mxu0 0
    %2405 = vmatprep.subr.bf16.mxu0 0
    %2406 = vmatpush1.bf16.xpose.msra.mxu0 0
    %2407 = vmatprep.subr.bf16.mxu0 0
    %2408 = vmatpush1.bf16.xpose.msra.mxu0 0
    %2409 = vmatprep.subr.bf16.mxu0 0
    %2410 = vmatpush1.bf16.xpose.msra.mxu0 0
    %2411 = vmatprep.subr.bf16.mxu0 0
    %2412 = vmatpush1.bf16.xpose.msra.mxu0 0
    %2413 = vmatprep.subr.bf16.mxu0 0
    %2414 = vmatpush1.bf16.xpose.msra.mxu0 0
    %2415 = vmatprep.mubr.bf16.mxu0 0
    %2416 = vmatmul.mubr.bf16.gmra.mrb[0].mxu0 %v2378
    %v2417 = vpop.f32.mrb[0].mxu0
    %v2418 = vadd.f32 0.0, %v2417
    %v2419 = vpop.f32.mrb[0].mxu0
    %v2420 = vpop.f32.mrb[0].mxu0
    %v2421 = vadd.f32 0.0, %v2420
    %v2422 = vpop.f32.mrb[0].mxu0
    %2423 = vdwg.mxu0
    %v2425 = vsel %vm549, %v2060, 0
    %v2428 = vsel %vm549, %v2074, 0
    %2430 = vmatprep.subr.bf16.mxu0 0
    %2431 = vmatpush1.bf16.xpose.msra.mxu0 %v2428
    %2432 = vmatprep.subr.bf16.mxu0 0
    %2433 = vmatpush1.bf16.xpose.msra.mxu0 0
    %2434 = vmatprep.subr.bf16.mxu0 0
    %2435 = vmatpush1.bf16.xpose.msra.mxu0 0
    %2436 = vmatprep.subr.bf16.mxu0 0
    %2437 = vmatpush1.bf16.xpose.msra.mxu0 0
    %2438 = vmatprep.subr.bf16.mxu0 0
    %2439 = vmatpush1.bf16.xpose.msra.mxu0 0
    %2440 = vmatprep.subr.bf16.mxu0 0
    %2441 = vmatpush1.bf16.xpose.msra.mxu0 0
    %2442 = vmatprep.subr.bf16.mxu0 0
    %2443 = vmatpush1.bf16.xpose.msra.mxu0 0
    %2444 = vmatprep.subr.bf16.mxu0 0
    %2445 = vmatpush1.bf16.xpose.msra.mxu0 0
    %2446 = vmatprep.subr.bf16.mxu0 0
    %2447 = vmatpush1.bf16.xpose.msra.mxu0 0
    %2448 = vmatprep.subr.bf16.mxu0 0
    %2449 = vmatpush1.bf16.xpose.msra.mxu0 0
    %2450 = vmatprep.subr.bf16.mxu0 0
    %2451 = vmatpush1.bf16.xpose.msra.mxu0 0
    %2452 = vmatprep.subr.bf16.mxu0 0
    %2453 = vmatpush1.bf16.xpose.msra.mxu0 0
    %2454 = vmatprep.subr.bf16.mxu0 0
    %2455 = vmatpush1.bf16.xpose.msra.mxu0 0
    %2456 = vmatprep.subr.bf16.mxu0 0
    %2457 = vmatpush1.bf16.xpose.msra.mxu0 0
    %2458 = vmatprep.subr.bf16.mxu0 0
    %2459 = vmatpush1.bf16.xpose.msra.mxu0 0
    %2460 = vmatprep.subr.bf16.mxu0 0
    %2461 = vmatpush1.bf16.xpose.msra.mxu0 0
    %2462 = vmatprep.mubr.bf16.mxu0 0
    %2463 = vmatmul.mubr.bf16.gmra.mrb[0].mxu0 %v2425
    %v2464 = vpop.f32.mrb[0].mxu0
    %v2465 = vadd.f32 0.0, %v2464
    %v2466 = vpop.f32.mrb[0].mxu0
    %v2467 = vpop.f32.mrb[0].mxu0
    %v2468 = vadd.f32 0.0, %v2467
    %v2469 = vpop.f32.mrb[0].mxu0
    %2470 = vdwg.mxu0
    %v2471 = vmul.f32 %v2136, 0.17677669
    %v2472 = vmul.f32 %v2139, 0.17677669
    %v2473 = vmul.f32 %v2183, 0.17677669
    %v2474 = vmul.f32 %v2186, 0.17677669
    %v2475 = vmul.f32 %v2230, 0.17677669
    %v2476 = vmul.f32 %v2233, 0.17677669
    %v2477 = vmul.f32 %v2277, 0.17677669
    %v2478 = vmul.f32 %v2280, 0.17677669
    %v2479 = vmul.f32 %v2324, 0.17677669
    %v2480 = vmul.f32 %v2327, 0.17677669
    %v2481 = vmul.f32 %v2371, 0.17677669
    %v2482 = vmul.f32 %v2374, 0.17677669
    %v2483 = vmul.f32 %v2418, 0.17677669
    %v2484 = vmul.f32 %v2421, 0.17677669
    %v2485 = vmul.f32 %v2465, 0.17677669
    %v2486 = vmul.f32 %v2468, 0.17677669
    %v2487 = vsel %vm958, %v2471, -inf
    %2488 = vmax.xlane.f32.xlu0 %v2487
    %v2489 = vpop.xlane.xlu0 %2488
    %v2490 = vsel %vm958, %v2472, -inf
    %2491 = vmax.xlane.f32.xlu0 %v2490
    %v2492 = vpop.xlane.xlu0 %2491
    %v2493 = vsel %vm958, %v2473, -inf
    %2494 = vmax.xlane.f32.xlu0 %v2493
    %v2495 = vpop.xlane.xlu0 %2494
    %v2496 = vsel %vm958, %v2474, -inf
    %2497 = vmax.xlane.f32.xlu0 %v2496
    %v2498 = vpop.xlane.xlu0 %2497
    %v2499 = vsel %vm958, %v2475, -inf
    %2500 = vmax.xlane.f32.xlu0 %v2499
    %v2501 = vpop.xlane.xlu0 %2500
    %v2502 = vsel %vm958, %v2476, -inf
    %2503 = vmax.xlane.f32.xlu0 %v2502
    %v2504 = vpop.xlane.xlu0 %2503
    %v2505 = vsel %vm958, %v2477, -inf
    %2506 = vmax.xlane.f32.xlu0 %v2505
    %v2507 = vpop.xlane.xlu0 %2506
    %v2508 = vsel %vm958, %v2478, -inf
    %2509 = vmax.xlane.f32.xlu0 %v2508
    %v2510 = vpop.xlane.xlu0 %2509
    %v2511 = vsel %vm958, %v2479, -inf
    %2512 = vmax.xlane.f32.xlu0 %v2511
    %v2513 = vpop.xlane.xlu0 %2512
    %v2514 = vsel %vm958, %v2480, -inf
    %2515 = vmax.xlane.f32.xlu0 %v2514
    %v2516 = vpop.xlane.xlu0 %2515
    %v2517 = vsel %vm958, %v2481, -inf
    %2518 = vmax.xlane.f32.xlu0 %v2517
    %v2519 = vpop.xlane.xlu0 %2518
    %v2520 = vsel %vm958, %v2482, -inf
    %2521 = vmax.xlane.f32.xlu0 %v2520
    %v2522 = vpop.xlane.xlu0 %2521
    %v2523 = vsel %vm958, %v2483, -inf
    %2524 = vmax.xlane.f32.xlu0 %v2523
    %v2525 = vpop.xlane.xlu0 %2524
    %v2526 = vsel %vm958, %v2484, -inf
    %2527 = vmax.xlane.f32.xlu0 %v2526
    %v2528 = vpop.xlane.xlu0 %2527
    %v2529 = vsel %vm958, %v2485, -inf
    %2530 = vmax.xlane.f32.xlu0 %v2529
    %v2531 = vpop.xlane.xlu0 %2530
    %v2532 = vsel %vm958, %v2486, -inf
    %2533 = vmax.xlane.f32.xlu0 %v2532
    %v2534 = vpop.xlane.xlu0 %2533
    %v2535 = vsub.f32 %v2471, %v2489
    %v2536 = vsub.f32 %v2472, %v2492
    %v2537 = vsub.f32 %v2473, %v2495
    %v2538 = vsub.f32 %v2474, %v2498
    %v2539 = vsub.f32 %v2475, %v2501
    %v2540 = vsub.f32 %v2476, %v2504
    %v2541 = vsub.f32 %v2477, %v2507
    %v2542 = vsub.f32 %v2478, %v2510
    %v2543 = vsub.f32 %v2479, %v2513
    %v2544 = vsub.f32 %v2480, %v2516
    %v2545 = vsub.f32 %v2481, %v2519
    %v2546 = vsub.f32 %v2482, %v2522
    %v2547 = vsub.f32 %v2483, %v2525
    %v2548 = vsub.f32 %v2484, %v2528
    %v2549 = vsub.f32 %v2485, %v2531
    %v2550 = vsub.f32 %v2486, %v2534
    %v2551 = vmul.f32 %v2535, 1.442695
    %v2552 = vpow.pop %v2551
    %v2553 = vmul.f32 %v2536, 1.442695
    %v2554 = vpow.pop %v2553
    %v2555 = vmul.f32 %v2537, 1.442695
    %v2556 = vpow.pop %v2555
    %v2557 = vmul.f32 %v2538, 1.442695
    %v2558 = vpow.pop %v2557
    %v2559 = vmul.f32 %v2539, 1.442695
    %v2560 = vpow.pop %v2559
    %v2561 = vmul.f32 %v2540, 1.442695
    %v2562 = vpow.pop %v2561
    %v2563 = vmul.f32 %v2541, 1.442695
    %v2564 = vpow.pop %v2563
    %v2565 = vmul.f32 %v2542, 1.442695
    %v2566 = vpow.pop %v2565
    %v2567 = vmul.f32 %v2543, 1.442695
    %v2568 = vpow.pop %v2567
    %v2569 = vmul.f32 %v2544, 1.442695
    %v2570 = vpow.pop %v2569
    %v2571 = vmul.f32 %v2545, 1.442695
    %v2572 = vpow.pop %v2571
    %v2573 = vmul.f32 %v2546, 1.442695
    %v2574 = vpow.pop %v2573
    %v2575 = vmul.f32 %v2547, 1.442695
    %v2576 = vpow.pop %v2575
    %v2577 = vmul.f32 %v2548, 1.442695
    %v2578 = vpow.pop %v2577
    %v2579 = vmul.f32 %v2549, 1.442695
    %v2580 = vpow.pop %v2579
    %v2581 = vmul.f32 %v2550, 1.442695
    %v2582 = vpow.pop %v2581
    %v2583 = vsel %vm958, %v2552, 0.0
    %2584 = vadd.xlane.f32.xlu0 %v2583
    %v2585 = vpop.xlane.xlu0 %2584
    %v2586 = vsel %vm958, %v2554, 0.0
    %2587 = vadd.xlane.f32.xlu0 %v2586
    %v2588 = vpop.xlane.xlu0 %2587
    %v2589 = vsel %vm958, %v2556, 0.0
    %2590 = vadd.xlane.f32.xlu0 %v2589
    %v2591 = vpop.xlane.xlu0 %2590
    %v2592 = vsel %vm958, %v2558, 0.0
    %2593 = vadd.xlane.f32.xlu0 %v2592
    %v2594 = vpop.xlane.xlu0 %2593
    %v2595 = vsel %vm958, %v2560, 0.0
    %2596 = vadd.xlane.f32.xlu0 %v2595
    %v2597 = vpop.xlane.xlu0 %2596
    %v2598 = vsel %vm958, %v2562, 0.0
    %2599 = vadd.xlane.f32.xlu0 %v2598
    %v2600 = vpop.xlane.xlu0 %2599
    %v2601 = vsel %vm958, %v2564, 0.0
    %2602 = vadd.xlane.f32.xlu0 %v2601
    %v2603 = vpop.xlane.xlu0 %2602
    %v2604 = vsel %vm958, %v2566, 0.0
    %2605 = vadd.xlane.f32.xlu0 %v2604
    %v2606 = vpop.xlane.xlu0 %2605
    %v2607 = vsel %vm958, %v2568, 0.0
    %2608 = vadd.xlane.f32.xlu0 %v2607
    %v2609 = vpop.xlane.xlu0 %2608
    %v2610 = vsel %vm958, %v2570, 0.0
    %2611 = vadd.xlane.f32.xlu0 %v2610
    %v2612 = vpop.xlane.xlu0 %2611
    %v2613 = vsel %vm958, %v2572, 0.0
    %2614 = vadd.xlane.f32.xlu0 %v2613
    %v2615 = vpop.xlane.xlu0 %2614
    %v2616 = vsel %vm958, %v2574, 0.0
    %2617 = vadd.xlane.f32.xlu0 %v2616
    %v2618 = vpop.xlane.xlu0 %2617
    %v2619 = vsel %vm958, %v2576, 0.0
    %2620 = vadd.xlane.f32.xlu0 %v2619
    %v2621 = vpop.xlane.xlu0 %2620
    %v2622 = vsel %vm958, %v2578, 0.0
    %2623 = vadd.xlane.f32.xlu0 %v2622
    %v2624 = vpop.xlane.xlu0 %2623
    %v2625 = vsel %vm958, %v2580, 0.0
    %2626 = vadd.xlane.f32.xlu0 %v2625
    %v2627 = vpop.xlane.xlu0 %2626
    %v2628 = vsel %vm958, %v2582, 0.0
    %2629 = vadd.xlane.f32.xlu0 %v2628
    %v2630 = vpop.xlane.xlu0 %2629
    %v2631 = vrcp.pop %v2585
    %v2632 = vrcp.pop %v2588
    %v2633 = vrcp.pop %v2591
    %v2634 = vrcp.pop %v2594
    %v2635 = vrcp.pop %v2597
    %v2636 = vrcp.pop %v2600
    %v2637 = vrcp.pop %v2603
    %v2638 = vrcp.pop %v2606
    %v2639 = vrcp.pop %v2609
    %v2640 = vrcp.pop %v2612
    %v2641 = vrcp.pop %v2615
    %v2642 = vrcp.pop %v2618
    %v2643 = vrcp.pop %v2621
    %v2644 = vrcp.pop %v2624
    %v2645 = vrcp.pop %v2627
    %v2646 = vrcp.pop %v2630
    %v2647 = vmul.f32 %v2552, %v2631
    %v2648 = vmul.f32 %v2554, %v2632
    %v2649 = vmul.f32 %v2556, %v2633
    %v2650 = vmul.f32 %v2558, %v2634
    %v2651 = vmul.f32 %v2560, %v2635
    %v2652 = vmul.f32 %v2562, %v2636
    %v2653 = vmul.f32 %v2564, %v2637
    %v2654 = vmul.f32 %v2566, %v2638
    %v2655 = vmul.f32 %v2568, %v2639
    %v2656 = vmul.f32 %v2570, %v2640
    %v2657 = vmul.f32 %v2572, %v2641
    %v2658 = vmul.f32 %v2574, %v2642
    %v2659 = vmul.f32 %v2576, %v2643
    %v2660 = vmul.f32 %v2578, %v2644
    %v2661 = vmul.f32 %v2580, %v2645
    %v2662 = vmul.f32 %v2582, %v2646
    %v2663 = vpack.c.bf16 %v2648, %v2647
    %v2664 = vpack.c.bf16 %v2650, %v2649
    %v2665 = vpack.c.bf16 %v2652, %v2651
    %v2666 = vpack.c.bf16 %v2654, %v2653
    %v2667 = vpack.c.bf16 %v2656, %v2655
    %v2668 = vpack.c.bf16 %v2658, %v2657
    %v2669 = vpack.c.bf16 %v2660, %v2659
    %v2670 = vpack.c.bf16 %v2662, %v2661
    %v2672 = vsel %vm958, %v2663, 0
    %2674 = vmatprep.subr.bf16.mxu0 0
    %2675 = vmatpush1.bf16.msra.mxu0 %v2044
    %2676 = vmatprep.subr.bf16.mxu0 0
    %2677 = vmatpush1.bf16.msra.mxu0 0
    %2678 = vmatprep.subr.bf16.mxu0 0
    %2679 = vmatpush1.bf16.msra.mxu0 0
    %2680 = vmatprep.subr.bf16.mxu0 0
    %2681 = vmatpush1.bf16.msra.mxu0 0
    %2682 = vmatprep.subr.bf16.mxu0 0
    %2683 = vmatpush1.bf16.msra.mxu0 0
    %2684 = vmatprep.subr.bf16.mxu0 0
    %2685 = vmatpush1.bf16.msra.mxu0 0
    %2686 = vmatprep.subr.bf16.mxu0 0
    %2687 = vmatpush1.bf16.msra.mxu0 0
    %2688 = vmatprep.subr.bf16.mxu0 0
    %2689 = vmatpush1.bf16.msra.mxu0 0
    %2690 = vmatprep.subr.bf16.mxu0 0
    %2691 = vmatpush1.bf16.msra.mxu0 0
    %2692 = vmatprep.subr.bf16.mxu0 0
    %2693 = vmatpush1.bf16.msra.mxu0 0
    %2694 = vmatprep.subr.bf16.mxu0 0
    %2695 = vmatpush1.bf16.msra.mxu0 0
    %2696 = vmatprep.subr.bf16.mxu0 0
    %2697 = vmatpush1.bf16.msra.mxu0 0
    %2698 = vmatprep.subr.bf16.mxu0 0
    %2699 = vmatpush1.bf16.msra.mxu0 0
    %2700 = vmatprep.subr.bf16.mxu0 0
    %2701 = vmatpush1.bf16.msra.mxu0 0
    %2702 = vmatprep.subr.bf16.mxu0 0
    %2703 = vmatpush1.bf16.msra.mxu0 0
    %2704 = vmatprep.subr.bf16.mxu0 0
    %2705 = vmatpush1.bf16.msra.mxu0 0
    %2706 = vmatprep.mubr.bf16.mxu0 0
    %2707 = vmatmul.mubr.bf16.gmra.mrb[0].mxu0 %v2672
    %v2708 = vpop.f32.mrb[0].mxu0
    %v2709 = vadd.f32 0.0, %v2708
    %v2710 = vpop.f32.mrb[0].mxu0
    %v2711 = vpop.f32.mrb[0].mxu0
    %v2712 = vadd.f32 0.0, %v2711
    %v2713 = vpop.f32.mrb[0].mxu0
    %2714 = vdwg.mxu0
    %v2716 = vsel %vm958, %v2664, 0
    %2718 = vmatprep.subr.bf16.mxu0 0
    %2719 = vmatpush1.bf16.msra.mxu0 %v2046
    %2720 = vmatprep.subr.bf16.mxu0 0
    %2721 = vmatpush1.bf16.msra.mxu0 0
    %2722 = vmatprep.subr.bf16.mxu0 0
    %2723 = vmatpush1.bf16.msra.mxu0 0
    %2724 = vmatprep.subr.bf16.mxu0 0
    %2725 = vmatpush1.bf16.msra.mxu0 0
    %2726 = vmatprep.subr.bf16.mxu0 0
    %2727 = vmatpush1.bf16.msra.mxu0 0
    %2728 = vmatprep.subr.bf16.mxu0 0
    %2729 = vmatpush1.bf16.msra.mxu0 0
    %2730 = vmatprep.subr.bf16.mxu0 0
    %2731 = vmatpush1.bf16.msra.mxu0 0
    %2732 = vmatprep.subr.bf16.mxu0 0
    %2733 = vmatpush1.bf16.msra.mxu0 0
    %2734 = vmatprep.subr.bf16.mxu0 0
    %2735 = vmatpush1.bf16.msra.mxu0 0
    %2736 = vmatprep.subr.bf16.mxu0 0
    %2737 = vmatpush1.bf16.msra.mxu0 0
    %2738 = vmatprep.subr.bf16.mxu0 0
    %2739 = vmatpush1.bf16.msra.mxu0 0
    %2740 = vmatprep.subr.bf16.mxu0 0
    %2741 = vmatpush1.bf16.msra.mxu0 0
    %2742 = vmatprep.subr.bf16.mxu0 0
    %2743 = vmatpush1.bf16.msra.mxu0 0
    %2744 = vmatprep.subr.bf16.mxu0 0
    %2745 = vmatpush1.bf16.msra.mxu0 0
    %2746 = vmatprep.subr.bf16.mxu0 0
    %2747 = vmatpush1.bf16.msra.mxu0 0
    %2748 = vmatprep.subr.bf16.mxu0 0
    %2749 = vmatpush1.bf16.msra.mxu0 0
    %2750 = vmatprep.mubr.bf16.mxu0 0
    %2751 = vmatmul.mubr.bf16.gmra.mrb[0].mxu0 %v2716
    %v2752 = vpop.f32.mrb[0].mxu0
    %v2753 = vadd.f32 0.0, %v2752
    %v2754 = vpop.f32.mrb[0].mxu0
    %v2755 = vpop.f32.mrb[0].mxu0
    %v2756 = vadd.f32 0.0, %v2755
    %v2757 = vpop.f32.mrb[0].mxu0
    %2758 = vdwg.mxu0
    %v2760 = vsel %vm958, %v2665, 0
    %2762 = vmatprep.subr.bf16.mxu0 0
    %2763 = vmatpush1.bf16.msra.mxu0 %v2078
    %2764 = vmatprep.subr.bf16.mxu0 0
    %2765 = vmatpush1.bf16.msra.mxu0 0
    %2766 = vmatprep.subr.bf16.mxu0 0
    %2767 = vmatpush1.bf16.msra.mxu0 0
    %2768 = vmatprep.subr.bf16.mxu0 0
    %2769 = vmatpush1.bf16.msra.mxu0 0
    %2770 = vmatprep.subr.bf16.mxu0 0
    %2771 = vmatpush1.bf16.msra.mxu0 0
    %2772 = vmatprep.subr.bf16.mxu0 0
    %2773 = vmatpush1.bf16.msra.mxu0 0
    %2774 = vmatprep.subr.bf16.mxu0 0
    %2775 = vmatpush1.bf16.msra.mxu0 0
    %2776 = vmatprep.subr.bf16.mxu0 0
    %2777 = vmatpush1.bf16.msra.mxu0 0
    %2778 = vmatprep.subr.bf16.mxu0 0
    %2779 = vmatpush1.bf16.msra.mxu0 0
    %2780 = vmatprep.subr.bf16.mxu0 0
    %2781 = vmatpush1.bf16.msra.mxu0 0
    %2782 = vmatprep.subr.bf16.mxu0 0
    %2783 = vmatpush1.bf16.msra.mxu0 0
    %2784 = vmatprep.subr.bf16.mxu0 0
    %2785 = vmatpush1.bf16.msra.mxu0 0
    %2786 = vmatprep.subr.bf16.mxu0 0
    %2787 = vmatpush1.bf16.msra.mxu0 0
    %2788 = vmatprep.subr.bf16.mxu0 0
    %2789 = vmatpush1.bf16.msra.mxu0 0
    %2790 = vmatprep.subr.bf16.mxu0 0
    %2791 = vmatpush1.bf16.msra.mxu0 0
    %2792 = vmatprep.subr.bf16.mxu0 0
    %2793 = vmatpush1.bf16.msra.mxu0 0
    %2794 = vmatprep.mubr.bf16.mxu0 0
    %2795 = vmatmul.mubr.bf16.gmra.mrb[0].mxu0 %v2760
    %v2796 = vpop.f32.mrb[0].mxu0
    %v2797 = vadd.f32 0.0, %v2796
    %v2798 = vpop.f32.mrb[0].mxu0
    %v2799 = vpop.f32.mrb[0].mxu0
    %v2800 = vadd.f32 0.0, %v2799
    %v2801 = vpop.f32.mrb[0].mxu0
    %2802 = vdwg.mxu0
    %v2804 = vsel %vm958, %v2666, 0
    %2806 = vmatprep.subr.bf16.mxu0 0
    %2807 = vmatpush1.bf16.msra.mxu0 %v2080
    %2808 = vmatprep.subr.bf16.mxu0 0
    %2809 = vmatpush1.bf16.msra.mxu0 0
    %2810 = vmatprep.subr.bf16.mxu0 0
    %2811 = vmatpush1.bf16.msra.mxu0 0
    %2812 = vmatprep.subr.bf16.mxu0 0
    %2813 = vmatpush1.bf16.msra.mxu0 0
    %2814 = vmatprep.subr.bf16.mxu0 0
    %2815 = vmatpush1.bf16.msra.mxu0 0
    %2816 = vmatprep.subr.bf16.mxu0 0
    %2817 = vmatpush1.bf16.msra.mxu0 0
    %2818 = vmatprep.subr.bf16.mxu0 0
    %2819 = vmatpush1.bf16.msra.mxu0 0
    %2820 = vmatprep.subr.bf16.mxu0 0
    %2821 = vmatpush1.bf16.msra.mxu0 0
    %2822 = vmatprep.subr.bf16.mxu0 0
    %2823 = vmatpush1.bf16.msra.mxu0 0
    %2824 = vmatprep.subr.bf16.mxu0 0
    %2825 = vmatpush1.bf16.msra.mxu0 0
    %2826 = vmatprep.subr.bf16.mxu0 0
    %2827 = vmatpush1.bf16.msra.mxu0 0
    %2828 = vmatprep.subr.bf16.mxu0 0
    %2829 = vmatpush1.bf16.msra.mxu0 0
    %2830 = vmatprep.subr.bf16.mxu0 0
    %2831 = vmatpush1.bf16.msra.mxu0 0
    %2832 = vmatprep.subr.bf16.mxu0 0
    %2833 = vmatpush1.bf16.msra.mxu0 0
    %2834 = vmatprep.subr.bf16.mxu0 0
    %2835 = vmatpush1.bf16.msra.mxu0 0
    %2836 = vmatprep.subr.bf16.mxu0 0
    %2837 = vmatpush1.bf16.msra.mxu0 0
    %2838 = vmatprep.mubr.bf16.mxu0 0
    %2839 = vmatmul.mubr.bf16.gmra.mrb[0].mxu0 %v2804
    %v2840 = vpop.f32.mrb[0].mxu0
    %v2841 = vadd.f32 0.0, %v2840
    %v2842 = vpop.f32.mrb[0].mxu0
    %v2843 = vpop.f32.mrb[0].mxu0
    %v2844 = vadd.f32 0.0, %v2843
    %v2845 = vpop.f32.mrb[0].mxu0
    %2846 = vdwg.mxu0
    %v2848 = vsel %vm958, %v2667, 0
    %2850 = vmatprep.subr.bf16.mxu0 0
    %2851 = vmatpush1.bf16.msra.mxu0 %v2084
    %2852 = vmatprep.subr.bf16.mxu0 0
    %2853 = vmatpush1.bf16.msra.mxu0 0
    %2854 = vmatprep.subr.bf16.mxu0 0
    %2855 = vmatpush1.bf16.msra.mxu0 0
    %2856 = vmatprep.subr.bf16.mxu0 0
    %2857 = vmatpush1.bf16.msra.mxu0 0
    %2858 = vmatprep.subr.bf16.mxu0 0
    %2859 = vmatpush1.bf16.msra.mxu0 0
    %2860 = vmatprep.subr.bf16.mxu0 0
    %2861 = vmatpush1.bf16.msra.mxu0 0
    %2862 = vmatprep.subr.bf16.mxu0 0
    %2863 = vmatpush1.bf16.msra.mxu0 0
    %2864 = vmatprep.subr.bf16.mxu0 0
    %2865 = vmatpush1.bf16.msra.mxu0 0
    %2866 = vmatprep.subr.bf16.mxu0 0
    %2867 = vmatpush1.bf16.msra.mxu0 0
    %2868 = vmatprep.subr.bf16.mxu0 0
    %2869 = vmatpush1.bf16.msra.mxu0 0
    %2870 = vmatprep.subr.bf16.mxu0 0
    %2871 = vmatpush1.bf16.msra.mxu0 0
    %2872 = vmatprep.subr.bf16.mxu0 0
    %2873 = vmatpush1.bf16.msra.mxu0 0
    %2874 = vmatprep.subr.bf16.mxu0 0
    %2875 = vmatpush1.bf16.msra.mxu0 0
    %2876 = vmatprep.subr.bf16.mxu0 0
    %2877 = vmatpush1.bf16.msra.mxu0 0
    %2878 = vmatprep.subr.bf16.mxu0 0
    %2879 = vmatpush1.bf16.msra.mxu0 0
    %2880 = vmatprep.subr.bf16.mxu0 0
    %2881 = vmatpush1.bf16.msra.mxu0 0
    %2882 = vmatprep.mubr.bf16.mxu0 0
    %2883 = vmatmul.mubr.bf16.gmra.mrb[0].mxu0 %v2848
    %v2884 = vpop.f32.mrb[0].mxu0
    %v2885 = vadd.f32 0.0, %v2884
    %v2886 = vpop.f32.mrb[0].mxu0
    %v2887 = vpop.f32.mrb[0].mxu0
    %v2888 = vadd.f32 0.0, %v2887
    %v2889 = vpop.f32.mrb[0].mxu0
    %2890 = vdwg.mxu0
    %v2892 = vsel %vm958, %v2668, 0
    %2894 = vmatprep.subr.bf16.mxu0 0
    %2895 = vmatpush1.bf16.msra.mxu0 %v2086
    %2896 = vmatprep.subr.bf16.mxu0 0
    %2897 = vmatpush1.bf16.msra.mxu0 0
    %2898 = vmatprep.subr.bf16.mxu0 0
    %2899 = vmatpush1.bf16.msra.mxu0 0
    %2900 = vmatprep.subr.bf16.mxu0 0
    %2901 = vmatpush1.bf16.msra.mxu0 0
    %2902 = vmatprep.subr.bf16.mxu0 0
    %2903 = vmatpush1.bf16.msra.mxu0 0
    %2904 = vmatprep.subr.bf16.mxu0 0
    %2905 = vmatpush1.bf16.msra.mxu0 0
    %2906 = vmatprep.subr.bf16.mxu0 0
    %2907 = vmatpush1.bf16.msra.mxu0 0
    %2908 = vmatprep.subr.bf16.mxu0 0
    %2909 = vmatpush1.bf16.msra.mxu0 0
    %2910 = vmatprep.subr.bf16.mxu0 0
    %2911 = vmatpush1.bf16.msra.mxu0 0
    %2912 = vmatprep.subr.bf16.mxu0 0
    %2913 = vmatpush1.bf16.msra.mxu0 0
    %2914 = vmatprep.subr.bf16.mxu0 0
    %2915 = vmatpush1.bf16.msra.mxu0 0
    %2916 = vmatprep.subr.bf16.mxu0 0
    %2917 = vmatpush1.bf16.msra.mxu0 0
    %2918 = vmatprep.subr.bf16.mxu0 0
    %2919 = vmatpush1.bf16.msra.mxu0 0
    %2920 = vmatprep.subr.bf16.mxu0 0
    %2921 = vmatpush1.bf16.msra.mxu0 0
    %2922 = vmatprep.subr.bf16.mxu0 0
    %2923 = vmatpush1.bf16.msra.mxu0 0
    %2924 = vmatprep.subr.bf16.mxu0 0
    %2925 = vmatpush1.bf16.msra.mxu0 0
    %2926 = vmatprep.mubr.bf16.mxu0 0
    %2927 = vmatmul.mubr.bf16.gmra.mrb[0].mxu0 %v2892
    %v2928 = vpop.f32.mrb[0].mxu0
    %v2929 = vadd.f32 0.0, %v2928
    %v2930 = vpop.f32.mrb[0].mxu0
    %v2931 = vpop.f32.mrb[0].mxu0
    %v2932 = vadd.f32 0.0, %v2931
    %v2933 = vpop.f32.mrb[0].mxu0
    %2934 = vdwg.mxu0
    %v2936 = vsel %vm958, %v2669, 0
    %2938 = vmatprep.subr.bf16.mxu0 0
    %2939 = vmatpush1.bf16.msra.mxu0 %v2090
    %2940 = vmatprep.subr.bf16.mxu0 0
    %2941 = vmatpush1.bf16.msra.mxu0 0
    %2942 = vmatprep.subr.bf16.mxu0 0
    %2943 = vmatpush1.bf16.msra.mxu0 0
    %2944 = vmatprep.subr.bf16.mxu0 0
    %2945 = vmatpush1.bf16.msra.mxu0 0
    %2946 = vmatprep.subr.bf16.mxu0 0
    %2947 = vmatpush1.bf16.msra.mxu0 0
    %2948 = vmatprep.subr.bf16.mxu0 0
    %2949 = vmatpush1.bf16.msra.mxu0 0
    %2950 = vmatprep.subr.bf16.mxu0 0
    %2951 = vmatpush1.bf16.msra.mxu0 0
    %2952 = vmatprep.subr.bf16.mxu0 0
    %2953 = vmatpush1.bf16.msra.mxu0 0
    %2954 = vmatprep.subr.bf16.mxu0 0
    %2955 = vmatpush1.bf16.msra.mxu0 0
    %2956 = vmatprep.subr.bf16.mxu0 0
    %2957 = vmatpush1.bf16.msra.mxu0 0
    %2958 = vmatprep.subr.bf16.mxu0 0
    %2959 = vmatpush1.bf16.msra.mxu0 0
    %2960 = vmatprep.subr.bf16.mxu0 0
    %2961 = vmatpush1.bf16.msra.mxu0 0
    %2962 = vmatprep.subr.bf16.mxu0 0
    %2963 = vmatpush1.bf16.msra.mxu0 0
    %2964 = vmatprep.subr.bf16.mxu0 0
    %2965 = vmatpush1.bf16.msra.mxu0 0
    %2966 = vmatprep.subr.bf16.mxu0 0
    %2967 = vmatpush1.bf16.msra.mxu0 0
    %2968 = vmatprep.subr.bf16.mxu0 0
    %2969 = vmatpush1.bf16.msra.mxu0 0
    %2970 = vmatprep.mubr.bf16.mxu0 0
    %2971 = vmatmul.mubr.bf16.gmra.mrb[0].mxu0 %v2936
    %v2972 = vpop.f32.mrb[0].mxu0
    %v2973 = vadd.f32 0.0, %v2972
    %v2974 = vpop.f32.mrb[0].mxu0
    %v2975 = vpop.f32.mrb[0].mxu0
    %v2976 = vadd.f32 0.0, %v2975
    %v2977 = vpop.f32.mrb[0].mxu0
    %2978 = vdwg.mxu0
    %v2980 = vsel %vm958, %v2670, 0
    %2982 = vmatprep.subr.bf16.mxu0 0
    %2983 = vmatpush1.bf16.msra.mxu0 %v2092
    %2984 = vmatprep.subr.bf16.mxu0 0
    %2985 = vmatpush1.bf16.msra.mxu0 0
    %2986 = vmatprep.subr.bf16.mxu0 0
    %2987 = vmatpush1.bf16.msra.mxu0 0
    %2988 = vmatprep.subr.bf16.mxu0 0
    %2989 = vmatpush1.bf16.msra.mxu0 0
    %2990 = vmatprep.subr.bf16.mxu0 0
    %2991 = vmatpush1.bf16.msra.mxu0 0
    %2992 = vmatprep.subr.bf16.mxu0 0
    %2993 = vmatpush1.bf16.msra.mxu0 0
    %2994 = vmatprep.subr.bf16.mxu0 0
    %2995 = vmatpush1.bf16.msra.mxu0 0
    %2996 = vmatprep.subr.bf16.mxu0 0
    %2997 = vmatpush1.bf16.msra.mxu0 0
    %2998 = vmatprep.subr.bf16.mxu0 0
    %2999 = vmatpush1.bf16.msra.mxu0 0
    %3000 = vmatprep.subr.bf16.mxu0 0
    %3001 = vmatpush1.bf16.msra.mxu0 0
    %3002 = vmatprep.subr.bf16.mxu0 0
    %3003 = vmatpush1.bf16.msra.mxu0 0
    %3004 = vmatprep.subr.bf16.mxu0 0
    %3005 = vmatpush1.bf16.msra.mxu0 0
    %3006 = vmatprep.subr.bf16.mxu0 0
    %3007 = vmatpush1.bf16.msra.mxu0 0
    %3008 = vmatprep.subr.bf16.mxu0 0
    %3009 = vmatpush1.bf16.msra.mxu0 0
    %3010 = vmatprep.subr.bf16.mxu0 0
    %3011 = vmatpush1.bf16.msra.mxu0 0
    %3012 = vmatprep.subr.bf16.mxu0 0
    %3013 = vmatpush1.bf16.msra.mxu0 0
    %3014 = vmatprep.mubr.bf16.mxu0 0
    %3015 = vmatmul.mubr.bf16.gmra.mrb[0].mxu0 %v2980
    %v3016 = vpop.f32.mrb[0].mxu0
    %v3017 = vadd.f32 0.0, %v3016
    %v3018 = vpop.f32.mrb[0].mxu0
    %v3019 = vpop.f32.mrb[0].mxu0
    %v3020 = vadd.f32 0.0, %v3019
    %v3021 = vpop.f32.mrb[0].mxu0
    %3022 = vdwg.mxu0
    %3027 = vrot.lane.b32.xlu0 %v2797, 32
    %v3028 = vpop.permute.xlu0 %3027
    %3029 = vrot.lane.b32.xlu0 %v2800, 32
    %v3030 = vpop.permute.xlu0 %3029
    %3031 = vrot.lane.b32.xlu0 %v2841, 32
    %v3032 = vpop.permute.xlu0 %3031
    %3033 = vrot.lane.b32.xlu0 %v2844, 32
    %v3034 = vpop.permute.xlu0 %3033
    %3043 = vrot.lane.b32.xlu0 %v2885, 64
    %v3044 = vpop.permute.xlu0 %3043
    %3045 = vrot.lane.b32.xlu0 %v2888, 64
    %v3046 = vpop.permute.xlu0 %3045
    %3047 = vrot.lane.b32.xlu0 %v2929, 64
    %v3048 = vpop.permute.xlu0 %3047
    %3049 = vrot.lane.b32.xlu0 %v2932, 64
    %v3050 = vpop.permute.xlu0 %3049
    %3059 = vrot.lane.b32.xlu0 %v2973, 96
    %v3060 = vpop.permute.xlu0 %3059
    %3061 = vrot.lane.b32.xlu0 %v2976, 96
    %v3062 = vpop.permute.xlu0 %3061
    %3063 = vrot.lane.b32.xlu0 %v3017, 96
    %v3064 = vpop.permute.xlu0 %3063
    %3065 = vrot.lane.b32.xlu0 %v3020, 96
    %v3066 = vpop.permute.xlu0 %3065
    %v3071 = vsel %vm549, %v2709, %v3028
    %v3072 = vsel %vm549, %v2712, %v3030
    %v3073 = vsel %vm549, %v2753, %v3032
    %v3074 = vsel %vm549, %v2756, %v3034
    %v3075 = vsel %vm1547, %v3071, %v3044
    %v3076 = vsel %vm1547, %v3072, %v3046
    %v3077 = vsel %vm1547, %v3073, %v3048
    %v3078 = vsel %vm1547, %v3074, %v3050
    %v3079 = vsel %vm1552, %v3075, %v3060
    %v3080 = vsel %vm1552, %v3076, %v3062
    %v3081 = vsel %vm1552, %v3077, %v3064
    %v3082 = vsel %vm1552, %v3078, %v3066
    %v3083 = vpack.c.bf16 %v3080, %v3079
    %v3084 = vpack.c.bf16 %v3082, %v3081
    %v3085 = vld [vmem:[#allocation13] sm:$0xf]
    %v3086 = vld [vmem:[#allocation13 + $0x4] sm:$0xf]
    %v3087 = vld [vmem:[#allocation13 + $0x8] sm:$0xf]
    %v3088 = vld [vmem:[#allocation13 + $0xc] sm:$0xf]
    %v3089 = vld [vmem:[#allocation13 + $0x10] sm:$0xf]
    %v3090 = vld [vmem:[#allocation13 + $0x14] sm:$0xf]
    %v3091 = vld [vmem:[#allocation13 + $0x18] sm:$0xf]
    %v3092 = vld [vmem:[#allocation13 + $0x1c] sm:$0xf]
    %v3093 = vld [vmem:[#allocation13 + $0x20] sm:$0xf]
    %v3094 = vld [vmem:[#allocation13 + $0x24] sm:$0xf]
    %v3095 = vld [vmem:[#allocation13 + $0x28] sm:$0xf]
    %v3096 = vld [vmem:[#allocation13 + $0x2c] sm:$0xf]
    %v3097 = vld [vmem:[#allocation13 + $0x30] sm:$0xf]
    %v3098 = vld [vmem:[#allocation13 + $0x34] sm:$0xf]
    %v3099 = vld [vmem:[#allocation13 + $0x38] sm:$0xf]
    %v3100 = vld [vmem:[#allocation13 + $0x3c] sm:$0xf]
    %v3101 = vld [vmem:[%s11] sm:$0x1]
    %v3103 = vlaneseq
    %v3104 = vshrl.u32 %v3103, 7
    %v3105 = vsub.s32 0, %v3104
    %v3106 = vrot.slane %v3101, %v3105
    %v3124 = vunpack.c.l.b16 %v3085
    %v3125 = vunpack.c.l.b16 %v3086
    %v3126 = vunpack.c.l.b16 %v3087
    %v3127 = vunpack.c.l.b16 %v3088
    %v3128 = vunpack.c.l.b16 %v3089
    %v3129 = vunpack.c.l.b16 %v3090
    %v3130 = vunpack.c.l.b16 %v3091
    %v3131 = vunpack.c.l.b16 %v3092
    %v3132 = vunpack.c.l.b16 %v3093
    %v3133 = vunpack.c.l.b16 %v3094
    %v3134 = vunpack.c.l.b16 %v3095
    %v3135 = vunpack.c.l.b16 %v3096
    %v3136 = vunpack.c.l.b16 %v3097
    %v3137 = vunpack.c.l.b16 %v3098
    %v3138 = vunpack.c.l.b16 %v3099
    %v3139 = vunpack.c.l.b16 %v3100
    %v3140 = vpack.c.b16 %v3125, %v3124
    %v3141 = vpack.c.b16 %v3127, %v3126
    %v3142 = vpack.c.b16 %v3129, %v3128
    %v3143 = vpack.c.b16 %v3131, %v3130
    %v3144 = vpack.c.b16 %v3133, %v3132
    %v3145 = vpack.c.b16 %v3135, %v3134
    %v3146 = vpack.c.b16 %v3137, %v3136
    %v3147 = vpack.c.b16 %v3139, %v3138
    %3156 = vmatprep.subr.bf16.mxu0 0
    %3157 = vmatpush1.bf16.msra.mxu0 %v3140
    %3158 = vmatprep.subr.bf16.mxu0 0
    %3159 = vmatpush1.bf16.msra.mxu0 %v3141
    %3160 = vmatprep.subr.bf16.mxu0 0
    %3161 = vmatpush1.bf16.msra.mxu0 %v3142
    %3162 = vmatprep.subr.bf16.mxu0 0
    %3163 = vmatpush1.bf16.msra.mxu0 %v3143
    %3164 = vmatprep.subr.bf16.mxu0 0
    %3165 = vmatpush1.bf16.msra.mxu0 %v3144
    %3166 = vmatprep.subr.bf16.mxu0 0
    %3167 = vmatpush1.bf16.msra.mxu0 %v3145
    %3168 = vmatprep.subr.bf16.mxu0 0
    %3169 = vmatpush1.bf16.msra.mxu0 %v3146
    %3170 = vmatprep.subr.bf16.mxu0 0
    %3171 = vmatpush1.bf16.msra.mxu0 %v3147
    %3172 = vmatprep.subr.bf16.mxu0 0
    %3173 = vmatpush1.bf16.msra.mxu0 0
    %3174 = vmatprep.subr.bf16.mxu0 0
    %3175 = vmatpush1.bf16.msra.mxu0 0
    %3176 = vmatprep.subr.bf16.mxu0 0
    %3177 = vmatpush1.bf16.msra.mxu0 0
    %3178 = vmatprep.subr.bf16.mxu0 0
    %3179 = vmatpush1.bf16.msra.mxu0 0
    %3180 = vmatprep.subr.bf16.mxu0 0
    %3181 = vmatpush1.bf16.msra.mxu0 0
    %3182 = vmatprep.subr.bf16.mxu0 0
    %3183 = vmatpush1.bf16.msra.mxu0 0
    %3184 = vmatprep.subr.bf16.mxu0 0
    %3185 = vmatpush1.bf16.msra.mxu0 0
    %3186 = vmatprep.subr.bf16.mxu0 0
    %3187 = vmatpush1.bf16.msra.mxu0 0
    %3188 = vmatprep.mubr.bf16.mxu0 0
    %3189 = vmatmul.mubr.bf16.gmra.mrb[0].mxu0 %v3083
    %v3190 = vpop.f32.mrb[0].mxu0
    %v3191 = vadd.f32 %v3106, %v3190
    %v3192 = vpop.f32.mrb[0].mxu0
    %v3193 = vpop.f32.mrb[0].mxu0
    %v3194 = vadd.f32 %v3106, %v3193
    %v3195 = vpop.f32.mrb[0].mxu0
    %3196 = vmatprep.mubr.bf16.mxu0 0
    %3197 = vmatmul.mubr.bf16.gmra.mrb[0].mxu0 %v3084
    %v3198 = vpop.f32.mrb[0].mxu0
    %v3199 = vadd.f32 %v3106, %v3198
    %v3200 = vpop.f32.mrb[0].mxu0
    %v3201 = vpop.f32.mrb[0].mxu0
    %v3202 = vadd.f32 %v3106, %v3201
    %v3203 = vpop.f32.mrb[0].mxu0
    %3204 = vdwg.mxu0
    %v3205 = vadd.f32 %v1742, %v3191
    %v3206 = vadd.f32 %v1743, %v3194
    %v3207 = vadd.f32 %v1744, %v3199
    %v3208 = vadd.f32 %v1745, %v3202
    %3209 = vadd.xlane.f32.xlu0 %v3205
    %v3210 = vpop.xlane.xlu0 %3209
    %3211 = vadd.xlane.f32.xlu0 %v3206
    %v3212 = vpop.xlane.xlu0 %3211
    %3213 = vadd.xlane.f32.xlu0 %v3207
    %v3214 = vpop.xlane.xlu0 %3213
    %3215 = vadd.xlane.f32.xlu0 %v3208
    %v3216 = vpop.xlane.xlu0 %3215
    %v3217 = vmul.f32 %v3210, %v1691
    %v3218 = vmul.f32 %v3212, %v1691
    %v3219 = vmul.f32 %v3214, %v1691
    %v3220 = vmul.f32 %v3216, %v1691
    %v3221 = vsub.f32 %v3205, %v3217
    %v3222 = vsub.f32 %v3206, %v3218
    %v3223 = vsub.f32 %v3207, %v3219
    %v3224 = vsub.f32 %v3208, %v3220
    %v3225 = vmul.f32 %v3221, %v3221
    %v3226 = vmul.f32 %v3222, %v3222
    %v3227 = vmul.f32 %v3223, %v3223
    %v3228 = vmul.f32 %v3224, %v3224
    %3229 = vadd.xlane.f32.xlu0 %v3225
    %v3230 = vpop.xlane.xlu0 %3229
    %3231 = vadd.xlane.f32.xlu0 %v3226
    %v3232 = vpop.xlane.xlu0 %3231
    %3233 = vadd.xlane.f32.xlu0 %v3227
    %v3234 = vpop.xlane.xlu0 %3233
    %3235 = vadd.xlane.f32.xlu0 %v3228
    %v3236 = vpop.xlane.xlu0 %3235
    %v3237 = vmul.f32 %v3230, %v1691
    %v3238 = vmul.f32 %v3232, %v1691
    %v3239 = vmul.f32 %v3234, %v1691
    %v3240 = vmul.f32 %v3236, %v1691
    %v3241 = vadd.f32 %v3237, 1e-05
    %v3242 = vadd.f32 %v3238, 1e-05
    %v3243 = vadd.f32 %v3239, 1e-05
    %v3244 = vadd.f32 %v3240, 1e-05
    %v3245 = vrsqrt.pop %v3241
    %v3246 = vrsqrt.pop %v3242
    %v3247 = vrsqrt.pop %v3243
    %v3248 = vrsqrt.pop %v3244
    %v3249 = vmul.f32 %v3221, %v3245
    %v3250 = vmul.f32 %v3222, %v3246
    %v3251 = vmul.f32 %v3223, %v3247
    %v3252 = vmul.f32 %v3224, %v3248
    %v3253 = vld [vmem:[%s16 + $0x1] sm:$0x1]
    %v3254 = vlaneseq
    %v3255 = vshrl.u32 %v3254, 7
    %v3256 = vsub.s32 0, %v3255
    %v3257 = vrot.slane %v3253, %v3256
    %v3258 = vmul.f32 %v3249, %v3257
    %v3259 = vmul.f32 %v3250, %v3257
    %v3260 = vmul.f32 %v3251, %v3257
    %v3261 = vmul.f32 %v3252, %v3257
    %v3262 = vld [vmem:[%s17 + $0x1] sm:$0x1]
    %v3263 = vlaneseq
    %v3264 = vshrl.u32 %v3263, 7
    %v3265 = vsub.s32 0, %v3264
    %v3266 = vrot.slane %v3262, %v3265
    %v3267 = vadd.f32 %v3258, %v3266
    %v3268 = vadd.f32 %v3259, %v3266
    %v3269 = vadd.f32 %v3260, %v3266
    %v3270 = vadd.f32 %v3261, %v3266
    %v3271 = vpack.c.bf16 %v3268, %v3267
    %v3272 = vpack.c.bf16 %v3270, %v3269
    %v3273 = vld [vmem:[#allocation14] sm:$0xff]
    %v3274 = vld [vmem:[#allocation14 + $0x8] sm:$0xff]
    %v3275 = vld [vmem:[#allocation14 + $0x10] sm:$0xff]
    %v3276 = vld [vmem:[#allocation14 + $0x18] sm:$0xff]
    %v3277 = vld [vmem:[#allocation14 + $0x20] sm:$0xff]
    %v3278 = vld [vmem:[#allocation14 + $0x28] sm:$0xff]
    %v3279 = vld [vmem:[#allocation14 + $0x30] sm:$0xff]
    %v3280 = vld [vmem:[#allocation14 + $0x38] sm:$0xff]
    %v3281 = vld [vmem:[#allocation14 + $0x40] sm:$0xff]
    %v3282 = vld [vmem:[#allocation14 + $0x48] sm:$0xff]
    %v3283 = vld [vmem:[#allocation14 + $0x50] sm:$0xff]
    %v3284 = vld [vmem:[#allocation14 + $0x58] sm:$0xff]
    %v3285 = vld [vmem:[#allocation14 + $0x60] sm:$0xff]
    %v3286 = vld [vmem:[#allocation14 + $0x68] sm:$0xff]
    %v3287 = vld [vmem:[#allocation14 + $0x70] sm:$0xff]
    %v3288 = vld [vmem:[#allocation14 + $0x78] sm:$0xff]
    %v3289 = vld [vmem:[#allocation14 + $0x80] sm:$0xff]
    %v3290 = vld [vmem:[#allocation14 + $0x88] sm:$0xff]
    %v3291 = vld [vmem:[#allocation14 + $0x90] sm:$0xff]
    %v3292 = vld [vmem:[#allocation14 + $0x98] sm:$0xff]
    %v3293 = vld [vmem:[#allocation14 + $0xa0] sm:$0xff]
    %v3294 = vld [vmem:[#allocation14 + $0xa8] sm:$0xff]
    %v3295 = vld [vmem:[#allocation14 + $0xb0] sm:$0xff]
    %v3296 = vld [vmem:[#allocation14 + $0xb8] sm:$0xff]
    %v3297 = vld [vmem:[#allocation14 + $0xc0] sm:$0xff]
    %v3298 = vld [vmem:[#allocation14 + $0xc8] sm:$0xff]
    %v3299 = vld [vmem:[#allocation14 + $0xd0] sm:$0xff]
    %v3300 = vld [vmem:[#allocation14 + $0xd8] sm:$0xff]
    %v3301 = vld [vmem:[#allocation14 + $0xe0] sm:$0xff]
    %v3302 = vld [vmem:[#allocation14 + $0xe8] sm:$0xff]
    %v3303 = vld [vmem:[#allocation14 + $0xf0] sm:$0xff]
    %v3304 = vld [vmem:[#allocation14 + $0xf8] sm:$0xff]
    %v3305 = vld [vmem:[%s13] sm:$0xf]
    %v3307 = vlaneseq
    %v3308 = vshrl.u32 %v3307, 7
    %v3309 = vsub.s32 0, %v3308
    %v3310 = vrot.slane %v3305, %v3309
    %v3311 = vlaneseq
    %v3312 = vshrl.u32 %v3311, 7
    %v3313 = vsub.s32 1, %v3312
    %v3314 = vrot.slane %v3305, %v3313
    %v3315 = vlaneseq
    %v3316 = vshrl.u32 %v3315, 7
    %v3317 = vsub.s32 2, %v3316
    %v3318 = vrot.slane %v3305, %v3317
    %v3319 = vlaneseq
    %v3320 = vshrl.u32 %v3319, 7
    %v3321 = vsub.s32 3, %v3320
    %v3322 = vrot.slane %v3305, %v3321
    %v3359 = vunpack.c.l.b16 %v3273
    %v3360 = vunpack.c.h.b16 %v3273
    %v3361 = vunpack.c.l.b16 %v3274
    %v3362 = vunpack.c.h.b16 %v3274
    %v3363 = vunpack.c.l.b16 %v3275
    %v3364 = vunpack.c.h.b16 %v3275
    %v3365 = vunpack.c.l.b16 %v3276
    %v3366 = vunpack.c.h.b16 %v3276
    %v3367 = vunpack.c.l.b16 %v3277
    %v3368 = vunpack.c.h.b16 %v3277
    %v3369 = vunpack.c.l.b16 %v3278
    %v3370 = vunpack.c.h.b16 %v3278
    %v3371 = vunpack.c.l.b16 %v3279
    %v3372 = vunpack.c.h.b16 %v3279
    %v3373 = vunpack.c.l.b16 %v3280
    %v3374 = vunpack.c.h.b16 %v3280
    %v3375 = vunpack.c.l.b16 %v3281
    %v3376 = vunpack.c.h.b16 %v3281
    %v3377 = vunpack.c.l.b16 %v3282
    %v3378 = vunpack.c.h.b16 %v3282
    %v3379 = vunpack.c.l.b16 %v3283
    %v3380 = vunpack.c.h.b16 %v3283
    %v3381 = vunpack.c.l.b16 %v3284
    %v3382 = vunpack.c.h.b16 %v3284
    %v3383 = vunpack.c.l.b16 %v3285
    %v3384 = vunpack.c.h.b16 %v3285
    %v3385 = vunpack.c.l.b16 %v3286
    %v3386 = vunpack.c.h.b16 %v3286
    %v3387 = vunpack.c.l.b16 %v3287
    %v3388 = vunpack.c.h.b16 %v3287
    %v3389 = vunpack.c.l.b16 %v3288
    %v3390 = vunpack.c.h.b16 %v3288
    %v3391 = vunpack.c.l.b16 %v3289
    %v3392 = vunpack.c.h.b16 %v3289
    %v3393 = vunpack.c.l.b16 %v3290
    %v3394 = vunpack.c.h.b16 %v3290
    %v3395 = vunpack.c.l.b16 %v3291
    %v3396 = vunpack.c.h.b16 %v3291
    %v3397 = vunpack.c.l.b16 %v3292
    %v3398 = vunpack.c.h.b16 %v3292
    %v3399 = vunpack.c.l.b16 %v3293
    %v3400 = vunpack.c.h.b16 %v3293
    %v3401 = vunpack.c.l.b16 %v3294
    %v3402 = vunpack.c.h.b16 %v3294
    %v3403 = vunpack.c.l.b16 %v3295
    %v3404 = vunpack.c.h.b16 %v3295
    %v3405 = vunpack.c.l.b16 %v3296
    %v3406 = vunpack.c.h.b16 %v3296
    %v3407 = vunpack.c.l.b16 %v3297
    %v3408 = vunpack.c.h.b16 %v3297
    %v3409 = vunpack.c.l.b16 %v3298
    %v3410 = vunpack.c.h.b16 %v3298
    %v3411 = vunpack.c.l.b16 %v3299
    %v3412 = vunpack.c.h.b16 %v3299
    %v3413 = vunpack.c.l.b16 %v3300
    %v3414 = vunpack.c.h.b16 %v3300
    %v3415 = vunpack.c.l.b16 %v3301
    %v3416 = vunpack.c.h.b16 %v3301
    %v3417 = vunpack.c.l.b16 %v3302
    %v3418 = vunpack.c.h.b16 %v3302
    %v3419 = vunpack.c.l.b16 %v3303
    %v3420 = vunpack.c.h.b16 %v3303
    %v3421 = vunpack.c.l.b16 %v3304
    %v3422 = vunpack.c.h.b16 %v3304
    %v3423 = vpack.c.b16 %v3363, %v3359
    %v3424 = vpack.c.b16 %v3364, %v3360
    %v3425 = vpack.c.b16 %v3365, %v3361
    %v3426 = vpack.c.b16 %v3366, %v3362
    %v3427 = vpack.c.b16 %v3371, %v3367
    %v3428 = vpack.c.b16 %v3372, %v3368
    %v3429 = vpack.c.b16 %v3373, %v3369
    %v3430 = vpack.c.b16 %v3374, %v3370
    %v3431 = vpack.c.b16 %v3379, %v3375
    %v3432 = vpack.c.b16 %v3380, %v3376
    %v3433 = vpack.c.b16 %v3381, %v3377
    %v3434 = vpack.c.b16 %v3382, %v3378
    %v3435 = vpack.c.b16 %v3387, %v3383
    %v3436 = vpack.c.b16 %v3388, %v3384
    %v3437 = vpack.c.b16 %v3389, %v3385
    %v3438 = vpack.c.b16 %v3390, %v3386
    %v3439 = vpack.c.b16 %v3395, %v3391
    %v3440 = vpack.c.b16 %v3396, %v3392
    %v3441 = vpack.c.b16 %v3397, %v3393
    %v3442 = vpack.c.b16 %v3398, %v3394
    %v3443 = vpack.c.b16 %v3403, %v3399
    %v3444 = vpack.c.b16 %v3404, %v3400
    %v3445 = vpack.c.b16 %v3405, %v3401
    %v3446 = vpack.c.b16 %v3406, %v3402
    %v3447 = vpack.c.b16 %v3411, %v3407
    %v3448 = vpack.c.b16 %v3412, %v3408
    %v3449 = vpack.c.b16 %v3413, %v3409
    %v3450 = vpack.c.b16 %v3414, %v3410
    %v3451 = vpack.c.b16 %v3419, %v3415
    %v3452 = vpack.c.b16 %v3420, %v3416
    %v3453 = vpack.c.b16 %v3421, %v3417
    %v3454 = vpack.c.b16 %v3422, %v3418
    %3487 = vmatprep.subr.bf16.mxu0 %v3424
    %3488 = vmatpush1.bf16.msra.mxu0 %v3423
    %3489 = vmatprep.subr.bf16.mxu0 %v3428
    %3490 = vmatpush1.bf16.msra.mxu0 %v3427
    %3491 = vmatprep.subr.bf16.mxu0 %v3432
    %3492 = vmatpush1.bf16.msra.mxu0 %v3431
    %3493 = vmatprep.subr.bf16.mxu0 %v3436
    %3494 = vmatpush1.bf16.msra.mxu0 %v3435
    %3495 = vmatprep.subr.bf16.mxu0 %v3440
    %3496 = vmatpush1.bf16.msra.mxu0 %v3439
    %3497 = vmatprep.subr.bf16.mxu0 %v3444
    %3498 = vmatpush1.bf16.msra.mxu0 %v3443
    %3499 = vmatprep.subr.bf16.mxu0 %v3448
    %3500 = vmatpush1.bf16.msra.mxu0 %v3447
    %3501 = vmatprep.subr.bf16.mxu0 %v3452
    %3502 = vmatpush1.bf16.msra.mxu0 %v3451
    %3503 = vmatprep.subr.bf16.mxu0 0
    %3504 = vmatpush1.bf16.msra.mxu0 0
    %3505 = vmatprep.subr.bf16.mxu0 0
    %3506 = vmatpush1.bf16.msra.mxu0 0
    %3507 = vmatprep.subr.bf16.mxu0 0
    %3508 = vmatpush1.bf16.msra.mxu0 0
    %3509 = vmatprep.subr.bf16.mxu0 0
    %3510 = vmatpush1.bf16.msra.mxu0 0
    %3511 = vmatprep.subr.bf16.mxu0 0
    %3512 = vmatpush1.bf16.msra.mxu0 0
    %3513 = vmatprep.subr.bf16.mxu0 0
    %3514 = vmatpush1.bf16.msra.mxu0 0
    %3515 = vmatprep.subr.bf16.mxu0 0
    %3516 = vmatpush1.bf16.msra.mxu0 0
    %3517 = vmatprep.subr.bf16.mxu0 0
    %3518 = vmatpush1.bf16.msra.mxu0 0
    %3519 = vmatprep.mubr.bf16.mxu0 0
    %3520 = vmatmul.mubr.bf16.gmra.mrb[0].mxu0 %v3271
    %v3521 = vpop.f32.mrb[0].mxu0
    %v3522 = vadd.f32 %v3310, %v3521
    %v3523 = vpop.f32.mrb[0].mxu0
    %v3524 = vadd.f32 %v3314, %v3523
    %v3525 = vpop.f32.mrb[0].mxu0
    %v3526 = vadd.f32 %v3310, %v3525
    %v3527 = vpop.f32.mrb[0].mxu0
    %v3528 = vadd.f32 %v3314, %v3527
    %3529 = vmatprep.mubr.bf16.mxu0 0
    %3530 = vmatmul.mubr.bf16.gmra.mrb[0].mxu0 %v3272
    %v3531 = vpop.f32.mrb[0].mxu0
    %v3532 = vadd.f32 %v3310, %v3531
    %v3533 = vpop.f32.mrb[0].mxu0
    %v3534 = vadd.f32 %v3314, %v3533
    %v3535 = vpop.f32.mrb[0].mxu0
    %v3536 = vadd.f32 %v3310, %v3535
    %v3537 = vpop.f32.mrb[0].mxu0
    %v3538 = vadd.f32 %v3314, %v3537
    %3539 = vdwg.mxu0
    %3540 = vmatprep.subr.bf16.mxu0 %v3426
    %3541 = vmatpush1.bf16.msra.mxu0 %v3425
    %3542 = vmatprep.subr.bf16.mxu0 %v3430
    %3543 = vmatpush1.bf16.msra.mxu0 %v3429
    %3544 = vmatprep.subr.bf16.mxu0 %v3434
    %3545 = vmatpush1.bf16.msra.mxu0 %v3433
    %3546 = vmatprep.subr.bf16.mxu0 %v3438
    %3547 = vmatpush1.bf16.msra.mxu0 %v3437
    %3548 = vmatprep.subr.bf16.mxu0 %v3442
    %3549 = vmatpush1.bf16.msra.mxu0 %v3441
    %3550 = vmatprep.subr.bf16.mxu0 %v3446
    %3551 = vmatpush1.bf16.msra.mxu0 %v3445
    %3552 = vmatprep.subr.bf16.mxu0 %v3450
    %3553 = vmatpush1.bf16.msra.mxu0 %v3449
    %3554 = vmatprep.subr.bf16.mxu0 %v3454
    %3555 = vmatpush1.bf16.msra.mxu0 %v3453
    %3556 = vmatprep.subr.bf16.mxu0 0
    %3557 = vmatpush1.bf16.msra.mxu0 0
    %3558 = vmatprep.subr.bf16.mxu0 0
    %3559 = vmatpush1.bf16.msra.mxu0 0
    %3560 = vmatprep.subr.bf16.mxu0 0
    %3561 = vmatpush1.bf16.msra.mxu0 0
    %3562 = vmatprep.subr.bf16.mxu0 0
    %3563 = vmatpush1.bf16.msra.mxu0 0
    %3564 = vmatprep.subr.bf16.mxu0 0
    %3565 = vmatpush1.bf16.msra.mxu0 0
    %3566 = vmatprep.subr.bf16.mxu0 0
    %3567 = vmatpush1.bf16.msra.mxu0 0
    %3568 = vmatprep.subr.bf16.mxu0 0
    %3569 = vmatpush1.bf16.msra.mxu0 0
    %3570 = vmatprep.subr.bf16.mxu0 0
    %3571 = vmatpush1.bf16.msra.mxu0 0
    %3572 = vmatprep.mubr.bf16.mxu0 0
    %3573 = vmatmul.mubr.bf16.gmra.mrb[0].mxu0 %v3271
    %v3574 = vpop.f32.mrb[0].mxu0
    %v3575 = vadd.f32 %v3318, %v3574
    %v3576 = vpop.f32.mrb[0].mxu0
    %v3577 = vadd.f32 %v3322, %v3576
    %v3578 = vpop.f32.mrb[0].mxu0
    %v3579 = vadd.f32 %v3318, %v3578
    %v3580 = vpop.f32.mrb[0].mxu0
    %v3581 = vadd.f32 %v3322, %v3580
    %3582 = vmatprep.mubr.bf16.mxu0 0
    %3583 = vmatmul.mubr.bf16.gmra.mrb[0].mxu0 %v3272
    %v3584 = vpop.f32.mrb[0].mxu0
    %v3585 = vadd.f32 %v3318, %v3584
    %v3586 = vpop.f32.mrb[0].mxu0
    %v3587 = vadd.f32 %v3322, %v3586
    %v3588 = vpop.f32.mrb[0].mxu0
    %v3589 = vadd.f32 %v3318, %v3588
    %v3590 = vpop.f32.mrb[0].mxu0
    %v3591 = vadd.f32 %v3322, %v3590
    %3592 = vdwg.mxu0
    %v3593 = vmul.f32 %v3522, 0.5
    %v3594 = vmul.f32 %v3524, 0.5
    %v3595 = vmul.f32 %v3575, 0.5
    %v3596 = vmul.f32 %v3577, 0.5
    %v3597 = vmul.f32 %v3526, 0.5
    %v3598 = vmul.f32 %v3528, 0.5
    %v3599 = vmul.f32 %v3579, 0.5
    %v3600 = vmul.f32 %v3581, 0.5
    %v3601 = vmul.f32 %v3532, 0.5
    %v3602 = vmul.f32 %v3534, 0.5
    %v3603 = vmul.f32 %v3585, 0.5
    %v3604 = vmul.f32 %v3587, 0.5
    %v3605 = vmul.f32 %v3536, 0.5
    %v3606 = vmul.f32 %v3538, 0.5
    %v3607 = vmul.f32 %v3589, 0.5
    %v3608 = vmul.f32 %v3591, 0.5
    %v3609 = vmul.f32 %v3522, 0.70710677
    %v3610 = vmul.f32 %v3524, 0.70710677
    %v3611 = vmul.f32 %v3575, 0.70710677
    %v3612 = vmul.f32 %v3577, 0.70710677
    %v3613 = vmul.f32 %v3526, 0.70710677
    %v3614 = vmul.f32 %v3528, 0.70710677
    %v3615 = vmul.f32 %v3579, 0.70710677
    %v3616 = vmul.f32 %v3581, 0.70710677
    %v3617 = vmul.f32 %v3532, 0.70710677
    %v3618 = vmul.f32 %v3534, 0.70710677
    %v3619 = vmul.f32 %v3585, 0.70710677
    %v3620 = vmul.f32 %v3587, 0.70710677
    %v3621 = vmul.f32 %v3536, 0.70710677
    %v3622 = vmul.f32 %v3538, 0.70710677
    %v3623 = vmul.f32 %v3589, 0.70710677
    %v3624 = vmul.f32 %v3591, 0.70710677
    %v3625 = verf.f32.pop %v3609
    %v3626 = verf.f32.pop %v3610
    %v3627 = verf.f32.pop %v3611
    %v3628 = verf.f32.pop %v3612
    %v3629 = verf.f32.pop %v3613
    %v3630 = verf.f32.pop %v3614
    %v3631 = verf.f32.pop %v3615
    %v3632 = verf.f32.pop %v3616
    %v3633 = verf.f32.pop %v3617
    %v3634 = verf.f32.pop %v3618
    %v3635 = verf.f32.pop %v3619
    %v3636 = verf.f32.pop %v3620
    %v3637 = verf.f32.pop %v3621
    %v3638 = verf.f32.pop %v3622
    %v3639 = verf.f32.pop %v3623
    %v3640 = verf.f32.pop %v3624
    %v3641 = vadd.f32 %v3625, 1.0
    %v3642 = vadd.f32 %v3626, 1.0
    %v3643 = vadd.f32 %v3627, 1.0
    %v3644 = vadd.f32 %v3628, 1.0
    %v3645 = vadd.f32 %v3629, 1.0
    %v3646 = vadd.f32 %v3630, 1.0
    %v3647 = vadd.f32 %v3631, 1.0
    %v3648 = vadd.f32 %v3632, 1.0
    %v3649 = vadd.f32 %v3633, 1.0
    %v3650 = vadd.f32 %v3634, 1.0
    %v3651 = vadd.f32 %v3635, 1.0
    %v3652 = vadd.f32 %v3636, 1.0
    %v3653 = vadd.f32 %v3637, 1.0
    %v3654 = vadd.f32 %v3638, 1.0
    %v3655 = vadd.f32 %v3639, 1.0
    %v3656 = vadd.f32 %v3640, 1.0
    %v3657 = vmul.f32 %v3593, %v3641
    %v3658 = vmul.f32 %v3594, %v3642
    %v3659 = vmul.f32 %v3595, %v3643
    %v3660 = vmul.f32 %v3596, %v3644
    %v3661 = vmul.f32 %v3597, %v3645
    %v3662 = vmul.f32 %v3598, %v3646
    %v3663 = vmul.f32 %v3599, %v3647
    %v3664 = vmul.f32 %v3600, %v3648
    %v3665 = vmul.f32 %v3601, %v3649
    %v3666 = vmul.f32 %v3602, %v3650
    %v3667 = vmul.f32 %v3603, %v3651
    %v3668 = vmul.f32 %v3604, %v3652
    %v3669 = vmul.f32 %v3605, %v3653
    %v3670 = vmul.f32 %v3606, %v3654
    %v3671 = vmul.f32 %v3607, %v3655
    %v3672 = vmul.f32 %v3608, %v3656
    %v3673 = vpack.c.bf16 %v3661, %v3657
    %v3674 = vpack.c.bf16 %v3662, %v3658
    %v3675 = vpack.c.bf16 %v3663, %v3659
    %v3676 = vpack.c.bf16 %v3664, %v3660
    %v3677 = vpack.c.bf16 %v3669, %v3665
    %v3678 = vpack.c.bf16 %v3670, %v3666
    %v3679 = vpack.c.bf16 %v3671, %v3667
    %v3680 = vpack.c.bf16 %v3672, %v3668
    %v3681 = vld [vmem:[#allocation16] sm:$0xf]
    %v3682 = vld [vmem:[#allocation16 + $0x4] sm:$0xf]
    %v3683 = vld [vmem:[#allocation16 + $0x8] sm:$0xf]
    %v3684 = vld [vmem:[#allocation16 + $0xc] sm:$0xf]
    %v3685 = vld [vmem:[#allocation16 + $0x10] sm:$0xf]
    %v3686 = vld [vmem:[#allocation16 + $0x14] sm:$0xf]
    %v3687 = vld [vmem:[#allocation16 + $0x18] sm:$0xf]
    %v3688 = vld [vmem:[#allocation16 + $0x1c] sm:$0xf]
    %v3689 = vld [vmem:[#allocation16 + $0x20] sm:$0xf]
    %v3690 = vld [vmem:[#allocation16 + $0x24] sm:$0xf]
    %v3691 = vld [vmem:[#allocation16 + $0x28] sm:$0xf]
    %v3692 = vld [vmem:[#allocation16 + $0x2c] sm:$0xf]
    %v3693 = vld [vmem:[#allocation16 + $0x30] sm:$0xf]
    %v3694 = vld [vmem:[#allocation16 + $0x34] sm:$0xf]
    %v3695 = vld [vmem:[#allocation16 + $0x38] sm:$0xf]
    %v3696 = vld [vmem:[#allocation16 + $0x3c] sm:$0xf]
    %v3697 = vld [vmem:[#allocation16 + $0x40] sm:$0xf]
    %v3698 = vld [vmem:[#allocation16 + $0x44] sm:$0xf]
    %v3699 = vld [vmem:[#allocation16 + $0x48] sm:$0xf]
    %v3700 = vld [vmem:[#allocation16 + $0x4c] sm:$0xf]
    %v3701 = vld [vmem:[#allocation16 + $0x50] sm:$0xf]
    %v3702 = vld [vmem:[#allocation16 + $0x54] sm:$0xf]
    %v3703 = vld [vmem:[#allocation16 + $0x58] sm:$0xf]
    %v3704 = vld [vmem:[#allocation16 + $0x5c] sm:$0xf]
    %v3705 = vld [vmem:[#allocation16 + $0x60] sm:$0xf]
    %v3706 = vld [vmem:[#allocation16 + $0x64] sm:$0xf]
    %v3707 = vld [vmem:[#allocation16 + $0x68] sm:$0xf]
    %v3708 = vld [vmem:[#allocation16 + $0x6c] sm:$0xf]
    %v3709 = vld [vmem:[#allocation16 + $0x70] sm:$0xf]
    %v3710 = vld [vmem:[#allocation16 + $0x74] sm:$0xf]
    %v3711 = vld [vmem:[#allocation16 + $0x78] sm:$0xf]
    %v3712 = vld [vmem:[#allocation16 + $0x7c] sm:$0xf]
    %v3713 = vld [vmem:[#allocation16 + $0x80] sm:$0xf]
    %v3714 = vld [vmem:[#allocation16 + $0x84] sm:$0xf]
    %v3715 = vld [vmem:[#allocation16 + $0x88] sm:$0xf]
    %v3716 = vld [vmem:[#allocation16 + $0x8c] sm:$0xf]
    %v3717 = vld [vmem:[#allocation16 + $0x90] sm:$0xf]
    %v3718 = vld [vmem:[#allocation16 + $0x94] sm:$0xf]
    %v3719 = vld [vmem:[#allocation16 + $0x98] sm:$0xf]
    %v3720 = vld [vmem:[#allocation16 + $0x9c] sm:$0xf]
    %v3721 = vld [vmem:[#allocation16 + $0xa0] sm:$0xf]
    %v3722 = vld [vmem:[#allocation16 + $0xa4] sm:$0xf]
    %v3723 = vld [vmem:[#allocation16 + $0xa8] sm:$0xf]
    %v3724 = vld [vmem:[#allocation16 + $0xac] sm:$0xf]
    %v3725 = vld [vmem:[#allocation16 + $0xb0] sm:$0xf]
    %v3726 = vld [vmem:[#allocation16 + $0xb4] sm:$0xf]
    %v3727 = vld [vmem:[#allocation16 + $0xb8] sm:$0xf]
    %v3728 = vld [vmem:[#allocation16 + $0xbc] sm:$0xf]
    %v3729 = vld [vmem:[#allocation16 + $0xc0] sm:$0xf]
    %v3730 = vld [vmem:[#allocation16 + $0xc4] sm:$0xf]
    %v3731 = vld [vmem:[#allocation16 + $0xc8] sm:$0xf]
    %v3732 = vld [vmem:[#allocation16 + $0xcc] sm:$0xf]
    %v3733 = vld [vmem:[#allocation16 + $0xd0] sm:$0xf]
    %v3734 = vld [vmem:[#allocation16 + $0xd4] sm:$0xf]
    %v3735 = vld [vmem:[#allocation16 + $0xd8] sm:$0xf]
    %v3736 = vld [vmem:[#allocation16 + $0xdc] sm:$0xf]
    %v3737 = vld [vmem:[#allocation16 + $0xe0] sm:$0xf]
    %v3738 = vld [vmem:[#allocation16 + $0xe4] sm:$0xf]
    %v3739 = vld [vmem:[#allocation16 + $0xe8] sm:$0xf]
    %v3740 = vld [vmem:[#allocation16 + $0xec] sm:$0xf]
    %v3741 = vld [vmem:[#allocation16 + $0xf0] sm:$0xf]
    %v3742 = vld [vmem:[#allocation16 + $0xf4] sm:$0xf]
    %v3743 = vld [vmem:[#allocation16 + $0xf8] sm:$0xf]
    %v3744 = vld [vmem:[#allocation16 + $0xfc] sm:$0xf]
    %v3745 = vld [vmem:[%s15] sm:$0x1]
    %v3747 = vlaneseq
    %v3748 = vshrl.u32 %v3747, 7
    %v3749 = vsub.s32 0, %v3748
    %v3750 = vrot.slane %v3745, %v3749
    %v3816 = vunpack.c.l.b16 %v3681
    %v3817 = vunpack.c.l.b16 %v3682
    %v3818 = vunpack.c.l.b16 %v3683
    %v3819 = vunpack.c.l.b16 %v3684
    %v3820 = vunpack.c.l.b16 %v3685
    %v3821 = vunpack.c.l.b16 %v3686
    %v3822 = vunpack.c.l.b16 %v3687
    %v3823 = vunpack.c.l.b16 %v3688
    %v3824 = vunpack.c.l.b16 %v3689
    %v3825 = vunpack.c.l.b16 %v3690
    %v3826 = vunpack.c.l.b16 %v3691
    %v3827 = vunpack.c.l.b16 %v3692
    %v3828 = vunpack.c.l.b16 %v3693
    %v3829 = vunpack.c.l.b16 %v3694
    %v3830 = vunpack.c.l.b16 %v3695
    %v3831 = vunpack.c.l.b16 %v3696
    %v3832 = vunpack.c.l.b16 %v3697
    %v3833 = vunpack.c.l.b16 %v3698
    %v3834 = vunpack.c.l.b16 %v3699
    %v3835 = vunpack.c.l.b16 %v3700
    %v3836 = vunpack.c.l.b16 %v3701
    %v3837 = vunpack.c.l.b16 %v3702
    %v3838 = vunpack.c.l.b16 %v3703
    %v3839 = vunpack.c.l.b16 %v3704
    %v3840 = vunpack.c.l.b16 %v3705
    %v3841 = vunpack.c.l.b16 %v3706
    %v3842 = vunpack.c.l.b16 %v3707
    %v3843 = vunpack.c.l.b16 %v3708
    %v3844 = vunpack.c.l.b16 %v3709
    %v3845 = vunpack.c.l.b16 %v3710
    %v3846 = vunpack.c.l.b16 %v3711
    %v3847 = vunpack.c.l.b16 %v3712
    %v3848 = vunpack.c.l.b16 %v3713
    %v3849 = vunpack.c.l.b16 %v3714
    %v3850 = vunpack.c.l.b16 %v3715
    %v3851 = vunpack.c.l.b16 %v3716
    %v3852 = vunpack.c.l.b16 %v3717
    %v3853 = vunpack.c.l.b16 %v3718
    %v3854 = vunpack.c.l.b16 %v3719
    %v3855 = vunpack.c.l.b16 %v3720
    %v3856 = vunpack.c.l.b16 %v3721
    %v3857 = vunpack.c.l.b16 %v3722
    %v3858 = vunpack.c.l.b16 %v3723
    %v3859 = vunpack.c.l.b16 %v3724
    %v3860 = vunpack.c.l.b16 %v3725
    %v3861 = vunpack.c.l.b16 %v3726
    %v3862 = vunpack.c.l.b16 %v3727
    %v3863 = vunpack.c.l.b16 %v3728
    %v3864 = vunpack.c.l.b16 %v3729
    %v3865 = vunpack.c.l.b16 %v3730
    %v3866 = vunpack.c.l.b16 %v3731
    %v3867 = vunpack.c.l.b16 %v3732
    %v3868 = vunpack.c.l.b16 %v3733
    %v3869 = vunpack.c.l.b16 %v3734
    %v3870 = vunpack.c.l.b16 %v3735
    %v3871 = vunpack.c.l.b16 %v3736
    %v3872 = vunpack.c.l.b16 %v3737
    %v3873 = vunpack.c.l.b16 %v3738
    %v3874 = vunpack.c.l.b16 %v3739
    %v3875 = vunpack.c.l.b16 %v3740
    %v3876 = vunpack.c.l.b16 %v3741
    %v3877 = vunpack.c.l.b16 %v3742
    %v3878 = vunpack.c.l.b16 %v3743
    %v3879 = vunpack.c.l.b16 %v3744
    %v3880 = vpack.c.b16 %v3817, %v3816
    %v3881 = vpack.c.b16 %v3819, %v3818
    %v3882 = vpack.c.b16 %v3821, %v3820
    %v3883 = vpack.c.b16 %v3823, %v3822
    %v3884 = vpack.c.b16 %v3825, %v3824
    %v3885 = vpack.c.b16 %v3827, %v3826
    %v3886 = vpack.c.b16 %v3829, %v3828
    %v3887 = vpack.c.b16 %v3831, %v3830
    %v3888 = vpack.c.b16 %v3833, %v3832
    %v3889 = vpack.c.b16 %v3835, %v3834
    %v3890 = vpack.c.b16 %v3837, %v3836
    %v3891 = vpack.c.b16 %v3839, %v3838
    %v3892 = vpack.c.b16 %v3841, %v3840
    %v3893 = vpack.c.b16 %v3843, %v3842
    %v3894 = vpack.c.b16 %v3845, %v3844
    %v3895 = vpack.c.b16 %v3847, %v3846
    %v3896 = vpack.c.b16 %v3849, %v3848
    %v3897 = vpack.c.b16 %v3851, %v3850
    %v3898 = vpack.c.b16 %v3853, %v3852
    %v3899 = vpack.c.b16 %v3855, %v3854
    %v3900 = vpack.c.b16 %v3857, %v3856
    %v3901 = vpack.c.b16 %v3859, %v3858
    %v3902 = vpack.c.b16 %v3861, %v3860
    %v3903 = vpack.c.b16 %v3863, %v3862
    %v3904 = vpack.c.b16 %v3865, %v3864
    %v3905 = vpack.c.b16 %v3867, %v3866
    %v3906 = vpack.c.b16 %v3869, %v3868
    %v3907 = vpack.c.b16 %v3871, %v3870
    %v3908 = vpack.c.b16 %v3873, %v3872
    %v3909 = vpack.c.b16 %v3875, %v3874
    %v3910 = vpack.c.b16 %v3877, %v3876
    %v3911 = vpack.c.b16 %v3879, %v3878
    %3944 = vmatprep.subr.bf16.mxu0 0
    %3945 = vmatpush1.bf16.msra.mxu0 %v3880
    %3946 = vmatprep.subr.bf16.mxu0 0
    %3947 = vmatpush1.bf16.msra.mxu0 %v3881
    %3948 = vmatprep.subr.bf16.mxu0 0
    %3949 = vmatpush1.bf16.msra.mxu0 %v3882
    %3950 = vmatprep.subr.bf16.mxu0 0
    %3951 = vmatpush1.bf16.msra.mxu0 %v3883
    %3952 = vmatprep.subr.bf16.mxu0 0
    %3953 = vmatpush1.bf16.msra.mxu0 %v3884
    %3954 = vmatprep.subr.bf16.mxu0 0
    %3955 = vmatpush1.bf16.msra.mxu0 %v3885
    %3956 = vmatprep.subr.bf16.mxu0 0
    %3957 = vmatpush1.bf16.msra.mxu0 %v3886
    %3958 = vmatprep.subr.bf16.mxu0 0
    %3959 = vmatpush1.bf16.msra.mxu0 %v3887
    %3960 = vmatprep.subr.bf16.mxu0 0
    %3961 = vmatpush1.bf16.msra.mxu0 %v3888
    %3962 = vmatprep.subr.bf16.mxu0 0
    %3963 = vmatpush1.bf16.msra.mxu0 %v3889
    %3964 = vmatprep.subr.bf16.mxu0 0
    %3965 = vmatpush1.bf16.msra.mxu0 %v3890
    %3966 = vmatprep.subr.bf16.mxu0 0
    %3967 = vmatpush1.bf16.msra.mxu0 %v3891
    %3968 = vmatprep.subr.bf16.mxu0 0
    %3969 = vmatpush1.bf16.msra.mxu0 %v3892
    %3970 = vmatprep.subr.bf16.mxu0 0
    %3971 = vmatpush1.bf16.msra.mxu0 %v3893
    %3972 = vmatprep.subr.bf16.mxu0 0
    %3973 = vmatpush1.bf16.msra.mxu0 %v3894
    %3974 = vmatprep.subr.bf16.mxu0 0
    %3975 = vmatpush1.bf16.msra.mxu0 %v3895
    %3976 = vmatprep.mubr.bf16.mxu0 %v3674
    %3977 = vmatmul.mubr.bf16.gmra.mrb[0].mxu0 %v3673
    %v3978 = vpop.f32.mrb[0].mxu0
    %v3979 = vadd.f32 %v3750, %v3978
    %v3980 = vpop.f32.mrb[0].mxu0
    %v3981 = vpop.f32.mrb[0].mxu0
    %v3982 = vadd.f32 %v3750, %v3981
    %v3983 = vpop.f32.mrb[0].mxu0
    %3984 = vmatprep.mubr.bf16.mxu0 %v3678
    %3985 = vmatmul.mubr.bf16.gmra.mrb[0].mxu0 %v3677
    %v3986 = vpop.f32.mrb[0].mxu0
    %v3987 = vadd.f32 %v3750, %v3986
    %v3988 = vpop.f32.mrb[0].mxu0
    %v3989 = vpop.f32.mrb[0].mxu0
    %v3990 = vadd.f32 %v3750, %v3989
    %v3991 = vpop.f32.mrb[0].mxu0
    %3992 = vdwg.mxu0
    %3993 = vmatprep.subr.bf16.mxu0 0
    %3994 = vmatpush1.bf16.msra.mxu0 %v3896
    %3995 = vmatprep.subr.bf16.mxu0 0
    %3996 = vmatpush1.bf16.msra.mxu0 %v3897
    %3997 = vmatprep.subr.bf16.mxu0 0
    %3998 = vmatpush1.bf16.msra.mxu0 %v3898
    %3999 = vmatprep.subr.bf16.mxu0 0
    %4000 = vmatpush1.bf16.msra.mxu0 %v3899
    %4001 = vmatprep.subr.bf16.mxu0 0
    %4002 = vmatpush1.bf16.msra.mxu0 %v3900
    %4003 = vmatprep.subr.bf16.mxu0 0
    %4004 = vmatpush1.bf16.msra.mxu0 %v3901
    %4005 = vmatprep.subr.bf16.mxu0 0
    %4006 = vmatpush1.bf16.msra.mxu0 %v3902
    %4007 = vmatprep.subr.bf16.mxu0 0
    %4008 = vmatpush1.bf16.msra.mxu0 %v3903
    %4009 = vmatprep.subr.bf16.mxu0 0
    %4010 = vmatpush1.bf16.msra.mxu0 %v3904
    %4011 = vmatprep.subr.bf16.mxu0 0
    %4012 = vmatpush1.bf16.msra.mxu0 %v3905
    %4013 = vmatprep.subr.bf16.mxu0 0
    %4014 = vmatpush1.bf16.msra.mxu0 %v3906
    %4015 = vmatprep.subr.bf16.mxu0 0
    %4016 = vmatpush1.bf16.msra.mxu0 %v3907
    %4017 = vmatprep.subr.bf16.mxu0 0
    %4018 = vmatpush1.bf16.msra.mxu0 %v3908
    %4019 = vmatprep.subr.bf16.mxu0 0
    %4020 = vmatpush1.bf16.msra.mxu0 %v3909
    %4021 = vmatprep.subr.bf16.mxu0 0
    %4022 = vmatpush1.bf16.msra.mxu0 %v3910
    %4023 = vmatprep.subr.bf16.mxu0 0
    %4024 = vmatpush1.bf16.msra.mxu0 %v3911
    %4025 = vmatprep.mubr.bf16.mxu0 %v3676
    %4026 = vmatmul.mubr.bf16.gmra.mrb[0].mxu0 %v3675
    %v4027 = vpop.f32.mrb[0].mxu0
    %v4028 = vadd.f32 %v3979, %v4027
    %v4029 = vpop.f32.mrb[0].mxu0
    %v4030 = vpop.f32.mrb[0].mxu0
    %v4031 = vadd.f32 %v3982, %v4030
    %v4032 = vpop.f32.mrb[0].mxu0
    %4033 = vmatprep.mubr.bf16.mxu0 %v3680
    %4034 = vmatmul.mubr.bf16.gmra.mrb[0].mxu0 %v3679
    %v4035 = vpop.f32.mrb[0].mxu0
    %v4036 = vadd.f32 %v3987, %v4035
    %v4037 = vpop.f32.mrb[0].mxu0
    %v4038 = vpop.f32.mrb[0].mxu0
    %v4039 = vadd.f32 %v3990, %v4038
    %v4040 = vpop.f32.mrb[0].mxu0
    %4041 = vdwg.mxu0
    %v4042 = vadd.f32 %v3267, %v4028
    %v4043 = vadd.f32 %v3268, %v4031
    %v4044 = vadd.f32 %v3269, %v4036
    %v4045 = vadd.f32 %v3270, %v4039
    %4046 = vadd.xlane.f32.xlu0 %v4042
    %v4047 = vpop.xlane.xlu0 %4046
    %4048 = vadd.xlane.f32.xlu0 %v4043
    %v4049 = vpop.xlane.xlu0 %4048
    %4050 = vadd.xlane.f32.xlu0 %v4044
    %v4051 = vpop.xlane.xlu0 %4050
    %4052 = vadd.xlane.f32.xlu0 %v4045
    %v4053 = vpop.xlane.xlu0 %4052
    %v4054 = vmul.f32 %v4047, %v1691
    %v4055 = vmul.f32 %v4049, %v1691
    %v4056 = vmul.f32 %v4051, %v1691
    %v4057 = vmul.f32 %v4053, %v1691
    %v4058 = vsub.f32 %v4042, %v4054
    %v4059 = vsub.f32 %v4043, %v4055
    %v4060 = vsub.f32 %v4044, %v4056
    %v4061 = vsub.f32 %v4045, %v4057
    %v4062 = vmul.f32 %v4058, %v4058
    %v4063 = vmul.f32 %v4059, %v4059
    %v4064 = vmul.f32 %v4060, %v4060
    %v4065 = vmul.f32 %v4061, %v4061
    %4066 = vadd.xlane.f32.xlu0 %v4062
    %v4067 = vpop.xlane.xlu0 %4066
    %4068 = vadd.xlane.f32.xlu0 %v4063
    %v4069 = vpop.xlane.xlu0 %4068
    %4070 = vadd.xlane.f32.xlu0 %v4064
    %v4071 = vpop.xlane.xlu0 %4070
    %4072 = vadd.xlane.f32.xlu0 %v4065
    %v4073 = vpop.xlane.xlu0 %4072
    %v4074 = vmul.f32 %v4067, %v1691
    %v4075 = vmul.f32 %v4069, %v1691
    %v4076 = vmul.f32 %v4071, %v1691
    %v4077 = vmul.f32 %v4073, %v1691
    %v4078 = vadd.f32 %v4074, 1e-05
    %v4079 = vadd.f32 %v4075, 1e-05
    %v4080 = vadd.f32 %v4076, 1e-05
    %v4081 = vadd.f32 %v4077, 1e-05
    %v4082 = vrsqrt.pop %v4078
    %v4083 = vrsqrt.pop %v4079
    %v4084 = vrsqrt.pop %v4080
    %v4085 = vrsqrt.pop %v4081
    %v4086 = vmul.f32 %v4058, %v4082
    %v4087 = vmul.f32 %v4059, %v4083
    %v4088 = vmul.f32 %v4060, %v4084
    %v4089 = vmul.f32 %v4061, %v4085
    %v4090 = vld [vmem:[%s16 + $0x2] sm:$0x1]
    %v4091 = vlaneseq
    %v4092 = vshrl.u32 %v4091, 7
    %v4093 = vsub.s32 0, %v4092
    %v4094 = vrot.slane %v4090, %v4093
    %v4095 = vmul.f32 %v4086, %v4094
    %v4096 = vmul.f32 %v4087, %v4094
    %v4097 = vmul.f32 %v4088, %v4094
    %v4098 = vmul.f32 %v4089, %v4094
    %v4099 = vld [vmem:[%s17 + $0x2] sm:$0x1]
    %v4100 = vlaneseq
    %v4101 = vshrl.u32 %v4100, 7
    %v4102 = vsub.s32 0, %v4101
    %v4103 = vrot.slane %v4099, %v4102
    %v4104 = vadd.f32 %v4095, %v4103
    %v4105 = vadd.f32 %v4096, %v4103
    %v4106 = vadd.f32 %v4097, %v4103
    %v4107 = vadd.f32 %v4098, %v4103
    %v4108 = vpack.c.bf16 %v4105, %v4104
    %v4109 = vpack.c.bf16 %v4107, %v4106
    %v4112 = vunpack.c.l.b16 %v4108
    %v4113 = vunpack.c.h.b16 %v4108
    %v4114 = vunpack.c.l.b16 %v4109
    %v4115 = vunpack.c.h.b16 %v4109
    %v4116 = vpack.c.b16 %v4112, %v4112
    %v4117 = vpack.c.b16 %v4113, %v4113
    %v4118 = vpack.c.b16 %v4114, %v4114
    %v4119 = vpack.c.b16 %v4115, %v4115
    %4124 = vst [vmem:[#allocation17] sm:$0xf] %v4116
    %4125 = vst [vmem:[#allocation17 + $0x4] sm:$0xf] %v4117
    %4126 = vst [vmem:[#allocation17 + $0x8] sm:$0xf] %v4118
    %4127 = vst [vmem:[#allocation17 + $0xc] sm:$0xf] %v4119
    // Predicated region
    $region110: #{tpu_custom_call.1} parent=1 // pred_check
      _
    $region111: #{tpu_custom_call.1} parent=1 // pred_check_branch
      %4129 = sbr.rel (0) target = $region113
    $region112: #{tpu_custom_call.1} parent=1 // pred_region
      %s4131 = ssub.s32 256, 256
      %4132 = vsyncadd [#allocation4], %s4131
      %s4133 = sshll.u32 [#allocation17], 4
      %s4134 = int_to_ptr.vmem [resolvable:$true] %s4133
      %4139 = dma.vmem_to_hbm [thread:$0]  %s4134, 256, %s18, [#allocation4], 64, 64, 4
    $region113: #{tpu_custom_call.1} parent=1 // pred_fallthru
      _
    // Predicated region
    $region114: #{tpu_custom_call.1} parent=1 // pred_check
      _
    $region115: #{tpu_custom_call.1} parent=1 // pred_check_branch
      %4141 = sbr.rel (0) target = $region117
    $region116: #{tpu_custom_call.1} parent=1 // pred_region
      %4142 = dma.done [#allocation4], 256
    $region117: #{tpu_custom_call.1} parent=1 // pred_fallthru
      _
    %4143 = vsyncpa [#allocation3], 1
    %4144 = vsyncpa [#allocation6], 1
    %4145 = vsyncpa [#allocation9], 1
    %4146 = vsyncpa [#allocation12], 1
    %4147 = vsyncpa [#allocation15], 1
    %4148 = vsyncpa [#allocation4], 1

</llo_original>
